<compile_context>
chip_gen: v7x
topology: tpu7x:2x2x1
jax: 0.10.0
libtpu: 0.0.40
codegen_flags: <defaults>
</compile_context>

<pallas_src>
import jax
import jax.numpy as jnp
from jax.experimental import pallas as pl
from jax.experimental.pallas import tpu as pltpu

_BN_EPS = 1e-5

# Static model geometry (matches the PyTorch module).
K1, K2 = 15, 9          # conv kernel sizes
PAD1, PAD2 = 7, 4       # 'same' padding
C1, C2 = 64, 128        # channel widths
KPAD = K1 + 1           # conv1 im2col contraction padded to a multiple of 8
_PR = 8                 # aligned zero-border rows on each side of padded slabs


# ----------------------------------------------------------------------------
# Fused kernel: one batch element per grid step, everything in VMEM.
# ----------------------------------------------------------------------------
def _fused_kernel(xcol_ref, w1_ref, b1_ref, s1_ref, t1_ref,
                  w2_ref, b2_ref,
                  w3_ref, b3_ref, s3_ref, t3_ref,
                  w4_ref, b4_ref,
                  fc1w_ref, fc1b_ref, fc2w_ref, fc2b_ref,
                  out_ref,
                  pad1, pad2, pad3, res1, res2):
  L1 = res1.shape[0]          # sequence length (e.g. 64)
  L2 = res2.shape[0]          # L1 // 2

  # ---- conv1 (Cin=1): single MXU matmul over the wrapper-built im2col ------
  raw1 = jnp.dot(xcol_ref[...], w1_ref[...],
                 preferred_element_type=jnp.float32) + b1_ref[...]   # (L1, C1)
  act1 = jnp.maximum(raw1 * s1_ref[...] + t1_ref[...], 0.0)

  # ---- conv2 (BN folded into weights) --------------------------------------
  zb1 = jnp.zeros((_PR, C1), jnp.float32)
  pad1[pl.ds(0, _PR), :] = zb1                        # left zero border
  pad1[pl.ds(_PR + L1, _PR), :] = zb1                 # right zero border
  pad1[pl.ds(_PR, L1), :] = act1                      # aligned interior write

  acc2 = jnp.zeros((L1, C1), jnp.float32)
  for k in range(K1):                                 # static tap loop (MXU)
    acc2 = acc2 + jnp.dot(pad1[pl.ds(_PR - PAD1 + k, L1), :], w2_ref[k],
                          preferred_element_type=jnp.float32)
  act2 = jnp.maximum(acc2 + b2_ref[...], 0.0)

  # ---- residual add + maxpool(2) via even/odd strided sublane reads --------
  res1[...] = act2 + raw1
  pool1 = jnp.maximum(res1[pl.ds(0, L2, stride=2), :],
                      res1[pl.ds(1, L2, stride=2), :])               # (L2, C1)

  # ---- conv3 (raw kept for the residual; BN applied as scale/shift) --------
  zb2 = jnp.zeros((_PR, C1), jnp.float32)
  pad2[pl.ds(0, _PR), :] = zb2
  pad2[pl.ds(_PR + L2, _PR), :] = zb2
  pad2[pl.ds(_PR, L2), :] = pool1

  acc3 = jnp.zeros((L2, C2), jnp.float32)
  for k in range(K2):
    acc3 = acc3 + jnp.dot(pad2[pl.ds(_PR - PAD2 + k, L2), :], w3_ref[k],
                          preferred_element_type=jnp.float32)
  raw3 = acc3 + b3_ref[...]
  act3 = jnp.maximum(raw3 * s3_ref[...] + t3_ref[...], 0.0)

  # ---- conv4 (BN folded into weights) --------------------------------------
  zb3 = jnp.zeros((_PR, C2), jnp.float32)
  pad3[pl.ds(0, _PR), :] = zb3
  pad3[pl.ds(_PR + L2, _PR), :] = zb3
  pad3[pl.ds(_PR, L2), :] = act3

  acc4 = jnp.zeros((L2, C2), jnp.float32)
  for k in range(K2):
    acc4 = acc4 + jnp.dot(pad3[pl.ds(_PR - PAD2 + k, L2), :], w4_ref[k],
                          preferred_element_type=jnp.float32)
  act4 = jnp.maximum(acc4 + b4_ref[...], 0.0)

  # ---- residual add + maxpool(2) -------------------------------------------
  res2[...] = act4 + raw3
  pool2 = jnp.maximum(res2[pl.ds(0, L2 // 2, stride=2), :],
                      res2[pl.ds(1, L2 // 2, stride=2), :])          # (L2/2, C2)

  # ---- head: GAP -> fc1 + ReLU -> (dropout = identity) -> fc2 --------------
  g = jnp.mean(pool2, axis=0, keepdims=True)                         # (1, C2)
  h = jnp.dot(g, fc1w_ref[...], preferred_element_type=jnp.float32) + fc1b_ref[...]
  h = jnp.maximum(h, 0.0)
  # TODO(synk): dropout (p=0.5) is a no-op in eval mode.
  logits = jnp.dot(h, fc2w_ref[...],
                   preferred_element_type=jnp.float32) + fc2b_ref[...]
  out_ref[...] = logits.astype(out_ref.dtype)


# ----------------------------------------------------------------------------
# Parameters
# ----------------------------------------------------------------------------
def _fold_bn(gamma, beta, rmean, rvar):
  scale = gamma / jnp.sqrt(rvar + _BN_EPS)
  shift = beta - rmean * scale
  return scale[None, :], shift[None, :]


def init_params(key):
  ks = jax.random.split(key, 6)

  def conv_init(k, K, cin, cout):
    bound = 1.0 / jnp.sqrt(cin * K)
    kw, kb = jax.random.split(k)
    w = jax.random.uniform(kw, (K, cin, cout), jnp.float32, -bound, bound)
    b = jax.random.uniform(kb, (1, cout), jnp.float32, -bound, bound)
    return w, b

  def linear_init(k, fin, fout):
    bound = 1.0 / jnp.sqrt(fin)
    kw, kb = jax.random.split(k)
    w = jax.random.uniform(kw, (fin, fout), jnp.float32, -bound, bound)
    b = jax.random.uniform(kb, (1, fout), jnp.float32, -bound, bound)
    return w, b

  p = {}
  p['w1'], p['b1'] = conv_init(ks[0], K1, 1, C1)
  p['w2'], p['b2'] = conv_init(ks[1], K1, C1, C1)
  p['w3'], p['b3'] = conv_init(ks[2], K2, C1, C2)
  p['w4'], p['b4'] = conv_init(ks[3], K2, C2, C2)
  # BatchNorm at PyTorch defaults: gamma=1, beta=0, running mean=0, var=1.
  for i, c in zip((1, 2, 3, 4), (C1, C1, C2, C2)):
    s, t = _fold_bn(jnp.ones((c,), jnp.float32), jnp.zeros((c,), jnp.float32),
                    jnp.zeros((c,), jnp.float32), jnp.ones((c,), jnp.float32))
    p[f's{i}'], p[f't{i}'] = s, t
  p['fc1_w'], p['fc1_b'] = linear_init(ks[4], C2, C1)
  p['fc2_w'], p['fc2_b'] = linear_init(ks[5], C1, 2)
  return p


# ----------------------------------------------------------------------------
# Forward (single fused pallas_call)
# ----------------------------------------------------------------------------
@jax.jit
def noise_classifier_forward(x_ncw, p):
  """x_ncw: (B, 1, L) exactly like the PyTorch module's NCW input."""
  B, _, L = x_ncw.shape
  L2 = L // 2

  # conv1 im2col built once in the wrapper (input is tiny: (B, 1, L)):
  # xcol[b, l, k] = x[b, l + k - PAD1] (zero outside), contraction padded to 16.
  x2d = x_ncw[:, 0, :]
  xpad = jnp.pad(x2d, ((0, 0), (PAD1, PAD1)))
  xcol = jnp.stack([xpad[:, k:k + L] for k in range(K1)], axis=-1)
  xcol = jnp.pad(xcol, ((0, 0), (0, 0), (0, KPAD - K1)))          # (B, L, 16)

  # Weight-side constant folding (done on weights only, once per jit):
  w1 = jnp.pad(p['w1'].reshape(K1, C1), ((0, KPAD - K1), (0, 0)))  # (16, C1)
  w2f = p['w2'] * p['s2'][0][None, None, :]                        # BN folded
  b2f = p['b2'] * p['s2'] + p['t2']
  w4f = p['w4'] * p['s4'][0][None, None, :]
  b4f = p['b4'] * p['s4'] + p['t4']

  out = pl.pallas_call(
      _fused_kernel,
      out_shape=jax.ShapeDtypeStruct((B, 1, 2), jnp.float32),
      grid=(B,),
      in_specs=[
          pl.BlockSpec((None, L, KPAD), lambda b: (b, 0, 0)),   # xcol
          pl.BlockSpec((KPAD, C1), lambda b: (0, 0)),           # w1 (im2col)
          pl.BlockSpec((1, C1), lambda b: (0, 0)),              # b1
          pl.BlockSpec((1, C1), lambda b: (0, 0)),              # bn1 scale
          pl.BlockSpec((1, C1), lambda b: (0, 0)),              # bn1 shift
          pl.BlockSpec((K1, C1, C1), lambda b: (0, 0, 0)),      # w2 (BN folded)
          pl.BlockSpec((1, C1), lambda b: (0, 0)),              # b2 (BN folded)
          pl.BlockSpec((K2, C1, C2), lambda b: (0, 0, 0)),      # w3
          pl.BlockSpec((1, C2), lambda b: (0, 0)),              # b3
          pl.BlockSpec((1, C2), lambda b: (0, 0)),              # bn3 scale
          pl.BlockSpec((1, C2), lambda b: (0, 0)),              # bn3 shift
          pl.BlockSpec((K2, C2, C2), lambda b: (0, 0, 0)),      # w4 (BN folded)
          pl.BlockSpec((1, C2), lambda b: (0, 0)),              # b4 (BN folded)
          pl.BlockSpec((C2, C1), lambda b: (0, 0)),             # fc1_w
          pl.BlockSpec((1, C1), lambda b: (0, 0)),              # fc1_b
          pl.BlockSpec((C1, 2), lambda b: (0, 0)),              # fc2_w
          pl.BlockSpec((1, 2), lambda b: (0, 0)),               # fc2_b
      ],
      out_specs=pl.BlockSpec((None, 1, 2), lambda b: (b, 0, 0)),
      scratch_shapes=[
          pltpu.VMEM((L + 2 * _PR, C1), jnp.float32),    # padded act1
          pltpu.VMEM((L2 + 2 * _PR, C1), jnp.float32),   # padded pooled1
          pltpu.VMEM((L2 + 2 * _PR, C2), jnp.float32),   # padded act3
          pltpu.VMEM((L, C1), jnp.float32),              # residual sum 1
          pltpu.VMEM((L2, C2), jnp.float32),             # residual sum 2
      ],
      compiler_params=pltpu.CompilerParams(
          dimension_semantics=("parallel",)),            # v7x: 1 batch / core
  )(xcol, w1, p['b1'], p['s1'], p['t1'],
    w2f, b2f,
    p['w3'], p['b3'], p['s3'], p['t3'],
    w4f, b4f,
    p['fc1_w'], p['fc1_b'], p['fc2_w'], p['fc2_b'])
  return out.reshape(B, 2)


# ----------------------------------------------------------------------------
# Pure-JAX reference (correctness check)
# ----------------------------------------------------------------------------
def _ref_forward(x_ncw, p):
  x = jnp.transpose(x_ncw, (0, 2, 1))

  def conv(x, w, b, pad):
    y = jax.lax.conv_general_dilated(
        x, w, window_strides=(1,), padding=[(pad, pad)],
        dimension_numbers=('NWC', 'WIO', 'NWC'))
    return y + b

  def pool2(y):
    B, L, C = y.shape
    return jnp.max(y.reshape(B, L // 2, 2, C), axis=2)

  raw1 = conv(x, p['w1'], p['b1'], PAD1)
  a1 = jnp.maximum(raw1 * p['s1'] + p['t1'], 0.0)
  a2 = jnp.maximum(conv(a1, p['w2'], p['b2'], PAD1) * p['s2'] + p['t2'], 0.0)
  x = pool2(a2 + raw1)
  raw3 = conv(x, p['w3'], p['b3'], PAD2)
  a3 = jnp.maximum(raw3 * p['s3'] + p['t3'], 0.0)
  a4 = jnp.maximum(conv(a3, p['w4'], p['b4'], PAD2) * p['s4'] + p['t4'], 0.0)
  x = pool2(a4 + raw3)
  g = jnp.mean(x, axis=1)
  h = jnp.maximum(g @ p['fc1_w'] + p['fc1_b'], 0.0)
  return h @ p['fc2_w'] + p['fc2_b']


# ----------------------------------------------------------------------------
if __name__ == "__main__":
  key = jax.random.PRNGKey(0)
  k_param, k_x = jax.random.split(key)

  B, L = 2, 64                            # small PPG segment, divisible by 4
  x = jax.random.normal(k_x, (B, 1, L), jnp.float32)   # NCW, like PyTorch
  params = init_params(k_param)

  out = noise_classifier_forward(x, params)
  out = jax.block_until_ready(out)
  assert out.shape == (B, 2), out.shape

  ref = jax.block_until_ready(_ref_forward(x, params))
  assert jnp.allclose(out, ref, rtol=2e-3, atol=2e-3), (out, ref)

  print("KERNEL_OK")
</pallas_src>

<mosaic_0001>
module attributes {stable_mosaic.version = 11 : i64} {
  func.func @_fused_kernel(%arg0: i32, %arg1: memref<1x64x16xf32, #tpu.memory_space<vmem>>, %arg2: memref<16x64xf32, #tpu.memory_space<vmem>>, %arg3: memref<1x64xf32, #tpu.memory_space<vmem>>, %arg4: memref<1x64xf32, #tpu.memory_space<vmem>>, %arg5: memref<1x64xf32, #tpu.memory_space<vmem>>, %arg6: memref<15x64x64xf32, #tpu.memory_space<vmem>>, %arg7: memref<1x64xf32, #tpu.memory_space<vmem>>, %arg8: memref<9x64x128xf32, #tpu.memory_space<vmem>>, %arg9: memref<1x128xf32, #tpu.memory_space<vmem>>, %arg10: memref<1x128xf32, #tpu.memory_space<vmem>>, %arg11: memref<1x128xf32, #tpu.memory_space<vmem>>, %arg12: memref<9x128x128xf32, #tpu.memory_space<vmem>>, %arg13: memref<1x128xf32, #tpu.memory_space<vmem>>, %arg14: memref<128x64xf32, #tpu.memory_space<vmem>>, %arg15: memref<1x64xf32, #tpu.memory_space<vmem>>, %arg16: memref<64x2xf32, #tpu.memory_space<vmem>>, %arg17: memref<1x2xf32, #tpu.memory_space<vmem>>, %arg18: memref<1x1x2xf32, #tpu.memory_space<vmem>>, %arg19: memref<80x64xf32, #tpu.memory_space<vmem>>, %arg20: memref<48x64xf32, #tpu.memory_space<vmem>>, %arg21: memref<48x128xf32, #tpu.memory_space<vmem>>, %arg22: memref<64x64xf32, #tpu.memory_space<vmem>>, %arg23: memref<32x128xf32, #tpu.memory_space<vmem>>) attributes {dimension_semantics = [#tpu.dimension_semantics<parallel>], iteration_bounds = array<i64: 2>, scalar_prefetch = 0 : i64, scratch_operands = 5 : i64, tpu.core_type = #tpu.core_type<tc>, window_params = [{transform_indices = @transform_0, window_bounds = array<i64: 1, 64, 16>}, {pipeline_mode = #tpu.pipeline_mode<synchronous>, transform_indices = @transform_1, window_bounds = array<i64: 16, 64>}, {pipeline_mode = #tpu.pipeline_mode<synchronous>, transform_indices = @transform_2, window_bounds = array<i64: 1, 64>}, {pipeline_mode = #tpu.pipeline_mode<synchronous>, transform_indices = @transform_3, window_bounds = array<i64: 1, 64>}, {pipeline_mode = #tpu.pipeline_mode<synchronous>, transform_indices = @transform_4, window_bounds = array<i64: 1, 64>}, {pipeline_mode = #tpu.pipeline_mode<synchronous>, transform_indices = @transform_5, window_bounds = array<i64: 15, 64, 64>}, {pipeline_mode = #tpu.pipeline_mode<synchronous>, transform_indices = @transform_6, window_bounds = array<i64: 1, 64>}, {pipeline_mode = #tpu.pipeline_mode<synchronous>, transform_indices = @transform_7, window_bounds = array<i64: 9, 64, 128>}, {pipeline_mode = #tpu.pipeline_mode<synchronous>, transform_indices = @transform_8, window_bounds = array<i64: 1, 128>}, {pipeline_mode = #tpu.pipeline_mode<synchronous>, transform_indices = @transform_9, window_bounds = array<i64: 1, 128>}, {pipeline_mode = #tpu.pipeline_mode<synchronous>, transform_indices = @transform_10, window_bounds = array<i64: 1, 128>}, {pipeline_mode = #tpu.pipeline_mode<synchronous>, transform_indices = @transform_11, window_bounds = array<i64: 9, 128, 128>}, {pipeline_mode = #tpu.pipeline_mode<synchronous>, transform_indices = @transform_12, window_bounds = array<i64: 1, 128>}, {pipeline_mode = #tpu.pipeline_mode<synchronous>, transform_indices = @transform_13, window_bounds = array<i64: 128, 64>}, {pipeline_mode = #tpu.pipeline_mode<synchronous>, transform_indices = @transform_14, window_bounds = array<i64: 1, 64>}, {pipeline_mode = #tpu.pipeline_mode<synchronous>, transform_indices = @transform_15, window_bounds = array<i64: 64, 2>}, {pipeline_mode = #tpu.pipeline_mode<synchronous>, transform_indices = @transform_16, window_bounds = array<i64: 1, 2>}, {transform_indices = @transform_17, window_bounds = array<i64: 1, 1, 2>}]} {
    %c0 = arith.constant 0 : index
    %c0_0 = arith.constant 0 : index
    %c0_1 = arith.constant 0 : index
    %0 = vector.load %arg1[%c0, %c0_0, %c0_1] : memref<1x64x16xf32, #tpu.memory_space<vmem>>, vector<1x64x16xf32>
    %1 = vector.shape_cast %0 : vector<1x64x16xf32> to vector<64x16xf32>
    %c0_2 = arith.constant 0 : index
    %c0_3 = arith.constant 0 : index
    %2 = vector.load %arg2[%c0_2, %c0_3] : memref<16x64xf32, #tpu.memory_space<vmem>>, vector<16x64xf32>
    %cst = arith.constant dense<0.000000e+00> : vector<64x64xf32>
    %3 = tpu.matmul %1, %2, %cst {dimension_numbers = #tpu.dot_dimension_numbers<[1], [0], [0], [1], [0, 0, 1, 1], [], []>} : vector<64x16xf32>, vector<16x64xf32>, vector<64x64xf32> -> vector<64x64xf32>
    %c0_4 = arith.constant 0 : index
    %c0_5 = arith.constant 0 : index
    %4 = vector.load %arg3[%c0_4, %c0_5] : memref<1x64xf32, #tpu.memory_space<vmem>>, vector<1x64xf32>
    %5 = vector.broadcast %4 : vector<1x64xf32> to vector<64x64xf32>
    %6 = arith.addf %3, %5 : vector<64x64xf32>
    %c0_6 = arith.constant 0 : index
    %c0_7 = arith.constant 0 : index
    %7 = vector.load %arg4[%c0_6, %c0_7] : memref<1x64xf32, #tpu.memory_space<vmem>>, vector<1x64xf32>
    %8 = vector.broadcast %7 : vector<1x64xf32> to vector<64x64xf32>
    %9 = arith.mulf %6, %8 : vector<64x64xf32>
    %c0_8 = arith.constant 0 : index
    %c0_9 = arith.constant 0 : index
    %10 = vector.load %arg5[%c0_8, %c0_9] : memref<1x64xf32, #tpu.memory_space<vmem>>, vector<1x64xf32>
    %11 = vector.broadcast %10 : vector<1x64xf32> to vector<64x64xf32>
    %12 = arith.addf %9, %11 : vector<64x64xf32>
    %cst_10 = arith.constant 0.000000e+00 : f32
    %13 = vector.broadcast %cst_10 : f32 to vector<64x64xf32>
    %14 = arith.maximumf %12, %13 : vector<64x64xf32>
    %cst_11 = arith.constant 0.000000e+00 : f32
    %15 = vector.broadcast %cst_11 : f32 to vector<8x64xf32>
    %c0_12 = arith.constant 0 : index
    %c0_13 = arith.constant 0 : index
    %16 = vector.load %arg19[%c0_12, %c0_13] : memref<80x64xf32, #tpu.memory_space<vmem>>, vector<8x64xf32>
    tpu.vector_store %arg19[%c0_12, %c0_13], %15 {strides = array<i32>} : memref<80x64xf32, #tpu.memory_space<vmem>>, vector<8x64xf32>,
    %c72 = arith.constant 72 : index
    %c0_14 = arith.constant 0 : index
    %17 = vector.load %arg19[%c72, %c0_14] : memref<80x64xf32, #tpu.memory_space<vmem>>, vector<8x64xf32>
    tpu.vector_store %arg19[%c72, %c0_14], %15 {strides = array<i32>} : memref<80x64xf32, #tpu.memory_space<vmem>>, vector<8x64xf32>,
    %c8 = arith.constant 8 : index
    %c0_15 = arith.constant 0 : index
    %18 = vector.load %arg19[%c8, %c0_15] : memref<80x64xf32, #tpu.memory_space<vmem>>, vector<64x64xf32>
    tpu.vector_store %arg19[%c8, %c0_15], %14 {strides = array<i32>} : memref<80x64xf32, #tpu.memory_space<vmem>>, vector<64x64xf32>,
    %cst_16 = arith.constant 0.000000e+00 : f32
    %19 = vector.broadcast %cst_16 : f32 to vector<64x64xf32>
    %c1 = arith.constant 1 : index
    %c0_17 = arith.constant 0 : index
    %20 = vector.load %arg19[%c1, %c0_17] : memref<80x64xf32, #tpu.memory_space<vmem>>, vector<64x64xf32>
    %c0_18 = arith.constant 0 : index
    %c0_19 = arith.constant 0 : index
    %c0_20 = arith.constant 0 : index
    %21 = vector.load %arg6[%c0_18, %c0_19, %c0_20] : memref<15x64x64xf32, #tpu.memory_space<vmem>>, vector<1x64x64xf32>
    %22 = vector.shape_cast %21 : vector<1x64x64xf32> to vector<64x64xf32>
    %cst_21 = arith.constant dense<0.000000e+00> : vector<64x64xf32>
    %23 = tpu.matmul %20, %22, %cst_21 {dimension_numbers = #tpu.dot_dimension_numbers<[1], [0], [0], [1], [0, 0, 1, 1], [], []>} : vector<64x64xf32>, vector<64x64xf32>, vector<64x64xf32> -> vector<64x64xf32>
    %24 = arith.addf %19, %23 : vector<64x64xf32>
    %c2 = arith.constant 2 : index
    %c0_22 = arith.constant 0 : index
    %25 = vector.load %arg19[%c2, %c0_22] : memref<80x64xf32, #tpu.memory_space<vmem>>, vector<64x64xf32>
    %c1_23 = arith.constant 1 : index
    %c0_24 = arith.constant 0 : index
    %c0_25 = arith.constant 0 : index
    %26 = vector.load %arg6[%c1_23, %c0_24, %c0_25] : memref<15x64x64xf32, #tpu.memory_space<vmem>>, vector<1x64x64xf32>
    %27 = vector.shape_cast %26 : vector<1x64x64xf32> to vector<64x64xf32>
    %cst_26 = arith.constant dense<0.000000e+00> : vector<64x64xf32>
    %28 = tpu.matmul %25, %27, %cst_26 {dimension_numbers = #tpu.dot_dimension_numbers<[1], [0], [0], [1], [0, 0, 1, 1], [], []>} : vector<64x64xf32>, vector<64x64xf32>, vector<64x64xf32> -> vector<64x64xf32>
    %29 = arith.addf %24, %28 : vector<64x64xf32>
    %c3 = arith.constant 3 : index
    %c0_27 = arith.constant 0 : index
    %30 = vector.load %arg19[%c3, %c0_27] : memref<80x64xf32, #tpu.memory_space<vmem>>, vector<64x64xf32>
    %c2_28 = arith.constant 2 : index
    %c0_29 = arith.constant 0 : index
    %c0_30 = arith.constant 0 : index
    %31 = vector.load %arg6[%c2_28, %c0_29, %c0_30] : memref<15x64x64xf32, #tpu.memory_space<vmem>>, vector<1x64x64xf32>
    %32 = vector.shape_cast %31 : vector<1x64x64xf32> to vector<64x64xf32>
    %cst_31 = arith.constant dense<0.000000e+00> : vector<64x64xf32>
    %33 = tpu.matmul %30, %32, %cst_31 {dimension_numbers = #tpu.dot_dimension_numbers<[1], [0], [0], [1], [0, 0, 1, 1], [], []>} : vector<64x64xf32>, vector<64x64xf32>, vector<64x64xf32> -> vector<64x64xf32>
    %34 = arith.addf %29, %33 : vector<64x64xf32>
    %c4 = arith.constant 4 : index
    %c0_32 = arith.constant 0 : index
    %35 = vector.load %arg19[%c4, %c0_32] : memref<80x64xf32, #tpu.memory_space<vmem>>, vector<64x64xf32>
    %c3_33 = arith.constant 3 : index
    %c0_34 = arith.constant 0 : index
    %c0_35 = arith.constant 0 : index
    %36 = vector.load %arg6[%c3_33, %c0_34, %c0_35] : memref<15x64x64xf32, #tpu.memory_space<vmem>>, vector<1x64x64xf32>
    %37 = vector.shape_cast %36 : vector<1x64x64xf32> to vector<64x64xf32>
    %cst_36 = arith.constant dense<0.000000e+00> : vector<64x64xf32>
    %38 = tpu.matmul %35, %37, %cst_36 {dimension_numbers = #tpu.dot_dimension_numbers<[1], [0], [0], [1], [0, 0, 1, 1], [], []>} : vector<64x64xf32>, vector<64x64xf32>, vector<64x64xf32> -> vector<64x64xf32>
    %39 = arith.addf %34, %38 : vector<64x64xf32>
    %c5 = arith.constant 5 : index
    %c0_37 = arith.constant 0 : index
    %40 = vector.load %arg19[%c5, %c0_37] : memref<80x64xf32, #tpu.memory_space<vmem>>, vector<64x64xf32>
    %c4_38 = arith.constant 4 : index
    %c0_39 = arith.constant 0 : index
    %c0_40 = arith.constant 0 : index
    %41 = vector.load %arg6[%c4_38, %c0_39, %c0_40] : memref<15x64x64xf32, #tpu.memory_space<vmem>>, vector<1x64x64xf32>
    %42 = vector.shape_cast %41 : vector<1x64x64xf32> to vector<64x64xf32>
    %cst_41 = arith.constant dense<0.000000e+00> : vector<64x64xf32>
    %43 = tpu.matmul %40, %42, %cst_41 {dimension_numbers = #tpu.dot_dimension_numbers<[1], [0], [0], [1], [0, 0, 1, 1], [], []>} : vector<64x64xf32>, vector<64x64xf32>, vector<64x64xf32> -> vector<64x64xf32>
    %44 = arith.addf %39, %43 : vector<64x64xf32>
    %c6 = arith.constant 6 : index
    %c0_42 = arith.constant 0 : index
    %45 = vector.load %arg19[%c6, %c0_42] : memref<80x64xf32, #tpu.memory_space<vmem>>, vector<64x64xf32>
    %c5_43 = arith.constant 5 : index
    %c0_44 = arith.constant 0 : index
    %c0_45 = arith.constant 0 : index
    %46 = vector.load %arg6[%c5_43, %c0_44, %c0_45] : memref<15x64x64xf32, #tpu.memory_space<vmem>>, vector<1x64x64xf32>
    %47 = vector.shape_cast %46 : vector<1x64x64xf32> to vector<64x64xf32>
    %cst_46 = arith.constant dense<0.000000e+00> : vector<64x64xf32>
    %48 = tpu.matmul %45, %47, %cst_46 {dimension_numbers = #tpu.dot_dimension_numbers<[1], [0], [0], [1], [0, 0, 1, 1], [], []>} : vector<64x64xf32>, vector<64x64xf32>, vector<64x64xf32> -> vector<64x64xf32>
    %49 = arith.addf %44, %48 : vector<64x64xf32>
    %c7 = arith.constant 7 : index
    %c0_47 = arith.constant 0 : index
    %50 = vector.load %arg19[%c7, %c0_47] : memref<80x64xf32, #tpu.memory_space<vmem>>, vector<64x64xf32>
    %c6_48 = arith.constant 6 : index
    %c0_49 = arith.constant 0 : index
    %c0_50 = arith.constant 0 : index
    %51 = vector.load %arg6[%c6_48, %c0_49, %c0_50] : memref<15x64x64xf32, #tpu.memory_space<vmem>>, vector<1x64x64xf32>
    %52 = vector.shape_cast %51 : vector<1x64x64xf32> to vector<64x64xf32>
    %cst_51 = arith.constant dense<0.000000e+00> : vector<64x64xf32>
    %53 = tpu.matmul %50, %52, %cst_51 {dimension_numbers = #tpu.dot_dimension_numbers<[1], [0], [0], [1], [0, 0, 1, 1], [], []>} : vector<64x64xf32>, vector<64x64xf32>, vector<64x64xf32> -> vector<64x64xf32>
    %54 = arith.addf %49, %53 : vector<64x64xf32>
    %c8_52 = arith.constant 8 : index
    %c0_53 = arith.constant 0 : index
    %55 = vector.load %arg19[%c8_52, %c0_53] : memref<80x64xf32, #tpu.memory_space<vmem>>, vector<64x64xf32>
    %c7_54 = arith.constant 7 : index
    %c0_55 = arith.constant 0 : index
    %c0_56 = arith.constant 0 : index
    %56 = vector.load %arg6[%c7_54, %c0_55, %c0_56] : memref<15x64x64xf32, #tpu.memory_space<vmem>>, vector<1x64x64xf32>
    %57 = vector.shape_cast %56 : vector<1x64x64xf32> to vector<64x64xf32>
    %cst_57 = arith.constant dense<0.000000e+00> : vector<64x64xf32>
    %58 = tpu.matmul %55, %57, %cst_57 {dimension_numbers = #tpu.dot_dimension_numbers<[1], [0], [0], [1], [0, 0, 1, 1], [], []>} : vector<64x64xf32>, vector<64x64xf32>, vector<64x64xf32> -> vector<64x64xf32>
    %59 = arith.addf %54, %58 : vector<64x64xf32>
    %c9 = arith.constant 9 : index
    %c0_58 = arith.constant 0 : index
    %60 = vector.load %arg19[%c9, %c0_58] : memref<80x64xf32, #tpu.memory_space<vmem>>, vector<64x64xf32>
    %c8_59 = arith.constant 8 : index
    %c0_60 = arith.constant 0 : index
    %c0_61 = arith.constant 0 : index
    %61 = vector.load %arg6[%c8_59, %c0_60, %c0_61] : memref<15x64x64xf32, #tpu.memory_space<vmem>>, vector<1x64x64xf32>
    %62 = vector.shape_cast %61 : vector<1x64x64xf32> to vector<64x64xf32>
    %cst_62 = arith.constant dense<0.000000e+00> : vector<64x64xf32>
    %63 = tpu.matmul %60, %62, %cst_62 {dimension_numbers = #tpu.dot_dimension_numbers<[1], [0], [0], [1], [0, 0, 1, 1], [], []>} : vector<64x64xf32>, vector<64x64xf32>, vector<64x64xf32> -> vector<64x64xf32>
    %64 = arith.addf %59, %63 : vector<64x64xf32>
    %c10 = arith.constant 10 : index
    %c0_63 = arith.constant 0 : index
    %65 = vector.load %arg19[%c10, %c0_63] : memref<80x64xf32, #tpu.memory_space<vmem>>, vector<64x64xf32>
    %c9_64 = arith.constant 9 : index
    %c0_65 = arith.constant 0 : index
    %c0_66 = arith.constant 0 : index
    %66 = vector.load %arg6[%c9_64, %c0_65, %c0_66] : memref<15x64x64xf32, #tpu.memory_space<vmem>>, vector<1x64x64xf32>
    %67 = vector.shape_cast %66 : vector<1x64x64xf32> to vector<64x64xf32>
    %cst_67 = arith.constant dense<0.000000e+00> : vector<64x64xf32>
    %68 = tpu.matmul %65, %67, %cst_67 {dimension_numbers = #tpu.dot_dimension_numbers<[1], [0], [0], [1], [0, 0, 1, 1], [], []>} : vector<64x64xf32>, vector<64x64xf32>, vector<64x64xf32> -> vector<64x64xf32>
    %69 = arith.addf %64, %68 : vector<64x64xf32>
    %c11 = arith.constant 11 : index
    %c0_68 = arith.constant 0 : index
    %70 = vector.load %arg19[%c11, %c0_68] : memref<80x64xf32, #tpu.memory_space<vmem>>, vector<64x64xf32>
    %c10_69 = arith.constant 10 : index
    %c0_70 = arith.constant 0 : index
    %c0_71 = arith.constant 0 : index
    %71 = vector.load %arg6[%c10_69, %c0_70, %c0_71] : memref<15x64x64xf32, #tpu.memory_space<vmem>>, vector<1x64x64xf32>
    %72 = vector.shape_cast %71 : vector<1x64x64xf32> to vector<64x64xf32>
    %cst_72 = arith.constant dense<0.000000e+00> : vector<64x64xf32>
    %73 = tpu.matmul %70, %72, %cst_72 {dimension_numbers = #tpu.dot_dimension_numbers<[1], [0], [0], [1], [0, 0, 1, 1], [], []>} : vector<64x64xf32>, vector<64x64xf32>, vector<64x64xf32> -> vector<64x64xf32>
    %74 = arith.addf %69, %73 : vector<64x64xf32>
    %c12 = arith.constant 12 : index
    %c0_73 = arith.constant 0 : index
    %75 = vector.load %arg19[%c12, %c0_73] : memref<80x64xf32, #tpu.memory_space<vmem>>, vector<64x64xf32>
    %c11_74 = arith.constant 11 : index
    %c0_75 = arith.constant 0 : index
    %c0_76 = arith.constant 0 : index
    %76 = vector.load %arg6[%c11_74, %c0_75, %c0_76] : memref<15x64x64xf32, #tpu.memory_space<vmem>>, vector<1x64x64xf32>
    %77 = vector.shape_cast %76 : vector<1x64x64xf32> to vector<64x64xf32>
    %cst_77 = arith.constant dense<0.000000e+00> : vector<64x64xf32>
    %78 = tpu.matmul %75, %77, %cst_77 {dimension_numbers = #tpu.dot_dimension_numbers<[1], [0], [0], [1], [0, 0, 1, 1], [], []>} : vector<64x64xf32>, vector<64x64xf32>, vector<64x64xf32> -> vector<64x64xf32>
    %79 = arith.addf %74, %78 : vector<64x64xf32>
    %c13 = arith.constant 13 : index
    %c0_78 = arith.constant 0 : index
    %80 = vector.load %arg19[%c13, %c0_78] : memref<80x64xf32, #tpu.memory_space<vmem>>, vector<64x64xf32>
    %c12_79 = arith.constant 12 : index
    %c0_80 = arith.constant 0 : index
    %c0_81 = arith.constant 0 : index
    %81 = vector.load %arg6[%c12_79, %c0_80, %c0_81] : memref<15x64x64xf32, #tpu.memory_space<vmem>>, vector<1x64x64xf32>
    %82 = vector.shape_cast %81 : vector<1x64x64xf32> to vector<64x64xf32>
    %cst_82 = arith.constant dense<0.000000e+00> : vector<64x64xf32>
    %83 = tpu.matmul %80, %82, %cst_82 {dimension_numbers = #tpu.dot_dimension_numbers<[1], [0], [0], [1], [0, 0, 1, 1], [], []>} : vector<64x64xf32>, vector<64x64xf32>, vector<64x64xf32> -> vector<64x64xf32>
    %84 = arith.addf %79, %83 : vector<64x64xf32>
    %c14 = arith.constant 14 : index
    %c0_83 = arith.constant 0 : index
    %85 = vector.load %arg19[%c14, %c0_83] : memref<80x64xf32, #tpu.memory_space<vmem>>, vector<64x64xf32>
    %c13_84 = arith.constant 13 : index
    %c0_85 = arith.constant 0 : index
    %c0_86 = arith.constant 0 : index
    %86 = vector.load %arg6[%c13_84, %c0_85, %c0_86] : memref<15x64x64xf32, #tpu.memory_space<vmem>>, vector<1x64x64xf32>
    %87 = vector.shape_cast %86 : vector<1x64x64xf32> to vector<64x64xf32>
    %cst_87 = arith.constant dense<0.000000e+00> : vector<64x64xf32>
    %88 = tpu.matmul %85, %87, %cst_87 {dimension_numbers = #tpu.dot_dimension_numbers<[1], [0], [0], [1], [0, 0, 1, 1], [], []>} : vector<64x64xf32>, vector<64x64xf32>, vector<64x64xf32> -> vector<64x64xf32>
    %89 = arith.addf %84, %88 : vector<64x64xf32>
    %c15 = arith.constant 15 : index
    %c0_88 = arith.constant 0 : index
    %90 = vector.load %arg19[%c15, %c0_88] : memref<80x64xf32, #tpu.memory_space<vmem>>, vector<64x64xf32>
    %c14_89 = arith.constant 14 : index
    %c0_90 = arith.constant 0 : index
    %c0_91 = arith.constant 0 : index
    %91 = vector.load %arg6[%c14_89, %c0_90, %c0_91] : memref<15x64x64xf32, #tpu.memory_space<vmem>>, vector<1x64x64xf32>
    %92 = vector.shape_cast %91 : vector<1x64x64xf32> to vector<64x64xf32>
    %cst_92 = arith.constant dense<0.000000e+00> : vector<64x64xf32>
    %93 = tpu.matmul %90, %92, %cst_92 {dimension_numbers = #tpu.dot_dimension_numbers<[1], [0], [0], [1], [0, 0, 1, 1], [], []>} : vector<64x64xf32>, vector<64x64xf32>, vector<64x64xf32> -> vector<64x64xf32>
    %94 = arith.addf %89, %93 : vector<64x64xf32>
    %c0_93 = arith.constant 0 : index
    %c0_94 = arith.constant 0 : index
    %95 = vector.load %arg7[%c0_93, %c0_94] : memref<1x64xf32, #tpu.memory_space<vmem>>, vector<1x64xf32>
    %96 = vector.broadcast %95 : vector<1x64xf32> to vector<64x64xf32>
    %97 = arith.addf %94, %96 : vector<64x64xf32>
    %cst_95 = arith.constant 0.000000e+00 : f32
    %98 = vector.broadcast %cst_95 : f32 to vector<64x64xf32>
    %99 = arith.maximumf %97, %98 : vector<64x64xf32>
    %100 = arith.addf %99, %6 : vector<64x64xf32>
    %c0_96 = arith.constant 0 : index
    %c0_97 = arith.constant 0 : index
    %101 = vector.load %arg22[%c0_96, %c0_97] : memref<64x64xf32, #tpu.memory_space<vmem>>, vector<64x64xf32>
    tpu.vector_store %arg22[%c0_96, %c0_97], %100 {strides = array<i32>} : memref<64x64xf32, #tpu.memory_space<vmem>>, vector<64x64xf32>,
    %c0_98 = arith.constant 0 : index
    %c0_99 = arith.constant 0 : index
    %102 = tpu.strided_load %arg22[%c0_98, %c0_99] {strides = array<i32: 2, 1>} : memref<64x64xf32, #tpu.memory_space<vmem>>, vector<32x64xf32>
    %c1_100 = arith.constant 1 : index
    %c0_101 = arith.constant 0 : index
    %103 = tpu.strided_load %arg22[%c1_100, %c0_101] {strides = array<i32: 2, 1>} : memref<64x64xf32, #tpu.memory_space<vmem>>, vector<32x64xf32>
    %104 = arith.maximumf %102, %103 : vector<32x64xf32>
    %cst_102 = arith.constant 0.000000e+00 : f32
    %105 = vector.broadcast %cst_102 : f32 to vector<8x64xf32>
    %c0_103 = arith.constant 0 : index
    %c0_104 = arith.constant 0 : index
    %106 = vector.load %arg20[%c0_103, %c0_104] : memref<48x64xf32, #tpu.memory_space<vmem>>, vector<8x64xf32>
    tpu.vector_store %arg20[%c0_103, %c0_104], %105 {strides = array<i32>} : memref<48x64xf32, #tpu.memory_space<vmem>>, vector<8x64xf32>,
    %c40 = arith.constant 40 : index
    %c0_105 = arith.constant 0 : index
    %107 = vector.load %arg20[%c40, %c0_105] : memref<48x64xf32, #tpu.memory_space<vmem>>, vector<8x64xf32>
    tpu.vector_store %arg20[%c40, %c0_105], %105 {strides = array<i32>} : memref<48x64xf32, #tpu.memory_space<vmem>>, vector<8x64xf32>,
    %c8_106 = arith.constant 8 : index
    %c0_107 = arith.constant 0 : index
    %108 = vector.load %arg20[%c8_106, %c0_107] : memref<48x64xf32, #tpu.memory_space<vmem>>, vector<32x64xf32>
    tpu.vector_store %arg20[%c8_106, %c0_107], %104 {strides = array<i32>} : memref<48x64xf32, #tpu.memory_space<vmem>>, vector<32x64xf32>,
    %cst_108 = arith.constant 0.000000e+00 : f32
    %109 = vector.broadcast %cst_108 : f32 to vector<32x128xf32>
    %c4_109 = arith.constant 4 : index
    %c0_110 = arith.constant 0 : index
    %110 = vector.load %arg20[%c4_109, %c0_110] : memref<48x64xf32, #tpu.memory_space<vmem>>, vector<32x64xf32>
    %c0_111 = arith.constant 0 : index
    %c0_112 = arith.constant 0 : index
    %c0_113 = arith.constant 0 : index
    %111 = vector.load %arg8[%c0_111, %c0_112, %c0_113] : memref<9x64x128xf32, #tpu.memory_space<vmem>>, vector<1x64x128xf32>
    %112 = vector.shape_cast %111 : vector<1x64x128xf32> to vector<64x128xf32>
    %cst_114 = arith.constant dense<0.000000e+00> : vector<32x128xf32>
    %113 = tpu.matmul %110, %112, %cst_114 {dimension_numbers = #tpu.dot_dimension_numbers<[1], [0], [0], [1], [0, 0, 1, 1], [], []>} : vector<32x64xf32>, vector<64x128xf32>, vector<32x128xf32> -> vector<32x128xf32>
    %114 = arith.addf %109, %113 : vector<32x128xf32>
    %c5_115 = arith.constant 5 : index
    %c0_116 = arith.constant 0 : index
    %115 = vector.load %arg20[%c5_115, %c0_116] : memref<48x64xf32, #tpu.memory_space<vmem>>, vector<32x64xf32>
    %c1_117 = arith.constant 1 : index
    %c0_118 = arith.constant 0 : index
    %c0_119 = arith.constant 0 : index
    %116 = vector.load %arg8[%c1_117, %c0_118, %c0_119] : memref<9x64x128xf32, #tpu.memory_space<vmem>>, vector<1x64x128xf32>
    %117 = vector.shape_cast %116 : vector<1x64x128xf32> to vector<64x128xf32>
    %cst_120 = arith.constant dense<0.000000e+00> : vector<32x128xf32>
    %118 = tpu.matmul %115, %117, %cst_120 {dimension_numbers = #tpu.dot_dimension_numbers<[1], [0], [0], [1], [0, 0, 1, 1], [], []>} : vector<32x64xf32>, vector<64x128xf32>, vector<32x128xf32> -> vector<32x128xf32>
    %119 = arith.addf %114, %118 : vector<32x128xf32>
    %c6_121 = arith.constant 6 : index
    %c0_122 = arith.constant 0 : index
    %120 = vector.load %arg20[%c6_121, %c0_122] : memref<48x64xf32, #tpu.memory_space<vmem>>, vector<32x64xf32>
    %c2_123 = arith.constant 2 : index
    %c0_124 = arith.constant 0 : index
    %c0_125 = arith.constant 0 : index
    %121 = vector.load %arg8[%c2_123, %c0_124, %c0_125] : memref<9x64x128xf32, #tpu.memory_space<vmem>>, vector<1x64x128xf32>
    %122 = vector.shape_cast %121 : vector<1x64x128xf32> to vector<64x128xf32>
    %cst_126 = arith.constant dense<0.000000e+00> : vector<32x128xf32>
    %123 = tpu.matmul %120, %122, %cst_126 {dimension_numbers = #tpu.dot_dimension_numbers<[1], [0], [0], [1], [0, 0, 1, 1], [], []>} : vector<32x64xf32>, vector<64x128xf32>, vector<32x128xf32> -> vector<32x128xf32>
    %124 = arith.addf %119, %123 : vector<32x128xf32>
    %c7_127 = arith.constant 7 : index
    %c0_128 = arith.constant 0 : index
    %125 = vector.load %arg20[%c7_127, %c0_128] : memref<48x64xf32, #tpu.memory_space<vmem>>, vector<32x64xf32>
    %c3_129 = arith.constant 3 : index
    %c0_130 = arith.constant 0 : index
    %c0_131 = arith.constant 0 : index
    %126 = vector.load %arg8[%c3_129, %c0_130, %c0_131] : memref<9x64x128xf32, #tpu.memory_space<vmem>>, vector<1x64x128xf32>
    %127 = vector.shape_cast %126 : vector<1x64x128xf32> to vector<64x128xf32>
    %cst_132 = arith.constant dense<0.000000e+00> : vector<32x128xf32>
    %128 = tpu.matmul %125, %127, %cst_132 {dimension_numbers = #tpu.dot_dimension_numbers<[1], [0], [0], [1], [0, 0, 1, 1], [], []>} : vector<32x64xf32>, vector<64x128xf32>, vector<32x128xf32> -> vector<32x128xf32>
    %129 = arith.addf %124, %128 : vector<32x128xf32>
    %c8_133 = arith.constant 8 : index
    %c0_134 = arith.constant 0 : index
    %130 = vector.load %arg20[%c8_133, %c0_134] : memref<48x64xf32, #tpu.memory_space<vmem>>, vector<32x64xf32>
    %c4_135 = arith.constant 4 : index
    %c0_136 = arith.constant 0 : index
    %c0_137 = arith.constant 0 : index
    %131 = vector.load %arg8[%c4_135, %c0_136, %c0_137] : memref<9x64x128xf32, #tpu.memory_space<vmem>>, vector<1x64x128xf32>
    %132 = vector.shape_cast %131 : vector<1x64x128xf32> to vector<64x128xf32>
    %cst_138 = arith.constant dense<0.000000e+00> : vector<32x128xf32>
    %133 = tpu.matmul %130, %132, %cst_138 {dimension_numbers = #tpu.dot_dimension_numbers<[1], [0], [0], [1], [0, 0, 1, 1], [], []>} : vector<32x64xf32>, vector<64x128xf32>, vector<32x128xf32> -> vector<32x128xf32>
    %134 = arith.addf %129, %133 : vector<32x128xf32>
    %c9_139 = arith.constant 9 : index
    %c0_140 = arith.constant 0 : index
    %135 = vector.load %arg20[%c9_139, %c0_140] : memref<48x64xf32, #tpu.memory_space<vmem>>, vector<32x64xf32>
    %c5_141 = arith.constant 5 : index
    %c0_142 = arith.constant 0 : index
    %c0_143 = arith.constant 0 : index
    %136 = vector.load %arg8[%c5_141, %c0_142, %c0_143] : memref<9x64x128xf32, #tpu.memory_space<vmem>>, vector<1x64x128xf32>
    %137 = vector.shape_cast %136 : vector<1x64x128xf32> to vector<64x128xf32>
    %cst_144 = arith.constant dense<0.000000e+00> : vector<32x128xf32>
    %138 = tpu.matmul %135, %137, %cst_144 {dimension_numbers = #tpu.dot_dimension_numbers<[1], [0], [0], [1], [0, 0, 1, 1], [], []>} : vector<32x64xf32>, vector<64x128xf32>, vector<32x128xf32> -> vector<32x128xf32>
    %139 = arith.addf %134, %138 : vector<32x128xf32>
    %c10_145 = arith.constant 10 : index
    %c0_146 = arith.constant 0 : index
    %140 = vector.load %arg20[%c10_145, %c0_146] : memref<48x64xf32, #tpu.memory_space<vmem>>, vector<32x64xf32>
    %c6_147 = arith.constant 6 : index
    %c0_148 = arith.constant 0 : index
    %c0_149 = arith.constant 0 : index
    %141 = vector.load %arg8[%c6_147, %c0_148, %c0_149] : memref<9x64x128xf32, #tpu.memory_space<vmem>>, vector<1x64x128xf32>
    %142 = vector.shape_cast %141 : vector<1x64x128xf32> to vector<64x128xf32>
    %cst_150 = arith.constant dense<0.000000e+00> : vector<32x128xf32>
    %143 = tpu.matmul %140, %142, %cst_150 {dimension_numbers = #tpu.dot_dimension_numbers<[1], [0], [0], [1], [0, 0, 1, 1], [], []>} : vector<32x64xf32>, vector<64x128xf32>, vector<32x128xf32> -> vector<32x128xf32>
    %144 = arith.addf %139, %143 : vector<32x128xf32>
    %c11_151 = arith.constant 11 : index
    %c0_152 = arith.constant 0 : index
    %145 = vector.load %arg20[%c11_151, %c0_152] : memref<48x64xf32, #tpu.memory_space<vmem>>, vector<32x64xf32>
    %c7_153 = arith.constant 7 : index
    %c0_154 = arith.constant 0 : index
    %c0_155 = arith.constant 0 : index
    %146 = vector.load %arg8[%c7_153, %c0_154, %c0_155] : memref<9x64x128xf32, #tpu.memory_space<vmem>>, vector<1x64x128xf32>
    %147 = vector.shape_cast %146 : vector<1x64x128xf32> to vector<64x128xf32>
    %cst_156 = arith.constant dense<0.000000e+00> : vector<32x128xf32>
    %148 = tpu.matmul %145, %147, %cst_156 {dimension_numbers = #tpu.dot_dimension_numbers<[1], [0], [0], [1], [0, 0, 1, 1], [], []>} : vector<32x64xf32>, vector<64x128xf32>, vector<32x128xf32> -> vector<32x128xf32>
    %149 = arith.addf %144, %148 : vector<32x128xf32>
    %c12_157 = arith.constant 12 : index
    %c0_158 = arith.constant 0 : index
    %150 = vector.load %arg20[%c12_157, %c0_158] : memref<48x64xf32, #tpu.memory_space<vmem>>, vector<32x64xf32>
    %c8_159 = arith.constant 8 : index
    %c0_160 = arith.constant 0 : index
    %c0_161 = arith.constant 0 : index
    %151 = vector.load %arg8[%c8_159, %c0_160, %c0_161] : memref<9x64x128xf32, #tpu.memory_space<vmem>>, vector<1x64x128xf32>
    %152 = vector.shape_cast %151 : vector<1x64x128xf32> to vector<64x128xf32>
    %cst_162 = arith.constant dense<0.000000e+00> : vector<32x128xf32>
    %153 = tpu.matmul %150, %152, %cst_162 {dimension_numbers = #tpu.dot_dimension_numbers<[1], [0], [0], [1], [0, 0, 1, 1], [], []>} : vector<32x64xf32>, vector<64x128xf32>, vector<32x128xf32> -> vector<32x128xf32>
    %154 = arith.addf %149, %153 : vector<32x128xf32>
    %c0_163 = arith.constant 0 : index
    %c0_164 = arith.constant 0 : index
    %155 = vector.load %arg9[%c0_163, %c0_164] : memref<1x128xf32, #tpu.memory_space<vmem>>, vector<1x128xf32>
    %156 = vector.broadcast %155 : vector<1x128xf32> to vector<32x128xf32>
    %157 = arith.addf %154, %156 : vector<32x128xf32>
    %c0_165 = arith.constant 0 : index
    %c0_166 = arith.constant 0 : index
    %158 = vector.load %arg10[%c0_165, %c0_166] : memref<1x128xf32, #tpu.memory_space<vmem>>, vector<1x128xf32>
    %159 = vector.broadcast %158 : vector<1x128xf32> to vector<32x128xf32>
    %160 = arith.mulf %157, %159 : vector<32x128xf32>
    %c0_167 = arith.constant 0 : index
    %c0_168 = arith.constant 0 : index
    %161 = vector.load %arg11[%c0_167, %c0_168] : memref<1x128xf32, #tpu.memory_space<vmem>>, vector<1x128xf32>
    %162 = vector.broadcast %161 : vector<1x128xf32> to vector<32x128xf32>
    %163 = arith.addf %160, %162 : vector<32x128xf32>
    %cst_169 = arith.constant 0.000000e+00 : f32
    %164 = vector.broadcast %cst_169 : f32 to vector<32x128xf32>
    %165 = arith.maximumf %163, %164 : vector<32x128xf32>
    %cst_170 = arith.constant 0.000000e+00 : f32
    %166 = vector.broadcast %cst_170 : f32 to vector<8x128xf32>
    %c0_171 = arith.constant 0 : index
    %c0_172 = arith.constant 0 : index
    %167 = vector.load %arg21[%c0_171, %c0_172] : memref<48x128xf32, #tpu.memory_space<vmem>>, vector<8x128xf32>
    tpu.vector_store %arg21[%c0_171, %c0_172], %166 {strides = array<i32>} : memref<48x128xf32, #tpu.memory_space<vmem>>, vector<8x128xf32>,
    %c40_173 = arith.constant 40 : index
    %c0_174 = arith.constant 0 : index
    %168 = vector.load %arg21[%c40_173, %c0_174] : memref<48x128xf32, #tpu.memory_space<vmem>>, vector<8x128xf32>
    tpu.vector_store %arg21[%c40_173, %c0_174], %166 {strides = array<i32>} : memref<48x128xf32, #tpu.memory_space<vmem>>, vector<8x128xf32>,
    %c8_175 = arith.constant 8 : index
    %c0_176 = arith.constant 0 : index
    %169 = vector.load %arg21[%c8_175, %c0_176] : memref<48x128xf32, #tpu.memory_space<vmem>>, vector<32x128xf32>
    tpu.vector_store %arg21[%c8_175, %c0_176], %165 {strides = array<i32>} : memref<48x128xf32, #tpu.memory_space<vmem>>, vector<32x128xf32>,
    %cst_177 = arith.constant 0.000000e+00 : f32
    %170 = vector.broadcast %cst_177 : f32 to vector<32x128xf32>
    %c4_178 = arith.constant 4 : index
    %c0_179 = arith.constant 0 : index
    %171 = vector.load %arg21[%c4_178, %c0_179] : memref<48x128xf32, #tpu.memory_space<vmem>>, vector<32x128xf32>
    %c0_180 = arith.constant 0 : index
    %c0_181 = arith.constant 0 : index
    %c0_182 = arith.constant 0 : index
    %172 = vector.load %arg12[%c0_180, %c0_181, %c0_182] : memref<9x128x128xf32, #tpu.memory_space<vmem>>, vector<1x128x128xf32>
    %173 = vector.shape_cast %172 : vector<1x128x128xf32> to vector<128x128xf32>
    %cst_183 = arith.constant dense<0.000000e+00> : vector<32x128xf32>
    %174 = tpu.matmul %171, %173, %cst_183 {dimension_numbers = #tpu.dot_dimension_numbers<[1], [0], [0], [1], [0, 0, 1, 1], [], []>} : vector<32x128xf32>, vector<128x128xf32>, vector<32x128xf32> -> vector<32x128xf32>
    %175 = arith.addf %170, %174 : vector<32x128xf32>
    %c5_184 = arith.constant 5 : index
    %c0_185 = arith.constant 0 : index
    %176 = vector.load %arg21[%c5_184, %c0_185] : memref<48x128xf32, #tpu.memory_space<vmem>>, vector<32x128xf32>
    %c1_186 = arith.constant 1 : index
    %c0_187 = arith.constant 0 : index
    %c0_188 = arith.constant 0 : index
    %177 = vector.load %arg12[%c1_186, %c0_187, %c0_188] : memref<9x128x128xf32, #tpu.memory_space<vmem>>, vector<1x128x128xf32>
    %178 = vector.shape_cast %177 : vector<1x128x128xf32> to vector<128x128xf32>
    %cst_189 = arith.constant dense<0.000000e+00> : vector<32x128xf32>
    %179 = tpu.matmul %176, %178, %cst_189 {dimension_numbers = #tpu.dot_dimension_numbers<[1], [0], [0], [1], [0, 0, 1, 1], [], []>} : vector<32x128xf32>, vector<128x128xf32>, vector<32x128xf32> -> vector<32x128xf32>
    %180 = arith.addf %175, %179 : vector<32x128xf32>
    %c6_190 = arith.constant 6 : index
    %c0_191 = arith.constant 0 : index
    %181 = vector.load %arg21[%c6_190, %c0_191] : memref<48x128xf32, #tpu.memory_space<vmem>>, vector<32x128xf32>
    %c2_192 = arith.constant 2 : index
    %c0_193 = arith.constant 0 : index
    %c0_194 = arith.constant 0 : index
    %182 = vector.load %arg12[%c2_192, %c0_193, %c0_194] : memref<9x128x128xf32, #tpu.memory_space<vmem>>, vector<1x128x128xf32>
    %183 = vector.shape_cast %182 : vector<1x128x128xf32> to vector<128x128xf32>
    %cst_195 = arith.constant dense<0.000000e+00> : vector<32x128xf32>
    %184 = tpu.matmul %181, %183, %cst_195 {dimension_numbers = #tpu.dot_dimension_numbers<[1], [0], [0], [1], [0, 0, 1, 1], [], []>} : vector<32x128xf32>, vector<128x128xf32>, vector<32x128xf32> -> vector<32x128xf32>
    %185 = arith.addf %180, %184 : vector<32x128xf32>
    %c7_196 = arith.constant 7 : index
    %c0_197 = arith.constant 0 : index
    %186 = vector.load %arg21[%c7_196, %c0_197] : memref<48x128xf32, #tpu.memory_space<vmem>>, vector<32x128xf32>
    %c3_198 = arith.constant 3 : index
    %c0_199 = arith.constant 0 : index
    %c0_200 = arith.constant 0 : index
    %187 = vector.load %arg12[%c3_198, %c0_199, %c0_200] : memref<9x128x128xf32, #tpu.memory_space<vmem>>, vector<1x128x128xf32>
    %188 = vector.shape_cast %187 : vector<1x128x128xf32> to vector<128x128xf32>
    %cst_201 = arith.constant dense<0.000000e+00> : vector<32x128xf32>
    %189 = tpu.matmul %186, %188, %cst_201 {dimension_numbers = #tpu.dot_dimension_numbers<[1], [0], [0], [1], [0, 0, 1, 1], [], []>} : vector<32x128xf32>, vector<128x128xf32>, vector<32x128xf32> -> vector<32x128xf32>
    %190 = arith.addf %185, %189 : vector<32x128xf32>
    %c8_202 = arith.constant 8 : index
    %c0_203 = arith.constant 0 : index
    %191 = vector.load %arg21[%c8_202, %c0_203] : memref<48x128xf32, #tpu.memory_space<vmem>>, vector<32x128xf32>
    %c4_204 = arith.constant 4 : index
    %c0_205 = arith.constant 0 : index
    %c0_206 = arith.constant 0 : index
    %192 = vector.load %arg12[%c4_204, %c0_205, %c0_206] : memref<9x128x128xf32, #tpu.memory_space<vmem>>, vector<1x128x128xf32>
    %193 = vector.shape_cast %192 : vector<1x128x128xf32> to vector<128x128xf32>
    %cst_207 = arith.constant dense<0.000000e+00> : vector<32x128xf32>
    %194 = tpu.matmul %191, %193, %cst_207 {dimension_numbers = #tpu.dot_dimension_numbers<[1], [0], [0], [1], [0, 0, 1, 1], [], []>} : vector<32x128xf32>, vector<128x128xf32>, vector<32x128xf32> -> vector<32x128xf32>
    %195 = arith.addf %190, %194 : vector<32x128xf32>
    %c9_208 = arith.constant 9 : index
    %c0_209 = arith.constant 0 : index
    %196 = vector.load %arg21[%c9_208, %c0_209] : memref<48x128xf32, #tpu.memory_space<vmem>>, vector<32x128xf32>
    %c5_210 = arith.constant 5 : index
    %c0_211 = arith.constant 0 : index
    %c0_212 = arith.constant 0 : index
    %197 = vector.load %arg12[%c5_210, %c0_211, %c0_212] : memref<9x128x128xf32, #tpu.memory_space<vmem>>, vector<1x128x128xf32>
    %198 = vector.shape_cast %197 : vector<1x128x128xf32> to vector<128x128xf32>
    %cst_213 = arith.constant dense<0.000000e+00> : vector<32x128xf32>
    %199 = tpu.matmul %196, %198, %cst_213 {dimension_numbers = #tpu.dot_dimension_numbers<[1], [0], [0], [1], [0, 0, 1, 1], [], []>} : vector<32x128xf32>, vector<128x128xf32>, vector<32x128xf32> -> vector<32x128xf32>
    %200 = arith.addf %195, %199 : vector<32x128xf32>
    %c10_214 = arith.constant 10 : index
    %c0_215 = arith.constant 0 : index
    %201 = vector.load %arg21[%c10_214, %c0_215] : memref<48x128xf32, #tpu.memory_space<vmem>>, vector<32x128xf32>
    %c6_216 = arith.constant 6 : index
    %c0_217 = arith.constant 0 : index
    %c0_218 = arith.constant 0 : index
    %202 = vector.load %arg12[%c6_216, %c0_217, %c0_218] : memref<9x128x128xf32, #tpu.memory_space<vmem>>, vector<1x128x128xf32>
    %203 = vector.shape_cast %202 : vector<1x128x128xf32> to vector<128x128xf32>
    %cst_219 = arith.constant dense<0.000000e+00> : vector<32x128xf32>
    %204 = tpu.matmul %201, %203, %cst_219 {dimension_numbers = #tpu.dot_dimension_numbers<[1], [0], [0], [1], [0, 0, 1, 1], [], []>} : vector<32x128xf32>, vector<128x128xf32>, vector<32x128xf32> -> vector<32x128xf32>
    %205 = arith.addf %200, %204 : vector<32x128xf32>
    %c11_220 = arith.constant 11 : index
    %c0_221 = arith.constant 0 : index
    %206 = vector.load %arg21[%c11_220, %c0_221] : memref<48x128xf32, #tpu.memory_space<vmem>>, vector<32x128xf32>
    %c7_222 = arith.constant 7 : index
    %c0_223 = arith.constant 0 : index
    %c0_224 = arith.constant 0 : index
    %207 = vector.load %arg12[%c7_222, %c0_223, %c0_224] : memref<9x128x128xf32, #tpu.memory_space<vmem>>, vector<1x128x128xf32>
    %208 = vector.shape_cast %207 : vector<1x128x128xf32> to vector<128x128xf32>
    %cst_225 = arith.constant dense<0.000000e+00> : vector<32x128xf32>
    %209 = tpu.matmul %206, %208, %cst_225 {dimension_numbers = #tpu.dot_dimension_numbers<[1], [0], [0], [1], [0, 0, 1, 1], [], []>} : vector<32x128xf32>, vector<128x128xf32>, vector<32x128xf32> -> vector<32x128xf32>
    %210 = arith.addf %205, %209 : vector<32x128xf32>
    %c12_226 = arith.constant 12 : index
    %c0_227 = arith.constant 0 : index
    %211 = vector.load %arg21[%c12_226, %c0_227] : memref<48x128xf32, #tpu.memory_space<vmem>>, vector<32x128xf32>
    %c8_228 = arith.constant 8 : index
    %c0_229 = arith.constant 0 : index
    %c0_230 = arith.constant 0 : index
    %212 = vector.load %arg12[%c8_228, %c0_229, %c0_230] : memref<9x128x128xf32, #tpu.memory_space<vmem>>, vector<1x128x128xf32>
    %213 = vector.shape_cast %212 : vector<1x128x128xf32> to vector<128x128xf32>
    %cst_231 = arith.constant dense<0.000000e+00> : vector<32x128xf32>
    %214 = tpu.matmul %211, %213, %cst_231 {dimension_numbers = #tpu.dot_dimension_numbers<[1], [0], [0], [1], [0, 0, 1, 1], [], []>} : vector<32x128xf32>, vector<128x128xf32>, vector<32x128xf32> -> vector<32x128xf32>
    %215 = arith.addf %210, %214 : vector<32x128xf32>
    %c0_232 = arith.constant 0 : index
    %c0_233 = arith.constant 0 : index
    %216 = vector.load %arg13[%c0_232, %c0_233] : memref<1x128xf32, #tpu.memory_space<vmem>>, vector<1x128xf32>
    %217 = vector.broadcast %216 : vector<1x128xf32> to vector<32x128xf32>
    %218 = arith.addf %215, %217 : vector<32x128xf32>
    %cst_234 = arith.constant 0.000000e+00 : f32
    %219 = vector.broadcast %cst_234 : f32 to vector<32x128xf32>
    %220 = arith.maximumf %218, %219 : vector<32x128xf32>
    %221 = arith.addf %220, %157 : vector<32x128xf32>
    %c0_235 = arith.constant 0 : index
    %c0_236 = arith.constant 0 : index
    %222 = vector.load %arg23[%c0_235, %c0_236] : memref<32x128xf32, #tpu.memory_space<vmem>>, vector<32x128xf32>
    tpu.vector_store %arg23[%c0_235, %c0_236], %221 {strides = array<i32>} : memref<32x128xf32, #tpu.memory_space<vmem>>, vector<32x128xf32>,
    %c0_237 = arith.constant 0 : index
    %c0_238 = arith.constant 0 : index
    %223 = tpu.strided_load %arg23[%c0_237, %c0_238] {strides = array<i32: 2, 1>} : memref<32x128xf32, #tpu.memory_space<vmem>>, vector<16x128xf32>
    %c1_239 = arith.constant 1 : index
    %c0_240 = arith.constant 0 : index
    %224 = tpu.strided_load %arg23[%c1_239, %c0_240] {strides = array<i32: 2, 1>} : memref<32x128xf32, #tpu.memory_space<vmem>>, vector<16x128xf32>
    %225 = arith.maximumf %223, %224 : vector<16x128xf32>
    %cst_241 = arith.constant dense<0.000000e+00> : vector<128xf32>
    %226 = vector.multi_reduction <add>, %225, %cst_241 [0] : vector<16x128xf32> to vector<128xf32>
    %227 = vector.shape_cast %226 : vector<128xf32> to vector<1x128xf32>
    %cst_242 = arith.constant 1.600000e+01 : f32
    %228 = vector.broadcast %cst_242 : f32 to vector<1x128xf32>
    %229 = arith.divf %227, %228 : vector<1x128xf32>
    %c0_243 = arith.constant 0 : index
    %c0_244 = arith.constant 0 : index
    %230 = vector.load %arg14[%c0_243, %c0_244] : memref<128x64xf32, #tpu.memory_space<vmem>>, vector<128x64xf32>
    %cst_245 = arith.constant dense<0.000000e+00> : vector<1x64xf32>
    %231 = tpu.matmul %229, %230, %cst_245 {dimension_numbers = #tpu.dot_dimension_numbers<[1], [0], [0], [1], [0, 0, 1, 1], [], []>} : vector<1x128xf32>, vector<128x64xf32>, vector<1x64xf32> -> vector<1x64xf32>
    %c0_246 = arith.constant 0 : index
    %c0_247 = arith.constant 0 : index
    %232 = vector.load %arg15[%c0_246, %c0_247] : memref<1x64xf32, #tpu.memory_space<vmem>>, vector<1x64xf32>
    %233 = arith.addf %231, %232 : vector<1x64xf32>
    %cst_248 = arith.constant 0.000000e+00 : f32
    %234 = vector.broadcast %cst_248 : f32 to vector<1x64xf32>
    %235 = arith.maximumf %233, %234 : vector<1x64xf32>
    %c0_249 = arith.constant 0 : index
    %c0_250 = arith.constant 0 : index
    %236 = vector.load %arg16[%c0_249, %c0_250] : memref<64x2xf32, #tpu.memory_space<vmem>>, vector<64x2xf32>
    %cst_251 = arith.constant dense<0.000000e+00> : vector<1x2xf32>
    %237 = tpu.matmul %235, %236, %cst_251 {dimension_numbers = #tpu.dot_dimension_numbers<[1], [0], [0], [1], [0, 0, 1, 1], [], []>} : vector<1x64xf32>, vector<64x2xf32>, vector<1x2xf32> -> vector<1x2xf32>
    %c0_252 = arith.constant 0 : index
    %c0_253 = arith.constant 0 : index
    %238 = vector.load %arg17[%c0_252, %c0_253] : memref<1x2xf32, #tpu.memory_space<vmem>>, vector<1x2xf32>
    %239 = arith.addf %237, %238 : vector<1x2xf32>
    %c0_254 = arith.constant 0 : index
    %c0_255 = arith.constant 0 : index
    %c0_256 = arith.constant 0 : index
    %240 = vector.load %arg18[%c0_254, %c0_255, %c0_256] : memref<1x1x2xf32, #tpu.memory_space<vmem>>, vector<1x1x2xf32>
    %241 = vector.shape_cast %240 : vector<1x1x2xf32> to vector<1x2xf32>
    %242 = vector.shape_cast %239 : vector<1x2xf32> to vector<1x1x2xf32>
    tpu.vector_store %arg18[%c0_254, %c0_255, %c0_256], %242 {strides = array<i32>} : memref<1x1x2xf32, #tpu.memory_space<vmem>>, vector<1x1x2xf32>,
    return
  }
  func.func @transform_0(%arg0: i32) -> (i32, i32, i32) {
    %c0_i32 = arith.constant 0 : i32
    %c0_i32_0 = arith.constant 0 : i32
    %c0_i32_1 = arith.constant 0 : i32
    return %arg0, %c0_i32, %c0_i32_0 : i32, i32, i32
  }
  func.func @transform_1(%arg0: i32) -> (i32, i32) {
    %c0_i32 = arith.constant 0 : i32
    %c0_i32_0 = arith.constant 0 : i32
    %c0_i32_1 = arith.constant 0 : i32
    return %c0_i32, %c0_i32_0 : i32, i32
  }
  func.func @transform_2(%arg0: i32) -> (i32, i32) {
    %c0_i32 = arith.constant 0 : i32
    %c0_i32_0 = arith.constant 0 : i32
    %c0_i32_1 = arith.constant 0 : i32
    return %c0_i32, %c0_i32_0 : i32, i32
  }
  func.func @transform_3(%arg0: i32) -> (i32, i32) {
    %c0_i32 = arith.constant 0 : i32
    %c0_i32_0 = arith.constant 0 : i32
    %c0_i32_1 = arith.constant 0 : i32
    return %c0_i32, %c0_i32_0 : i32, i32
  }
  func.func @transform_4(%arg0: i32) -> (i32, i32) {
    %c0_i32 = arith.constant 0 : i32
    %c0_i32_0 = arith.constant 0 : i32
    %c0_i32_1 = arith.constant 0 : i32
    return %c0_i32, %c0_i32_0 : i32, i32
  }
  func.func @transform_5(%arg0: i32) -> (i32, i32, i32) {
    %c0_i32 = arith.constant 0 : i32
    %c0_i32_0 = arith.constant 0 : i32
    %c0_i32_1 = arith.constant 0 : i32
    %c0_i32_2 = arith.constant 0 : i32
    return %c0_i32, %c0_i32_0, %c0_i32_1 : i32, i32, i32
  }
  func.func @transform_6(%arg0: i32) -> (i32, i32) {
    %c0_i32 = arith.constant 0 : i32
    %c0_i32_0 = arith.constant 0 : i32
    %c0_i32_1 = arith.constant 0 : i32
    return %c0_i32, %c0_i32_0 : i32, i32
  }
  func.func @transform_7(%arg0: i32) -> (i32, i32, i32) {
    %c0_i32 = arith.constant 0 : i32
    %c0_i32_0 = arith.constant 0 : i32
    %c0_i32_1 = arith.constant 0 : i32
    %c0_i32_2 = arith.constant 0 : i32
    return %c0_i32, %c0_i32_0, %c0_i32_1 : i32, i32, i32
  }
  func.func @transform_8(%arg0: i32) -> (i32, i32) {
    %c0_i32 = arith.constant 0 : i32
    %c0_i32_0 = arith.constant 0 : i32
    %c0_i32_1 = arith.constant 0 : i32
    return %c0_i32, %c0_i32_0 : i32, i32
  }
  func.func @transform_9(%arg0: i32) -> (i32, i32) {
    %c0_i32 = arith.constant 0 : i32
    %c0_i32_0 = arith.constant 0 : i32
    %c0_i32_1 = arith.constant 0 : i32
    return %c0_i32, %c0_i32_0 : i32, i32
  }
  func.func @transform_10(%arg0: i32) -> (i32, i32) {
    %c0_i32 = arith.constant 0 : i32
    %c0_i32_0 = arith.constant 0 : i32
    %c0_i32_1 = arith.constant 0 : i32
    return %c0_i32, %c0_i32_0 : i32, i32
  }
  func.func @transform_11(%arg0: i32) -> (i32, i32, i32) {
    %c0_i32 = arith.constant 0 : i32
    %c0_i32_0 = arith.constant 0 : i32
    %c0_i32_1 = arith.constant 0 : i32
    %c0_i32_2 = arith.constant 0 : i32
    return %c0_i32, %c0_i32_0, %c0_i32_1 : i32, i32, i32
  }
  func.func @transform_12(%arg0: i32) -> (i32, i32) {
    %c0_i32 = arith.constant 0 : i32
    %c0_i32_0 = arith.constant 0 : i32
    %c0_i32_1 = arith.constant 0 : i32
    return %c0_i32, %c0_i32_0 : i32, i32
  }
  func.func @transform_13(%arg0: i32) -> (i32, i32) {
    %c0_i32 = arith.constant 0 : i32
    %c0_i32_0 = arith.constant 0 : i32
    %c0_i32_1 = arith.constant 0 : i32
    return %c0_i32, %c0_i32_0 : i32, i32
  }
  func.func @transform_14(%arg0: i32) -> (i32, i32) {
    %c0_i32 = arith.constant 0 : i32
    %c0_i32_0 = arith.constant 0 : i32
    %c0_i32_1 = arith.constant 0 : i32
    return %c0_i32, %c0_i32_0 : i32, i32
  }
  func.func @transform_15(%arg0: i32) -> (i32, i32) {
    %c0_i32 = arith.constant 0 : i32
    %c0_i32_0 = arith.constant 0 : i32
    %c0_i32_1 = arith.constant 0 : i32
    return %c0_i32, %c0_i32_0 : i32, i32
  }
  func.func @transform_16(%arg0: i32) -> (i32, i32) {
    %c0_i32 = arith.constant 0 : i32
    %c0_i32_0 = arith.constant 0 : i32
    %c0_i32_1 = arith.constant 0 : i32
    return %c0_i32, %c0_i32_0 : i32, i32
  }
  func.func @transform_17(%arg0: i32) -> (i32, i32, i32) {
    %c0_i32 = arith.constant 0 : i32
    %c0_i32_0 = arith.constant 0 : i32
    %c0_i32_1 = arith.constant 0 : i32
    return %arg0, %c0_i32, %c0_i32_0 : i32, i32, i32
  }
}

</mosaic_0001>

<llo_original>
// kernel: noise_classifier_forward.1
$region0: #{noise_classifier_forward.1}
  #allocation0 [shape = 'u32[]', space=smem, size = 0x4, offset = 0x4, fixed_abs, tag = 'smem constant byte address 0x4 - core index']
  #allocation1 [shape = 'u32[144,128]{1,0:T(1,128)}', space=vmem, size = 0x12000, scoped, tag = 'internal scratch']
  #allocation2 [shape = 'f32[80,64]{1,0:T(8,128)}', space=vmem, size = 0xa000, scoped, tag = 'scratch operand']
  #allocation3 [shape = 'f32[48,64]{1,0:T(8,128)}', space=vmem, size = 0x6000, scoped, tag = 'scratch operand']
  #allocation4 [shape = 'f32[48,128]{1,0:T(8,128)}', space=vmem, size = 0x6000, scoped, tag = 'scratch operand']
  #allocation5 [shape = 'f32[64,64]{1,0:T(8,128)}', space=vmem, size = 0x8000, scoped, tag = 'scratch operand']
  #allocation6 [shape = 'f32[32,128]{1,0:T(8,128)}', space=vmem, size = 0x4000, scoped, tag = 'scratch operand']
  %s0 = inlined_call_operand.vmem [shape: f32[2,64,16], index: 0, kind: input, shape index: {}]
  %s1 = inlined_call_operand.vmem [shape: f32[16,64], index: 1, kind: input, shape index: {}]
  %s2 = inlined_call_operand.vmem [shape: f32[1,64], index: 2, kind: input, shape index: {}]
  %s3 = inlined_call_operand.vmem [shape: f32[1,64], index: 3, kind: input, shape index: {}]
  %s4 = inlined_call_operand.vmem [shape: f32[1,64], index: 4, kind: input, shape index: {}]
  %s5 = inlined_call_operand.vmem [shape: f32[15,64,64], index: 5, kind: input, shape index: {}]
  %s6 = inlined_call_operand.vmem [shape: f32[1,64], index: 6, kind: input, shape index: {}]
  %s7 = inlined_call_operand.vmem [shape: f32[9,64,128], index: 7, kind: input, shape index: {}]
  %s8 = inlined_call_operand.vmem [shape: f32[1,128], index: 8, kind: input, shape index: {}]
  %s9 = inlined_call_operand.vmem [shape: f32[1,128], index: 9, kind: input, shape index: {}]
  %s10 = inlined_call_operand.vmem [shape: f32[1,128], index: 10, kind: input, shape index: {}]
  %s11 = inlined_call_operand.vmem [shape: f32[9,128,128], index: 11, kind: input, shape index: {}]
  %s12 = inlined_call_operand.vmem [shape: f32[1,128], index: 12, kind: input, shape index: {}]
  %s13 = inlined_call_operand.vmem [shape: f32[128,64], index: 13, kind: input, shape index: {}]
  %s14 = inlined_call_operand.vmem [shape: f32[1,64], index: 14, kind: input, shape index: {}]
  %s15 = inlined_call_operand.vmem [shape: f32[64,2], index: 15, kind: input, shape index: {}]
  %s16 = inlined_call_operand.vmem [shape: f32[1,2], index: 16, kind: input, shape index: {}]
  %s17 = inlined_call_operand.hbm [shape: f32[2,1,2], index: 17, kind: output, shape index: {}]
  %s18 = sld [smem:[#allocation0]]
  $region101: #{noise_classifier_forward.1} parent=0
    _
  %s20 = ssub.s32 1, %s18
  %s21 = scalar_select 0, %s20, %s18
  $region1: #{noise_classifier_forward.1} parent=0
    #allocation7 [shape = 'u8[1024]{0}', space=vmem, size = 0x400, scoped, tag = 'output window, operand 0']
    #allocation8 [shape = 's32[2]{0}', space=sflag, size = 0x8, scoped, tag = 'scoped memory for noise_classifier_forward.1']
    %22 = vsyncpa [#allocation8], 0
    %s23 = scalar_lea.sflag [#allocation8], 1
    %24 = vsyncpa %s23, 0
    loop: start=0, step=1, limit=4
    $region2: #{noise_classifier_forward.1} parent=1 // loop_pre_header
      _
    $region3: #{noise_classifier_forward.1} parent=1 // loop_header
      %s26 = sphi 0, %s30
      %p27 = scmp.ge.s32.totalorder %s26, 4
      %s36 = sphi 0, %s38
      %s39 = sphi 0, %s36
      %s40 = sphi 0, %s39
      %s56 = sphi 0, %s40
      %s60 = sphi 0, %s60
      %s62 = sphi 0, %s60
      %s63 = sphi 0, %s62
      %s77 = sphi 0, %s63
      %s81 = sphi 0, %s81
      %s83 = sphi 0, %s81
      %s84 = sphi 0, %s83
      %s98 = sphi 0, %s84
      %s102 = sphi 0, %s102
      %s104 = sphi 0, %s102
      %s105 = sphi 0, %s104
      %s119 = sphi 0, %s105
      %s123 = sphi 0, %s123
      %s125 = sphi 0, %s123
      %s126 = sphi 0, %s125
      %s140 = sphi 0, %s126
      %s144 = sphi 0, %s144
      %s146 = sphi 0, %s144
      %s147 = sphi 0, %s146
      %s161 = sphi 0, %s147
      %s165 = sphi 0, %s165
      %s167 = sphi 0, %s165
      %s168 = sphi 0, %s167
      %s182 = sphi 0, %s168
      %s186 = sphi 0, %s186
      %s188 = sphi 0, %s186
      %s189 = sphi 0, %s188
      %s203 = sphi 0, %s189
      %s207 = sphi 0, %s207
      %s209 = sphi 0, %s207
      %s210 = sphi 0, %s209
      %s224 = sphi 0, %s210
      %s228 = sphi 0, %s228
      %s230 = sphi 0, %s228
      %s231 = sphi 0, %s230
      %s245 = sphi 0, %s231
      %s249 = sphi 0, %s249
      %s251 = sphi 0, %s249
      %s252 = sphi 0, %s251
      %s266 = sphi 0, %s252
      %s270 = sphi 0, %s270
      %s272 = sphi 0, %s270
      %s273 = sphi 0, %s272
      %s287 = sphi 0, %s273
      %s291 = sphi 0, %s291
      %s293 = sphi 0, %s291
      %s294 = sphi 0, %s293
      %s308 = sphi 0, %s294
      %s312 = sphi 0, %s312
      %s314 = sphi 0, %s312
      %s315 = sphi 0, %s314
      %s329 = sphi 0, %s315
      %s333 = sphi 0, %s333
      %s335 = sphi 0, %s333
      %s336 = sphi 0, %s335
      %s350 = sphi 0, %s336
      %s354 = sphi 0, %s354
      %s356 = sphi 0, %s354
      %s357 = sphi 0, %s356
      %s371 = sphi 0, %s357
      %s375 = sphi 0, %s375
      %s377 = sphi 0, %s375
      %s378 = sphi 0, %s377
      %s392 = sphi 0, %s378
      %s398 = sphi 0, %s400
      %s401 = sphi 0, %s398
      %s402 = sphi 0, %s401
      %s418 = sphi 0, %s402
    $region4: #{noise_classifier_forward.1} parent=1 // loop_header_branch
      %29 = sbr.rel (%p27) target = $region8
    $region5: #{noise_classifier_forward.1} parent=1 // loop_body
      %s31 = ssub.s32 %s26, 1
      %s32 = ssub.s32 %s26, 2
      %s33 = sadd.s32 %s26, 1
      %s34 = ssub.s32 %s26, %s33
      %p35 = scmp.eq.s32.totalorder %s34, 0
      %s37 = sadd.s32 %s36, 1
      %s38 = scalar_select %p35, %s36, %s37
      %p41 = pneg %p35
      %p42 = scmp.eq.s32.totalorder %s26, 1
      %p43 = por %p41, %p42
      %p44 = scmp.ne.s32.totalorder %s36, %s39
      %p45 = scmp.eq.s32.totalorder %s26, 0
      %p46 = por %p44, %p45
      %p47 = scmp.ne.s32.totalorder %s36, %s39
      %p48 = scmp.eq.s32.totalorder %s31, 1
      %p49 = por %p47, %p48
      %p50 = scmp.ne.s32.totalorder %s39, %s40
      %p51 = scmp.eq.s32.totalorder %s31, 0
      %p52 = por %p50, %p51
      %p53 = scmp.ne.s32.totalorder %s39, %s40
      %p54 = scmp.eq.s32.totalorder %s32, 1
      %p55 = por %p53, %p54
      %p57 = scmp.ne.s32.totalorder %s40, %s56
      %p58 = scmp.eq.s32.totalorder %s32, 0
      %p59 = por %p57, %p58
      %s61 = sadd.s32 %s60, 1
      %p64 = scmp.eq.s32.totalorder %s26, 1
      %p65 = scmp.ne.s32.totalorder %s60, %s62
      %p66 = scmp.eq.s32.totalorder %s26, 0
      %p67 = por %p65, %p66
      %p68 = scmp.ne.s32.totalorder %s60, %s62
      %p69 = scmp.eq.s32.totalorder %s31, 1
      %p70 = por %p68, %p69
      %p71 = scmp.ne.s32.totalorder %s62, %s63
      %p72 = scmp.eq.s32.totalorder %s31, 0
      %p73 = por %p71, %p72
      %p74 = scmp.ne.s32.totalorder %s62, %s63
      %p75 = scmp.eq.s32.totalorder %s32, 1
      %p76 = por %p74, %p75
      %p78 = scmp.ne.s32.totalorder %s63, %s77
      %p79 = scmp.eq.s32.totalorder %s32, 0
      %p80 = por %p78, %p79
      %s82 = sadd.s32 %s81, 1
      %p85 = scmp.eq.s32.totalorder %s26, 1
      %p86 = scmp.ne.s32.totalorder %s81, %s83
      %p87 = scmp.eq.s32.totalorder %s26, 0
      %p88 = por %p86, %p87
      %p89 = scmp.ne.s32.totalorder %s81, %s83
      %p90 = scmp.eq.s32.totalorder %s31, 1
      %p91 = por %p89, %p90
      %p92 = scmp.ne.s32.totalorder %s83, %s84
      %p93 = scmp.eq.s32.totalorder %s31, 0
      %p94 = por %p92, %p93
      %p95 = scmp.ne.s32.totalorder %s83, %s84
      %p96 = scmp.eq.s32.totalorder %s32, 1
      %p97 = por %p95, %p96
      %p99 = scmp.ne.s32.totalorder %s84, %s98
      %p100 = scmp.eq.s32.totalorder %s32, 0
      %p101 = por %p99, %p100
      %s103 = sadd.s32 %s102, 1
      %p106 = scmp.eq.s32.totalorder %s26, 1
      %p107 = scmp.ne.s32.totalorder %s102, %s104
      %p108 = scmp.eq.s32.totalorder %s26, 0
      %p109 = por %p107, %p108
      %p110 = scmp.ne.s32.totalorder %s102, %s104
      %p111 = scmp.eq.s32.totalorder %s31, 1
      %p112 = por %p110, %p111
      %p113 = scmp.ne.s32.totalorder %s104, %s105
      %p114 = scmp.eq.s32.totalorder %s31, 0
      %p115 = por %p113, %p114
      %p116 = scmp.ne.s32.totalorder %s104, %s105
      %p117 = scmp.eq.s32.totalorder %s32, 1
      %p118 = por %p116, %p117
      %p120 = scmp.ne.s32.totalorder %s105, %s119
      %p121 = scmp.eq.s32.totalorder %s32, 0
      %p122 = por %p120, %p121
      %s124 = sadd.s32 %s123, 1
      %p127 = scmp.eq.s32.totalorder %s26, 1
      %p128 = scmp.ne.s32.totalorder %s123, %s125
      %p129 = scmp.eq.s32.totalorder %s26, 0
      %p130 = por %p128, %p129
      %p131 = scmp.ne.s32.totalorder %s123, %s125
      %p132 = scmp.eq.s32.totalorder %s31, 1
      %p133 = por %p131, %p132
      %p134 = scmp.ne.s32.totalorder %s125, %s126
      %p135 = scmp.eq.s32.totalorder %s31, 0
      %p136 = por %p134, %p135
      %p137 = scmp.ne.s32.totalorder %s125, %s126
      %p138 = scmp.eq.s32.totalorder %s32, 1
      %p139 = por %p137, %p138
      %p141 = scmp.ne.s32.totalorder %s126, %s140
      %p142 = scmp.eq.s32.totalorder %s32, 0
      %p143 = por %p141, %p142
      %s145 = sadd.s32 %s144, 1
      %p148 = scmp.eq.s32.totalorder %s26, 1
      %p149 = scmp.ne.s32.totalorder %s144, %s146
      %p150 = scmp.eq.s32.totalorder %s26, 0
      %p151 = por %p149, %p150
      %p152 = scmp.ne.s32.totalorder %s144, %s146
      %p153 = scmp.eq.s32.totalorder %s31, 1
      %p154 = por %p152, %p153
      %p155 = scmp.ne.s32.totalorder %s146, %s147
      %p156 = scmp.eq.s32.totalorder %s31, 0
      %p157 = por %p155, %p156
      %p158 = scmp.ne.s32.totalorder %s146, %s147
      %p159 = scmp.eq.s32.totalorder %s32, 1
      %p160 = por %p158, %p159
      %p162 = scmp.ne.s32.totalorder %s147, %s161
      %p163 = scmp.eq.s32.totalorder %s32, 0
      %p164 = por %p162, %p163
      %s166 = sadd.s32 %s165, 1
      %p169 = scmp.eq.s32.totalorder %s26, 1
      %p170 = scmp.ne.s32.totalorder %s165, %s167
      %p171 = scmp.eq.s32.totalorder %s26, 0
      %p172 = por %p170, %p171
      %p173 = scmp.ne.s32.totalorder %s165, %s167
      %p174 = scmp.eq.s32.totalorder %s31, 1
      %p175 = por %p173, %p174
      %p176 = scmp.ne.s32.totalorder %s167, %s168
      %p177 = scmp.eq.s32.totalorder %s31, 0
      %p178 = por %p176, %p177
      %p179 = scmp.ne.s32.totalorder %s167, %s168
      %p180 = scmp.eq.s32.totalorder %s32, 1
      %p181 = por %p179, %p180
      %p183 = scmp.ne.s32.totalorder %s168, %s182
      %p184 = scmp.eq.s32.totalorder %s32, 0
      %p185 = por %p183, %p184
      %s187 = sadd.s32 %s186, 1
      %p190 = scmp.eq.s32.totalorder %s26, 1
      %p191 = scmp.ne.s32.totalorder %s186, %s188
      %p192 = scmp.eq.s32.totalorder %s26, 0
      %p193 = por %p191, %p192
      %p194 = scmp.ne.s32.totalorder %s186, %s188
      %p195 = scmp.eq.s32.totalorder %s31, 1
      %p196 = por %p194, %p195
      %p197 = scmp.ne.s32.totalorder %s188, %s189
      %p198 = scmp.eq.s32.totalorder %s31, 0
      %p199 = por %p197, %p198
      %p200 = scmp.ne.s32.totalorder %s188, %s189
      %p201 = scmp.eq.s32.totalorder %s32, 1
      %p202 = por %p200, %p201
      %p204 = scmp.ne.s32.totalorder %s189, %s203
      %p205 = scmp.eq.s32.totalorder %s32, 0
      %p206 = por %p204, %p205
      %s208 = sadd.s32 %s207, 1
      %p211 = scmp.eq.s32.totalorder %s26, 1
      %p212 = scmp.ne.s32.totalorder %s207, %s209
      %p213 = scmp.eq.s32.totalorder %s26, 0
      %p214 = por %p212, %p213
      %p215 = scmp.ne.s32.totalorder %s207, %s209
      %p216 = scmp.eq.s32.totalorder %s31, 1
      %p217 = por %p215, %p216
      %p218 = scmp.ne.s32.totalorder %s209, %s210
      %p219 = scmp.eq.s32.totalorder %s31, 0
      %p220 = por %p218, %p219
      %p221 = scmp.ne.s32.totalorder %s209, %s210
      %p222 = scmp.eq.s32.totalorder %s32, 1
      %p223 = por %p221, %p222
      %p225 = scmp.ne.s32.totalorder %s210, %s224
      %p226 = scmp.eq.s32.totalorder %s32, 0
      %p227 = por %p225, %p226
      %s229 = sadd.s32 %s228, 1
      %p232 = scmp.eq.s32.totalorder %s26, 1
      %p233 = scmp.ne.s32.totalorder %s228, %s230
      %p234 = scmp.eq.s32.totalorder %s26, 0
      %p235 = por %p233, %p234
      %p236 = scmp.ne.s32.totalorder %s228, %s230
      %p237 = scmp.eq.s32.totalorder %s31, 1
      %p238 = por %p236, %p237
      %p239 = scmp.ne.s32.totalorder %s230, %s231
      %p240 = scmp.eq.s32.totalorder %s31, 0
      %p241 = por %p239, %p240
      %p242 = scmp.ne.s32.totalorder %s230, %s231
      %p243 = scmp.eq.s32.totalorder %s32, 1
      %p244 = por %p242, %p243
      %p246 = scmp.ne.s32.totalorder %s231, %s245
      %p247 = scmp.eq.s32.totalorder %s32, 0
      %p248 = por %p246, %p247
      %s250 = sadd.s32 %s249, 1
      %p253 = scmp.eq.s32.totalorder %s26, 1
      %p254 = scmp.ne.s32.totalorder %s249, %s251
      %p255 = scmp.eq.s32.totalorder %s26, 0
      %p256 = por %p254, %p255
      %p257 = scmp.ne.s32.totalorder %s249, %s251
      %p258 = scmp.eq.s32.totalorder %s31, 1
      %p259 = por %p257, %p258
      %p260 = scmp.ne.s32.totalorder %s251, %s252
      %p261 = scmp.eq.s32.totalorder %s31, 0
      %p262 = por %p260, %p261
      %p263 = scmp.ne.s32.totalorder %s251, %s252
      %p264 = scmp.eq.s32.totalorder %s32, 1
      %p265 = por %p263, %p264
      %p267 = scmp.ne.s32.totalorder %s252, %s266
      %p268 = scmp.eq.s32.totalorder %s32, 0
      %p269 = por %p267, %p268
      %s271 = sadd.s32 %s270, 1
      %p274 = scmp.eq.s32.totalorder %s26, 1
      %p275 = scmp.ne.s32.totalorder %s270, %s272
      %p276 = scmp.eq.s32.totalorder %s26, 0
      %p277 = por %p275, %p276
      %p278 = scmp.ne.s32.totalorder %s270, %s272
      %p279 = scmp.eq.s32.totalorder %s31, 1
      %p280 = por %p278, %p279
      %p281 = scmp.ne.s32.totalorder %s272, %s273
      %p282 = scmp.eq.s32.totalorder %s31, 0
      %p283 = por %p281, %p282
      %p284 = scmp.ne.s32.totalorder %s272, %s273
      %p285 = scmp.eq.s32.totalorder %s32, 1
      %p286 = por %p284, %p285
      %p288 = scmp.ne.s32.totalorder %s273, %s287
      %p289 = scmp.eq.s32.totalorder %s32, 0
      %p290 = por %p288, %p289
      %s292 = sadd.s32 %s291, 1
      %p295 = scmp.eq.s32.totalorder %s26, 1
      %p296 = scmp.ne.s32.totalorder %s291, %s293
      %p297 = scmp.eq.s32.totalorder %s26, 0
      %p298 = por %p296, %p297
      %p299 = scmp.ne.s32.totalorder %s291, %s293
      %p300 = scmp.eq.s32.totalorder %s31, 1
      %p301 = por %p299, %p300
      %p302 = scmp.ne.s32.totalorder %s293, %s294
      %p303 = scmp.eq.s32.totalorder %s31, 0
      %p304 = por %p302, %p303
      %p305 = scmp.ne.s32.totalorder %s293, %s294
      %p306 = scmp.eq.s32.totalorder %s32, 1
      %p307 = por %p305, %p306
      %p309 = scmp.ne.s32.totalorder %s294, %s308
      %p310 = scmp.eq.s32.totalorder %s32, 0
      %p311 = por %p309, %p310
      %s313 = sadd.s32 %s312, 1
      %p316 = scmp.eq.s32.totalorder %s26, 1
      %p317 = scmp.ne.s32.totalorder %s312, %s314
      %p318 = scmp.eq.s32.totalorder %s26, 0
      %p319 = por %p317, %p318
      %p320 = scmp.ne.s32.totalorder %s312, %s314
      %p321 = scmp.eq.s32.totalorder %s31, 1
      %p322 = por %p320, %p321
      %p323 = scmp.ne.s32.totalorder %s314, %s315
      %p324 = scmp.eq.s32.totalorder %s31, 0
      %p325 = por %p323, %p324
      %p326 = scmp.ne.s32.totalorder %s314, %s315
      %p327 = scmp.eq.s32.totalorder %s32, 1
      %p328 = por %p326, %p327
      %p330 = scmp.ne.s32.totalorder %s315, %s329
      %p331 = scmp.eq.s32.totalorder %s32, 0
      %p332 = por %p330, %p331
      %s334 = sadd.s32 %s333, 1
      %p337 = scmp.eq.s32.totalorder %s26, 1
      %p338 = scmp.ne.s32.totalorder %s333, %s335
      %p339 = scmp.eq.s32.totalorder %s26, 0
      %p340 = por %p338, %p339
      %p341 = scmp.ne.s32.totalorder %s333, %s335
      %p342 = scmp.eq.s32.totalorder %s31, 1
      %p343 = por %p341, %p342
      %p344 = scmp.ne.s32.totalorder %s335, %s336
      %p345 = scmp.eq.s32.totalorder %s31, 0
      %p346 = por %p344, %p345
      %p347 = scmp.ne.s32.totalorder %s335, %s336
      %p348 = scmp.eq.s32.totalorder %s32, 1
      %p349 = por %p347, %p348
      %p351 = scmp.ne.s32.totalorder %s336, %s350
      %p352 = scmp.eq.s32.totalorder %s32, 0
      %p353 = por %p351, %p352
      %s355 = sadd.s32 %s354, 1
      %p358 = scmp.eq.s32.totalorder %s26, 1
      %p359 = scmp.ne.s32.totalorder %s354, %s356
      %p360 = scmp.eq.s32.totalorder %s26, 0
      %p361 = por %p359, %p360
      %p362 = scmp.ne.s32.totalorder %s354, %s356
      %p363 = scmp.eq.s32.totalorder %s31, 1
      %p364 = por %p362, %p363
      %p365 = scmp.ne.s32.totalorder %s356, %s357
      %p366 = scmp.eq.s32.totalorder %s31, 0
      %p367 = por %p365, %p366
      %p368 = scmp.ne.s32.totalorder %s356, %s357
      %p369 = scmp.eq.s32.totalorder %s32, 1
      %p370 = por %p368, %p369
      %p372 = scmp.ne.s32.totalorder %s357, %s371
      %p373 = scmp.eq.s32.totalorder %s32, 0
      %p374 = por %p372, %p373
      %s376 = sadd.s32 %s375, 1
      %p379 = scmp.eq.s32.totalorder %s26, 1
      %p380 = scmp.ne.s32.totalorder %s375, %s377
      %p381 = scmp.eq.s32.totalorder %s26, 0
      %p382 = por %p380, %p381
      %p383 = scmp.ne.s32.totalorder %s375, %s377
      %p384 = scmp.eq.s32.totalorder %s31, 1
      %p385 = por %p383, %p384
      %p386 = scmp.ne.s32.totalorder %s377, %s378
      %p387 = scmp.eq.s32.totalorder %s31, 0
      %p388 = por %p386, %p387
      %p389 = scmp.ne.s32.totalorder %s377, %s378
      %p390 = scmp.eq.s32.totalorder %s32, 1
      %p391 = por %p389, %p390
      %p393 = scmp.ne.s32.totalorder %s378, %s392
      %p394 = scmp.eq.s32.totalorder %s32, 0
      %p395 = por %p393, %p394
      %s396 = ssub.s32 %s26, %s33
      %p397 = scmp.eq.s32.totalorder %s396, 0
      %s399 = sadd.s32 %s398, 1
      %s400 = scalar_select %p397, %s398, %s399
      %p403 = pneg %p397
      %p404 = scmp.eq.s32.totalorder %s26, 1
      %p405 = por %p403, %p404
      %p406 = scmp.ne.s32.totalorder %s398, %s401
      %p407 = scmp.eq.s32.totalorder %s26, 0
      %p408 = por %p406, %p407
      %p409 = scmp.ne.s32.totalorder %s398, %s401
      %p410 = scmp.eq.s32.totalorder %s31, 1
      %p411 = por %p409, %p410
      %p412 = scmp.ne.s32.totalorder %s401, %s402
      %p413 = scmp.eq.s32.totalorder %s31, 0
      %p414 = por %p412, %p413
      %p415 = scmp.ne.s32.totalorder %s401, %s402
      %p416 = scmp.eq.s32.totalorder %s32, 1
      %p417 = por %p415, %p416
      %p419 = scmp.ne.s32.totalorder %s402, %s418
      %p420 = scmp.eq.s32.totalorder %s32, 0
      %p421 = por %p419, %p420
      %p422 = scmp.le.s32.totalorder 1, %s26
      %p423 = scmp.lt.s32.totalorder %s26, 3
      %p424 = pnand %p422, %p423
      %p425 = pneg %p424
      // Predicated region
      $region9: #{noise_classifier_forward.1} parent=5 // pred_check
        _
      $region10: #{noise_classifier_forward.1} parent=5 // pred_check_branch
        %427 = sbr.rel (%p424) target = $region12
      $region11: #{noise_classifier_forward.1} parent=5 // pred_region
        %s428 = ssub.s32 %s26, 1
        // Predicated region
        $region13: #{noise_classifier_forward.1} parent=11 // pred_check
          %p429 = pneg %p73
        $region14: #{noise_classifier_forward.1} parent=11 // pred_check_branch
          %431 = sbr.rel (%p429) target = $region16
        $region15: #{noise_classifier_forward.1} parent=11 // pred_region
          _
        $region16: #{noise_classifier_forward.1} parent=11 // pred_fallthru
          _
        // Predicated region
        $region17: #{noise_classifier_forward.1} parent=11 // pred_check
          %p432 = pneg %p94
        $region18: #{noise_classifier_forward.1} parent=11 // pred_check_branch
          %434 = sbr.rel (%p432) target = $region20
        $region19: #{noise_classifier_forward.1} parent=11 // pred_region
          _
        $region20: #{noise_classifier_forward.1} parent=11 // pred_fallthru
          _
        // Predicated region
        $region21: #{noise_classifier_forward.1} parent=11 // pred_check
          %p435 = pneg %p115
        $region22: #{noise_classifier_forward.1} parent=11 // pred_check_branch
          %437 = sbr.rel (%p435) target = $region24
        $region23: #{noise_classifier_forward.1} parent=11 // pred_region
          _
        $region24: #{noise_classifier_forward.1} parent=11 // pred_fallthru
          _
        // Predicated region
        $region25: #{noise_classifier_forward.1} parent=11 // pred_check
          %p438 = pneg %p136
        $region26: #{noise_classifier_forward.1} parent=11 // pred_check_branch
          %440 = sbr.rel (%p438) target = $region28
        $region27: #{noise_classifier_forward.1} parent=11 // pred_region
          _
        $region28: #{noise_classifier_forward.1} parent=11 // pred_fallthru
          _
        // Predicated region
        $region29: #{noise_classifier_forward.1} parent=11 // pred_check
          %p441 = pneg %p157
        $region30: #{noise_classifier_forward.1} parent=11 // pred_check_branch
          %443 = sbr.rel (%p441) target = $region32
        $region31: #{noise_classifier_forward.1} parent=11 // pred_region
          _
        $region32: #{noise_classifier_forward.1} parent=11 // pred_fallthru
          _
        // Predicated region
        $region33: #{noise_classifier_forward.1} parent=11 // pred_check
          %p444 = pneg %p178
        $region34: #{noise_classifier_forward.1} parent=11 // pred_check_branch
          %446 = sbr.rel (%p444) target = $region36
        $region35: #{noise_classifier_forward.1} parent=11 // pred_region
          _
        $region36: #{noise_classifier_forward.1} parent=11 // pred_fallthru
          _
        // Predicated region
        $region37: #{noise_classifier_forward.1} parent=11 // pred_check
          %p447 = pneg %p199
        $region38: #{noise_classifier_forward.1} parent=11 // pred_check_branch
          %449 = sbr.rel (%p447) target = $region40
        $region39: #{noise_classifier_forward.1} parent=11 // pred_region
          _
        $region40: #{noise_classifier_forward.1} parent=11 // pred_fallthru
          _
        // Predicated region
        $region41: #{noise_classifier_forward.1} parent=11 // pred_check
          %p450 = pneg %p220
        $region42: #{noise_classifier_forward.1} parent=11 // pred_check_branch
          %452 = sbr.rel (%p450) target = $region44
        $region43: #{noise_classifier_forward.1} parent=11 // pred_region
          _
        $region44: #{noise_classifier_forward.1} parent=11 // pred_fallthru
          _
        // Predicated region
        $region45: #{noise_classifier_forward.1} parent=11 // pred_check
          %p453 = pneg %p241
        $region46: #{noise_classifier_forward.1} parent=11 // pred_check_branch
          %455 = sbr.rel (%p453) target = $region48
        $region47: #{noise_classifier_forward.1} parent=11 // pred_region
          _
        $region48: #{noise_classifier_forward.1} parent=11 // pred_fallthru
          _
        // Predicated region
        $region49: #{noise_classifier_forward.1} parent=11 // pred_check
          %p456 = pneg %p262
        $region50: #{noise_classifier_forward.1} parent=11 // pred_check_branch
          %458 = sbr.rel (%p456) target = $region52
        $region51: #{noise_classifier_forward.1} parent=11 // pred_region
          _
        $region52: #{noise_classifier_forward.1} parent=11 // pred_fallthru
          _
        // Predicated region
        $region53: #{noise_classifier_forward.1} parent=11 // pred_check
          %p459 = pneg %p283
        $region54: #{noise_classifier_forward.1} parent=11 // pred_check_branch
          %461 = sbr.rel (%p459) target = $region56
        $region55: #{noise_classifier_forward.1} parent=11 // pred_region
          _
        $region56: #{noise_classifier_forward.1} parent=11 // pred_fallthru
          _
        // Predicated region
        $region57: #{noise_classifier_forward.1} parent=11 // pred_check
          %p462 = pneg %p304
        $region58: #{noise_classifier_forward.1} parent=11 // pred_check_branch
          %464 = sbr.rel (%p462) target = $region60
        $region59: #{noise_classifier_forward.1} parent=11 // pred_region
          _
        $region60: #{noise_classifier_forward.1} parent=11 // pred_fallthru
          _
        // Predicated region
        $region61: #{noise_classifier_forward.1} parent=11 // pred_check
          %p465 = pneg %p325
        $region62: #{noise_classifier_forward.1} parent=11 // pred_check_branch
          %467 = sbr.rel (%p465) target = $region64
        $region63: #{noise_classifier_forward.1} parent=11 // pred_region
          _
        $region64: #{noise_classifier_forward.1} parent=11 // pred_fallthru
          _
        // Predicated region
        $region65: #{noise_classifier_forward.1} parent=11 // pred_check
          %p468 = pneg %p346
        $region66: #{noise_classifier_forward.1} parent=11 // pred_check_branch
          %470 = sbr.rel (%p468) target = $region68
        $region67: #{noise_classifier_forward.1} parent=11 // pred_region
          _
        $region68: #{noise_classifier_forward.1} parent=11 // pred_fallthru
          _
        // Predicated region
        $region69: #{noise_classifier_forward.1} parent=11 // pred_check
          %p471 = pneg %p367
        $region70: #{noise_classifier_forward.1} parent=11 // pred_check_branch
          %473 = sbr.rel (%p471) target = $region72
        $region71: #{noise_classifier_forward.1} parent=11 // pred_region
          _
        $region72: #{noise_classifier_forward.1} parent=11 // pred_fallthru
          _
        // Predicated region
        $region73: #{noise_classifier_forward.1} parent=11 // pred_check
          %p474 = pneg %p388
        $region74: #{noise_classifier_forward.1} parent=11 // pred_check_branch
          %476 = sbr.rel (%p474) target = $region76
        $region75: #{noise_classifier_forward.1} parent=11 // pred_region
          _
        $region76: #{noise_classifier_forward.1} parent=11 // pred_fallthru
          _
      $region12: #{noise_classifier_forward.1} parent=5 // pred_fallthru
        _
      %p477 = scmp.lt.s32.totalorder %s26, 2
      // Predicated region
      $region77: #{noise_classifier_forward.1} parent=5 // pred_check
        %p478 = pneg %p477
      $region78: #{noise_classifier_forward.1} parent=5 // pred_check_branch
        %480 = sbr.rel (%p478) target = $region80
      $region79: #{noise_classifier_forward.1} parent=5 // pred_region
        // Predicated region
        $region81: #{noise_classifier_forward.1} parent=79 // pred_check
          %p481 = pneg %p46
        $region82: #{noise_classifier_forward.1} parent=79 // pred_check_branch
          %483 = sbr.rel (%p481) target = $region84
        $region83: #{noise_classifier_forward.1} parent=79 // pred_region
          %p484 = scmp.lt.s32.totalorder %s26, 1
          %s485 = scalar_select %p484, %s26, 1
          %s486 = smul.addr %s485, 8
          %s487 = smul.addr %s486, 8
          %s488 = scalar_lea.vmem %s0, %s487
        $region84: #{noise_classifier_forward.1} parent=79 // pred_fallthru
          _
      $region80: #{noise_classifier_forward.1} parent=5 // pred_fallthru
        _
      %p489 = scmp.le.s32.totalorder 1, %s26
      %p490 = scmp.lt.s32.totalorder %s26, 3
      %p491 = pnand %p489, %p490
      %p492 = pneg %p491
      // Predicated region
      $region85: #{noise_classifier_forward.1} parent=5 // pred_check
        _
      $region86: #{noise_classifier_forward.1} parent=5 // pred_check_branch
        %494 = sbr.rel (%p491) target = $region88
      $region87: #{noise_classifier_forward.1} parent=5 // pred_region
        %s495 = ssub.s32 %s26, 1
        %p496 = scmp.lt.s32.totalorder %s31, 1
        %s497 = scalar_select %p496, %s31, 1
        %s498 = smul.addr %s497, 8
        %s499 = smul.addr %s498, 8
        %s500 = scalar_lea.vmem %s0, %s499
        %p501 = pneg %p52
        %p502 = pneg %p49
        %p503 = pneg %p73
        %p504 = pneg %p70
        %p505 = pneg %p94
        %p506 = pneg %p91
        %p507 = pneg %p115
        %p508 = pneg %p112
        %p509 = pneg %p136
        %p510 = pneg %p133
        %p511 = pneg %p157
        %p512 = pneg %p154
        %p513 = pneg %p178
        %p514 = pneg %p175
        %p515 = pneg %p199
        %p516 = pneg %p196
        %p517 = pneg %p220
        %p518 = pneg %p217
        %p519 = pneg %p241
        %p520 = pneg %p238
        %p521 = pneg %p262
        %p522 = pneg %p259
        %p523 = pneg %p283
        %p524 = pneg %p280
        %p525 = pneg %p304
        %p526 = pneg %p301
        %p527 = pneg %p325
        %p528 = pneg %p322
        %p529 = pneg %p346
        %p530 = pneg %p343
        %p531 = pneg %p367
        %p532 = pneg %p364
        %p533 = pneg %p388
        %p534 = pneg %p385
        %p535 = pneg %p414
        %p536 = pneg %p411
        %s537 = sand.u32 %s401, 1
        %s538 = scalar_lea.sflag [#allocation8], %s537
        %s539 = sand.u32 %s401, 1
        %s540 = scalar_lea.vmem [#allocation7], %s539
        %p541 = scmp.lt.s32.totalorder %s31, 1
        %s542 = scalar_select %p541, %s31, 1
        %s543 = smul.addr %s542, 8
        %s544 = smul.addr %s543, 8
        %s545 = scalar_lea.vmem %s0, %s544
        %v546 = vld [vmem:[%s545] sm:$0xff]
        %v547 = vld [vmem:[%s545 + $0x8] sm:$0xff]
        %v548 = vld [vmem:[%s545 + $0x10] sm:$0xff]
        %v549 = vld [vmem:[%s545 + $0x18] sm:$0xff]
        %v550 = vld [vmem:[%s545 + $0x20] sm:$0xff]
        %v551 = vld [vmem:[%s545 + $0x28] sm:$0xff]
        %v552 = vld [vmem:[%s545 + $0x30] sm:$0xff]
        %v553 = vld [vmem:[%s545 + $0x38] sm:$0xff]
        %v554 = vld [vmem:[%s1] sm:$0xff]
        %v555 = vld [vmem:[%s1 + $0x8] sm:$0xff]
        %v556 = vld [vmem:[%s2] sm:$0x1]
        %v558 = vlaneseq
        %v559 = vshrl.u32 %v558, 7
        %v560 = vsub.s32 0, %v559
        %v561 = vrot.slane %v556, %v560
        %vm563 = vcmask 130048
        %v565 = vsel %vm563, %v546, 0
        %v568 = vsel %vm563, %v547, 0
        %v571 = vsel %vm563, %v548, 0
        %v574 = vsel %vm563, %v549, 0
        %v577 = vsel %vm563, %v550, 0
        %v580 = vsel %vm563, %v551, 0
        %v583 = vsel %vm563, %v552, 0
        %v586 = vsel %vm563, %v553, 0
        %588 = vmatprep.subr.mxu0 0.0
        %589 = vmatpush1.msra.mxu0 %v554
        %590 = vmatprep.subr.mxu0 0.0
        %591 = vmatpush1.msra.mxu0 %v555
        %592 = vmatprep.subr.mxu0 0.0
        %593 = vmatpush1.msra.mxu0 0.0
        %594 = vmatprep.subr.mxu0 0.0
        %595 = vmatpush1.msra.mxu0 0.0
        %596 = vmatprep.subr.mxu0 0.0
        %597 = vmatpush1.msra.mxu0 0.0
        %598 = vmatprep.subr.mxu0 0.0
        %599 = vmatpush1.msra.mxu0 0.0
        %600 = vmatprep.subr.mxu0 0.0
        %601 = vmatpush1.msra.mxu0 0.0
        %602 = vmatprep.subr.mxu0 0.0
        %603 = vmatpush1.msra.mxu0 0.0
        %604 = vmatprep.subr.mxu0 0.0
        %605 = vmatpush1.msra.mxu0 0.0
        %606 = vmatprep.subr.mxu0 0.0
        %607 = vmatpush1.msra.mxu0 0.0
        %608 = vmatprep.subr.mxu0 0.0
        %609 = vmatpush1.msra.mxu0 0.0
        %610 = vmatprep.subr.mxu0 0.0
        %611 = vmatpush1.msra.mxu0 0.0
        %612 = vmatprep.subr.mxu0 0.0
        %613 = vmatpush1.msra.mxu0 0.0
        %614 = vmatprep.subr.mxu0 0.0
        %615 = vmatpush1.msra.mxu0 0.0
        %616 = vmatprep.subr.mxu0 0.0
        %617 = vmatpush1.msra.mxu0 0.0
        %618 = vmatprep.subr.mxu0 0.0
        %619 = vmatpush1.msra.mxu0 0.0
        %620 = vmatprep.subr.mxu0 0.0
        %621 = vmatpush1.msra.mxu0 0.0
        %622 = vmatprep.subr.mxu0 0.0
        %623 = vmatpush1.msra.mxu0 0.0
        %624 = vmatprep.subr.mxu0 0.0
        %625 = vmatpush1.msra.mxu0 0.0
        %626 = vmatprep.subr.mxu0 0.0
        %627 = vmatpush1.msra.mxu0 0.0
        %628 = vmatprep.subr.mxu0 0.0
        %629 = vmatpush1.msra.mxu0 0.0
        %630 = vmatprep.subr.mxu0 0.0
        %631 = vmatpush1.msra.mxu0 0.0
        %632 = vmatprep.subr.mxu0 0.0
        %633 = vmatpush1.msra.mxu0 0.0
        %634 = vmatprep.subr.mxu0 0.0
        %635 = vmatpush1.msra.mxu0 0.0
        %636 = vmatprep.subr.mxu0 0.0
        %637 = vmatpush1.msra.mxu0 0.0
        %638 = vmatprep.subr.mxu0 0.0
        %639 = vmatpush1.msra.mxu0 0.0
        %640 = vmatprep.subr.mxu0 0.0
        %641 = vmatpush1.msra.mxu0 0.0
        %642 = vmatprep.subr.mxu0 0.0
        %643 = vmatpush1.msra.mxu0 0.0
        %644 = vmatprep.subr.mxu0 0.0
        %645 = vmatpush1.msra.mxu0 0.0
        %646 = vmatprep.subr.mxu0 0.0
        %647 = vmatpush1.msra.mxu0 0.0
        %648 = vmatprep.subr.mxu0 0.0
        %649 = vmatpush1.msra.mxu0 0.0
        %650 = vmatprep.subr.mxu0 0.0
        %651 = vmatpush1.msra.mxu0 0.0
        %652 = vmatprep.mubr.f32.mxu0 0.0
        %653 = vmatmul.mubr.f32.gmra.mrb[0].mxu0 %v565
        %v654 = vpop.f32.mrb[0].mxu0
        %v655 = vadd.f32 %v561, %v654
        %v656 = vpop.f32.mrb[0].mxu0
        %657 = vmatprep.mubr.f32.mxu0 0.0
        %658 = vmatmul.mubr.f32.gmra.mrb[0].mxu0 %v568
        %v659 = vpop.f32.mrb[0].mxu0
        %v660 = vadd.f32 %v561, %v659
        %v661 = vpop.f32.mrb[0].mxu0
        %662 = vmatprep.mubr.f32.mxu0 0.0
        %663 = vmatmul.mubr.f32.gmra.mrb[0].mxu0 %v571
        %v664 = vpop.f32.mrb[0].mxu0
        %v665 = vadd.f32 %v561, %v664
        %v666 = vpop.f32.mrb[0].mxu0
        %667 = vmatprep.mubr.f32.mxu0 0.0
        %668 = vmatmul.mubr.f32.gmra.mrb[0].mxu0 %v574
        %v669 = vpop.f32.mrb[0].mxu0
        %v670 = vadd.f32 %v561, %v669
        %v671 = vpop.f32.mrb[0].mxu0
        %672 = vmatprep.mubr.f32.mxu0 0.0
        %673 = vmatmul.mubr.f32.gmra.mrb[0].mxu0 %v577
        %v674 = vpop.f32.mrb[0].mxu0
        %v675 = vadd.f32 %v561, %v674
        %v676 = vpop.f32.mrb[0].mxu0
        %677 = vmatprep.mubr.f32.mxu0 0.0
        %678 = vmatmul.mubr.f32.gmra.mrb[0].mxu0 %v580
        %v679 = vpop.f32.mrb[0].mxu0
        %v680 = vadd.f32 %v561, %v679
        %v681 = vpop.f32.mrb[0].mxu0
        %682 = vmatprep.mubr.f32.mxu0 0.0
        %683 = vmatmul.mubr.f32.gmra.mrb[0].mxu0 %v583
        %v684 = vpop.f32.mrb[0].mxu0
        %v685 = vadd.f32 %v561, %v684
        %v686 = vpop.f32.mrb[0].mxu0
        %687 = vmatprep.mubr.f32.mxu0 0.0
        %688 = vmatmul.mubr.f32.gmra.mrb[0].mxu0 %v586
        %v689 = vpop.f32.mrb[0].mxu0
        %v690 = vadd.f32 %v561, %v689
        %v691 = vpop.f32.mrb[0].mxu0
        %692 = vdwg.mxu0
        %v693 = vld [vmem:[%s3] sm:$0x1]
        %v695 = vlaneseq
        %v696 = vshrl.u32 %v695, 7
        %v697 = vsub.s32 0, %v696
        %v698 = vrot.slane %v693, %v697
        %v700 = vmul.f32 %v655, %v698
        %v701 = vmul.f32 %v660, %v698
        %v702 = vmul.f32 %v665, %v698
        %v703 = vmul.f32 %v670, %v698
        %v704 = vmul.f32 %v675, %v698
        %v705 = vmul.f32 %v680, %v698
        %v706 = vmul.f32 %v685, %v698
        %v707 = vmul.f32 %v690, %v698
        %v708 = vld [vmem:[%s4] sm:$0x1]
        %v710 = vlaneseq
        %v711 = vshrl.u32 %v710, 7
        %v712 = vsub.s32 0, %v711
        %v713 = vrot.slane %v708, %v712
        %v715 = vadd.f32 %v700, %v713
        %v716 = vadd.f32 %v701, %v713
        %v717 = vadd.f32 %v702, %v713
        %v718 = vadd.f32 %v703, %v713
        %v719 = vadd.f32 %v704, %v713
        %v720 = vadd.f32 %v705, %v713
        %v721 = vadd.f32 %v706, %v713
        %v722 = vadd.f32 %v707, %v713
        %v723 = vmax.f32 %v715, 0.0
        %v724 = vmax.f32 %v716, 0.0
        %v725 = vmax.f32 %v717, 0.0
        %v726 = vmax.f32 %v718, 0.0
        %v727 = vmax.f32 %v719, 0.0
        %v728 = vmax.f32 %v720, 0.0
        %v729 = vmax.f32 %v721, 0.0
        %v730 = vmax.f32 %v722, 0.0
        %vm731 = vcmask 523264
        %732 = vst.msk [vmem:[#allocation2] sm:$0xff] %vm731, 0.0
        %733 = vst.msk [vmem:[#allocation2 + $0x48] sm:$0xff] %vm731, 0.0
        %734 = vst.msk [vmem:[#allocation2 + $0x8] sm:$0xff] %vm731, %v723
        %735 = vst.msk [vmem:[#allocation2 + $0x10] sm:$0xff] %vm731, %v724
        %736 = vst.msk [vmem:[#allocation2 + $0x18] sm:$0xff] %vm731, %v725
        %737 = vst.msk [vmem:[#allocation2 + $0x20] sm:$0xff] %vm731, %v726
        %738 = vst.msk [vmem:[#allocation2 + $0x28] sm:$0xff] %vm731, %v727
        %739 = vst.msk [vmem:[#allocation2 + $0x30] sm:$0xff] %vm731, %v728
        %740 = vst.msk [vmem:[#allocation2 + $0x38] sm:$0xff] %vm731, %v729
        %741 = vst.msk [vmem:[#allocation2 + $0x40] sm:$0xff] %vm731, %v730
        %v742 = vld [vmem:[#allocation2 + $0x1] sm:$0xff]
        %v743 = vld [vmem:[#allocation2 + $0x9] sm:$0xff]
        %v744 = vld [vmem:[#allocation2 + $0x11] sm:$0xff]
        %v745 = vld [vmem:[#allocation2 + $0x19] sm:$0xff]
        %v746 = vld [vmem:[#allocation2 + $0x21] sm:$0xff]
        %v747 = vld [vmem:[#allocation2 + $0x29] sm:$0xff]
        %v748 = vld [vmem:[#allocation2 + $0x31] sm:$0xff]
        %v749 = vld [vmem:[#allocation2 + $0x39] sm:$0xff]
        %v750 = vld [vmem:[%s5] sm:$0xff]
        %v751 = vld [vmem:[%s5 + $0x8] sm:$0xff]
        %v752 = vld [vmem:[%s5 + $0x10] sm:$0xff]
        %v753 = vld [vmem:[%s5 + $0x18] sm:$0xff]
        %v754 = vld [vmem:[%s5 + $0x20] sm:$0xff]
        %v755 = vld [vmem:[%s5 + $0x28] sm:$0xff]
        %v756 = vld [vmem:[%s5 + $0x30] sm:$0xff]
        %v757 = vld [vmem:[%s5 + $0x38] sm:$0xff]
        %v758 = vld [vmem:[#allocation2 + $0x2] sm:$0xff]
        %v759 = vld [vmem:[#allocation2 + $0xa] sm:$0xff]
        %v760 = vld [vmem:[#allocation2 + $0x12] sm:$0xff]
        %v761 = vld [vmem:[#allocation2 + $0x1a] sm:$0xff]
        %v762 = vld [vmem:[#allocation2 + $0x22] sm:$0xff]
        %v763 = vld [vmem:[#allocation2 + $0x2a] sm:$0xff]
        %v764 = vld [vmem:[#allocation2 + $0x32] sm:$0xff]
        %v765 = vld [vmem:[#allocation2 + $0x3a] sm:$0xff]
        %s766 = scalar_lea.vmem %s5, 64
        %v767 = vld [vmem:[%s766] sm:$0xff]
        %v768 = vld [vmem:[%s766 + $0x8] sm:$0xff]
        %v769 = vld [vmem:[%s766 + $0x10] sm:$0xff]
        %v770 = vld [vmem:[%s766 + $0x18] sm:$0xff]
        %v771 = vld [vmem:[%s766 + $0x20] sm:$0xff]
        %v772 = vld [vmem:[%s766 + $0x28] sm:$0xff]
        %v773 = vld [vmem:[%s766 + $0x30] sm:$0xff]
        %v774 = vld [vmem:[%s766 + $0x38] sm:$0xff]
        %v776 = vsel %vm731, %v758, 0
        %v779 = vsel %vm731, %v759, 0
        %v782 = vsel %vm731, %v760, 0
        %v785 = vsel %vm731, %v761, 0
        %v788 = vsel %vm731, %v762, 0
        %v791 = vsel %vm731, %v763, 0
        %v794 = vsel %vm731, %v764, 0
        %v797 = vsel %vm731, %v765, 0
        %799 = vmatprep.subr.mxu0 0.0
        %800 = vmatpush1.msra.mxu0 %v767
        %801 = vmatprep.subr.mxu0 0.0
        %802 = vmatpush1.msra.mxu0 %v768
        %803 = vmatprep.subr.mxu0 0.0
        %804 = vmatpush1.msra.mxu0 %v769
        %805 = vmatprep.subr.mxu0 0.0
        %806 = vmatpush1.msra.mxu0 %v770
        %807 = vmatprep.subr.mxu0 0.0
        %808 = vmatpush1.msra.mxu0 %v771
        %809 = vmatprep.subr.mxu0 0.0
        %810 = vmatpush1.msra.mxu0 %v772
        %811 = vmatprep.subr.mxu0 0.0
        %812 = vmatpush1.msra.mxu0 %v773
        %813 = vmatprep.subr.mxu0 0.0
        %814 = vmatpush1.msra.mxu0 %v774
        %815 = vmatprep.subr.mxu0 0.0
        %816 = vmatpush1.msra.mxu0 0.0
        %817 = vmatprep.subr.mxu0 0.0
        %818 = vmatpush1.msra.mxu0 0.0
        %819 = vmatprep.subr.mxu0 0.0
        %820 = vmatpush1.msra.mxu0 0.0
        %821 = vmatprep.subr.mxu0 0.0
        %822 = vmatpush1.msra.mxu0 0.0
        %823 = vmatprep.subr.mxu0 0.0
        %824 = vmatpush1.msra.mxu0 0.0
        %825 = vmatprep.subr.mxu0 0.0
        %826 = vmatpush1.msra.mxu0 0.0
        %827 = vmatprep.subr.mxu0 0.0
        %828 = vmatpush1.msra.mxu0 0.0
        %829 = vmatprep.subr.mxu0 0.0
        %830 = vmatpush1.msra.mxu0 0.0
        %831 = vmatprep.subr.mxu0 0.0
        %832 = vmatpush1.msra.mxu0 0.0
        %833 = vmatprep.subr.mxu0 0.0
        %834 = vmatpush1.msra.mxu0 0.0
        %835 = vmatprep.subr.mxu0 0.0
        %836 = vmatpush1.msra.mxu0 0.0
        %837 = vmatprep.subr.mxu0 0.0
        %838 = vmatpush1.msra.mxu0 0.0
        %839 = vmatprep.subr.mxu0 0.0
        %840 = vmatpush1.msra.mxu0 0.0
        %841 = vmatprep.subr.mxu0 0.0
        %842 = vmatpush1.msra.mxu0 0.0
        %843 = vmatprep.subr.mxu0 0.0
        %844 = vmatpush1.msra.mxu0 0.0
        %845 = vmatprep.subr.mxu0 0.0
        %846 = vmatpush1.msra.mxu0 0.0
        %847 = vmatprep.subr.mxu0 0.0
        %848 = vmatpush1.msra.mxu0 0.0
        %849 = vmatprep.subr.mxu0 0.0
        %850 = vmatpush1.msra.mxu0 0.0
        %851 = vmatprep.subr.mxu0 0.0
        %852 = vmatpush1.msra.mxu0 0.0
        %853 = vmatprep.subr.mxu0 0.0
        %854 = vmatpush1.msra.mxu0 0.0
        %855 = vmatprep.subr.mxu0 0.0
        %856 = vmatpush1.msra.mxu0 0.0
        %857 = vmatprep.subr.mxu0 0.0
        %858 = vmatpush1.msra.mxu0 0.0
        %859 = vmatprep.subr.mxu0 0.0
        %860 = vmatpush1.msra.mxu0 0.0
        %861 = vmatprep.subr.mxu0 0.0
        %862 = vmatpush1.msra.mxu0 0.0
        %863 = vmatprep.mubr.f32.mxu0 0.0
        %864 = vmatmul.mubr.f32.gmra.mrb[0].mxu0 %v776
        %v865 = vpop.f32.mrb[0].mxu0
        %v866 = vadd.f32 0.0, %v865
        %v867 = vpop.f32.mrb[0].mxu0
        %868 = vmatprep.mubr.f32.mxu0 0.0
        %869 = vmatmul.mubr.f32.gmra.mrb[0].mxu0 %v779
        %v870 = vpop.f32.mrb[0].mxu0
        %v871 = vadd.f32 0.0, %v870
        %v872 = vpop.f32.mrb[0].mxu0
        %873 = vmatprep.mubr.f32.mxu0 0.0
        %874 = vmatmul.mubr.f32.gmra.mrb[0].mxu0 %v782
        %v875 = vpop.f32.mrb[0].mxu0
        %v876 = vadd.f32 0.0, %v875
        %v877 = vpop.f32.mrb[0].mxu0
        %878 = vmatprep.mubr.f32.mxu0 0.0
        %879 = vmatmul.mubr.f32.gmra.mrb[0].mxu0 %v785
        %v880 = vpop.f32.mrb[0].mxu0
        %v881 = vadd.f32 0.0, %v880
        %v882 = vpop.f32.mrb[0].mxu0
        %883 = vmatprep.mubr.f32.mxu0 0.0
        %884 = vmatmul.mubr.f32.gmra.mrb[0].mxu0 %v788
        %v885 = vpop.f32.mrb[0].mxu0
        %v886 = vadd.f32 0.0, %v885
        %v887 = vpop.f32.mrb[0].mxu0
        %888 = vmatprep.mubr.f32.mxu0 0.0
        %889 = vmatmul.mubr.f32.gmra.mrb[0].mxu0 %v791
        %v890 = vpop.f32.mrb[0].mxu0
        %v891 = vadd.f32 0.0, %v890
        %v892 = vpop.f32.mrb[0].mxu0
        %893 = vmatprep.mubr.f32.mxu0 0.0
        %894 = vmatmul.mubr.f32.gmra.mrb[0].mxu0 %v794
        %v895 = vpop.f32.mrb[0].mxu0
        %v896 = vadd.f32 0.0, %v895
        %v897 = vpop.f32.mrb[0].mxu0
        %898 = vmatprep.mubr.f32.mxu0 0.0
        %899 = vmatmul.mubr.f32.gmra.mrb[0].mxu0 %v797
        %v900 = vpop.f32.mrb[0].mxu0
        %v901 = vadd.f32 0.0, %v900
        %v902 = vpop.f32.mrb[0].mxu0
        %903 = vdwg.mxu0
        %v905 = vsel %vm731, %v742, 0
        %v908 = vsel %vm731, %v743, 0
        %v911 = vsel %vm731, %v744, 0
        %v914 = vsel %vm731, %v745, 0
        %v917 = vsel %vm731, %v746, 0
        %v920 = vsel %vm731, %v747, 0
        %v923 = vsel %vm731, %v748, 0
        %v926 = vsel %vm731, %v749, 0
        %928 = vmatprep.subr.mxu0 0.0
        %929 = vmatpush1.msra.mxu0 %v750
        %930 = vmatprep.subr.mxu0 0.0
        %931 = vmatpush1.msra.mxu0 %v751
        %932 = vmatprep.subr.mxu0 0.0
        %933 = vmatpush1.msra.mxu0 %v752
        %934 = vmatprep.subr.mxu0 0.0
        %935 = vmatpush1.msra.mxu0 %v753
        %936 = vmatprep.subr.mxu0 0.0
        %937 = vmatpush1.msra.mxu0 %v754
        %938 = vmatprep.subr.mxu0 0.0
        %939 = vmatpush1.msra.mxu0 %v755
        %940 = vmatprep.subr.mxu0 0.0
        %941 = vmatpush1.msra.mxu0 %v756
        %942 = vmatprep.subr.mxu0 0.0
        %943 = vmatpush1.msra.mxu0 %v757
        %944 = vmatprep.subr.mxu0 0.0
        %945 = vmatpush1.msra.mxu0 0.0
        %946 = vmatprep.subr.mxu0 0.0
        %947 = vmatpush1.msra.mxu0 0.0
        %948 = vmatprep.subr.mxu0 0.0
        %949 = vmatpush1.msra.mxu0 0.0
        %950 = vmatprep.subr.mxu0 0.0
        %951 = vmatpush1.msra.mxu0 0.0
        %952 = vmatprep.subr.mxu0 0.0
        %953 = vmatpush1.msra.mxu0 0.0
        %954 = vmatprep.subr.mxu0 0.0
        %955 = vmatpush1.msra.mxu0 0.0
        %956 = vmatprep.subr.mxu0 0.0
        %957 = vmatpush1.msra.mxu0 0.0
        %958 = vmatprep.subr.mxu0 0.0
        %959 = vmatpush1.msra.mxu0 0.0
        %960 = vmatprep.subr.mxu0 0.0
        %961 = vmatpush1.msra.mxu0 0.0
        %962 = vmatprep.subr.mxu0 0.0
        %963 = vmatpush1.msra.mxu0 0.0
        %964 = vmatprep.subr.mxu0 0.0
        %965 = vmatpush1.msra.mxu0 0.0
        %966 = vmatprep.subr.mxu0 0.0
        %967 = vmatpush1.msra.mxu0 0.0
        %968 = vmatprep.subr.mxu0 0.0
        %969 = vmatpush1.msra.mxu0 0.0
        %970 = vmatprep.subr.mxu0 0.0
        %971 = vmatpush1.msra.mxu0 0.0
        %972 = vmatprep.subr.mxu0 0.0
        %973 = vmatpush1.msra.mxu0 0.0
        %974 = vmatprep.subr.mxu0 0.0
        %975 = vmatpush1.msra.mxu0 0.0
        %976 = vmatprep.subr.mxu0 0.0
        %977 = vmatpush1.msra.mxu0 0.0
        %978 = vmatprep.subr.mxu0 0.0
        %979 = vmatpush1.msra.mxu0 0.0
        %980 = vmatprep.subr.mxu0 0.0
        %981 = vmatpush1.msra.mxu0 0.0
        %982 = vmatprep.subr.mxu0 0.0
        %983 = vmatpush1.msra.mxu0 0.0
        %984 = vmatprep.subr.mxu0 0.0
        %985 = vmatpush1.msra.mxu0 0.0
        %986 = vmatprep.subr.mxu0 0.0
        %987 = vmatpush1.msra.mxu0 0.0
        %988 = vmatprep.subr.mxu0 0.0
        %989 = vmatpush1.msra.mxu0 0.0
        %990 = vmatprep.subr.mxu0 0.0
        %991 = vmatpush1.msra.mxu0 0.0
        %992 = vmatprep.mubr.f32.mxu0 0.0
        %993 = vmatmul.mubr.f32.gmra.mrb[0].mxu0 %v905
        %v994 = vpop.f32.mrb[0].mxu0
        %v995 = vadd.f32 %v866, %v994
        %v996 = vpop.f32.mrb[0].mxu0
        %997 = vmatprep.mubr.f32.mxu0 0.0
        %998 = vmatmul.mubr.f32.gmra.mrb[0].mxu0 %v908
        %v999 = vpop.f32.mrb[0].mxu0
        %v1000 = vadd.f32 %v871, %v999
        %v1001 = vpop.f32.mrb[0].mxu0
        %1002 = vmatprep.mubr.f32.mxu0 0.0
        %1003 = vmatmul.mubr.f32.gmra.mrb[0].mxu0 %v911
        %v1004 = vpop.f32.mrb[0].mxu0
        %v1005 = vadd.f32 %v876, %v1004
        %v1006 = vpop.f32.mrb[0].mxu0
        %1007 = vmatprep.mubr.f32.mxu0 0.0
        %1008 = vmatmul.mubr.f32.gmra.mrb[0].mxu0 %v914
        %v1009 = vpop.f32.mrb[0].mxu0
        %v1010 = vadd.f32 %v881, %v1009
        %v1011 = vpop.f32.mrb[0].mxu0
        %1012 = vmatprep.mubr.f32.mxu0 0.0
        %1013 = vmatmul.mubr.f32.gmra.mrb[0].mxu0 %v917
        %v1014 = vpop.f32.mrb[0].mxu0
        %v1015 = vadd.f32 %v886, %v1014
        %v1016 = vpop.f32.mrb[0].mxu0
        %1017 = vmatprep.mubr.f32.mxu0 0.0
        %1018 = vmatmul.mubr.f32.gmra.mrb[0].mxu0 %v920
        %v1019 = vpop.f32.mrb[0].mxu0
        %v1020 = vadd.f32 %v891, %v1019
        %v1021 = vpop.f32.mrb[0].mxu0
        %1022 = vmatprep.mubr.f32.mxu0 0.0
        %1023 = vmatmul.mubr.f32.gmra.mrb[0].mxu0 %v923
        %v1024 = vpop.f32.mrb[0].mxu0
        %v1025 = vadd.f32 %v896, %v1024
        %v1026 = vpop.f32.mrb[0].mxu0
        %1027 = vmatprep.mubr.f32.mxu0 0.0
        %1028 = vmatmul.mubr.f32.gmra.mrb[0].mxu0 %v926
        %v1029 = vpop.f32.mrb[0].mxu0
        %v1030 = vadd.f32 %v901, %v1029
        %v1031 = vpop.f32.mrb[0].mxu0
        %1032 = vdwg.mxu0
        %v1033 = vld [vmem:[#allocation2 + $0x3] sm:$0xff]
        %v1034 = vld [vmem:[#allocation2 + $0xb] sm:$0xff]
        %v1035 = vld [vmem:[#allocation2 + $0x13] sm:$0xff]
        %v1036 = vld [vmem:[#allocation2 + $0x1b] sm:$0xff]
        %v1037 = vld [vmem:[#allocation2 + $0x23] sm:$0xff]
        %v1038 = vld [vmem:[#allocation2 + $0x2b] sm:$0xff]
        %v1039 = vld [vmem:[#allocation2 + $0x33] sm:$0xff]
        %v1040 = vld [vmem:[#allocation2 + $0x3b] sm:$0xff]
        %s1041 = scalar_lea.vmem %s5, 128
        %v1042 = vld [vmem:[%s1041] sm:$0xff]
        %v1043 = vld [vmem:[%s1041 + $0x8] sm:$0xff]
        %v1044 = vld [vmem:[%s1041 + $0x10] sm:$0xff]
        %v1045 = vld [vmem:[%s1041 + $0x18] sm:$0xff]
        %v1046 = vld [vmem:[%s1041 + $0x20] sm:$0xff]
        %v1047 = vld [vmem:[%s1041 + $0x28] sm:$0xff]
        %v1048 = vld [vmem:[%s1041 + $0x30] sm:$0xff]
        %v1049 = vld [vmem:[%s1041 + $0x38] sm:$0xff]
        %v1051 = vsel %vm731, %v1033, 0
        %v1054 = vsel %vm731, %v1034, 0
        %v1057 = vsel %vm731, %v1035, 0
        %v1060 = vsel %vm731, %v1036, 0
        %v1063 = vsel %vm731, %v1037, 0
        %v1066 = vsel %vm731, %v1038, 0
        %v1069 = vsel %vm731, %v1039, 0
        %v1072 = vsel %vm731, %v1040, 0
        %1074 = vmatprep.subr.mxu0 0.0
        %1075 = vmatpush1.msra.mxu0 %v1042
        %1076 = vmatprep.subr.mxu0 0.0
        %1077 = vmatpush1.msra.mxu0 %v1043
        %1078 = vmatprep.subr.mxu0 0.0
        %1079 = vmatpush1.msra.mxu0 %v1044
        %1080 = vmatprep.subr.mxu0 0.0
        %1081 = vmatpush1.msra.mxu0 %v1045
        %1082 = vmatprep.subr.mxu0 0.0
        %1083 = vmatpush1.msra.mxu0 %v1046
        %1084 = vmatprep.subr.mxu0 0.0
        %1085 = vmatpush1.msra.mxu0 %v1047
        %1086 = vmatprep.subr.mxu0 0.0
        %1087 = vmatpush1.msra.mxu0 %v1048
        %1088 = vmatprep.subr.mxu0 0.0
        %1089 = vmatpush1.msra.mxu0 %v1049
        %1090 = vmatprep.subr.mxu0 0.0
        %1091 = vmatpush1.msra.mxu0 0.0
        %1092 = vmatprep.subr.mxu0 0.0
        %1093 = vmatpush1.msra.mxu0 0.0
        %1094 = vmatprep.subr.mxu0 0.0
        %1095 = vmatpush1.msra.mxu0 0.0
        %1096 = vmatprep.subr.mxu0 0.0
        %1097 = vmatpush1.msra.mxu0 0.0
        %1098 = vmatprep.subr.mxu0 0.0
        %1099 = vmatpush1.msra.mxu0 0.0
        %1100 = vmatprep.subr.mxu0 0.0
        %1101 = vmatpush1.msra.mxu0 0.0
        %1102 = vmatprep.subr.mxu0 0.0
        %1103 = vmatpush1.msra.mxu0 0.0
        %1104 = vmatprep.subr.mxu0 0.0
        %1105 = vmatpush1.msra.mxu0 0.0
        %1106 = vmatprep.subr.mxu0 0.0
        %1107 = vmatpush1.msra.mxu0 0.0
        %1108 = vmatprep.subr.mxu0 0.0
        %1109 = vmatpush1.msra.mxu0 0.0
        %1110 = vmatprep.subr.mxu0 0.0
        %1111 = vmatpush1.msra.mxu0 0.0
        %1112 = vmatprep.subr.mxu0 0.0
        %1113 = vmatpush1.msra.mxu0 0.0
        %1114 = vmatprep.subr.mxu0 0.0
        %1115 = vmatpush1.msra.mxu0 0.0
        %1116 = vmatprep.subr.mxu0 0.0
        %1117 = vmatpush1.msra.mxu0 0.0
        %1118 = vmatprep.subr.mxu0 0.0
        %1119 = vmatpush1.msra.mxu0 0.0
        %1120 = vmatprep.subr.mxu0 0.0
        %1121 = vmatpush1.msra.mxu0 0.0
        %1122 = vmatprep.subr.mxu0 0.0
        %1123 = vmatpush1.msra.mxu0 0.0
        %1124 = vmatprep.subr.mxu0 0.0
        %1125 = vmatpush1.msra.mxu0 0.0
        %1126 = vmatprep.subr.mxu0 0.0
        %1127 = vmatpush1.msra.mxu0 0.0
        %1128 = vmatprep.subr.mxu0 0.0
        %1129 = vmatpush1.msra.mxu0 0.0
        %1130 = vmatprep.subr.mxu0 0.0
        %1131 = vmatpush1.msra.mxu0 0.0
        %1132 = vmatprep.subr.mxu0 0.0
        %1133 = vmatpush1.msra.mxu0 0.0
        %1134 = vmatprep.subr.mxu0 0.0
        %1135 = vmatpush1.msra.mxu0 0.0
        %1136 = vmatprep.subr.mxu0 0.0
        %1137 = vmatpush1.msra.mxu0 0.0
        %1138 = vmatprep.mubr.f32.mxu0 0.0
        %1139 = vmatmul.mubr.f32.gmra.mrb[0].mxu0 %v1051
        %v1140 = vpop.f32.mrb[0].mxu0
        %v1141 = vadd.f32 0.0, %v1140
        %v1142 = vpop.f32.mrb[0].mxu0
        %1143 = vmatprep.mubr.f32.mxu0 0.0
        %1144 = vmatmul.mubr.f32.gmra.mrb[0].mxu0 %v1054
        %v1145 = vpop.f32.mrb[0].mxu0
        %v1146 = vadd.f32 0.0, %v1145
        %v1147 = vpop.f32.mrb[0].mxu0
        %1148 = vmatprep.mubr.f32.mxu0 0.0
        %1149 = vmatmul.mubr.f32.gmra.mrb[0].mxu0 %v1057
        %v1150 = vpop.f32.mrb[0].mxu0
        %v1151 = vadd.f32 0.0, %v1150
        %v1152 = vpop.f32.mrb[0].mxu0
        %1153 = vmatprep.mubr.f32.mxu0 0.0
        %1154 = vmatmul.mubr.f32.gmra.mrb[0].mxu0 %v1060
        %v1155 = vpop.f32.mrb[0].mxu0
        %v1156 = vadd.f32 0.0, %v1155
        %v1157 = vpop.f32.mrb[0].mxu0
        %1158 = vmatprep.mubr.f32.mxu0 0.0
        %1159 = vmatmul.mubr.f32.gmra.mrb[0].mxu0 %v1063
        %v1160 = vpop.f32.mrb[0].mxu0
        %v1161 = vadd.f32 0.0, %v1160
        %v1162 = vpop.f32.mrb[0].mxu0
        %1163 = vmatprep.mubr.f32.mxu0 0.0
        %1164 = vmatmul.mubr.f32.gmra.mrb[0].mxu0 %v1066
        %v1165 = vpop.f32.mrb[0].mxu0
        %v1166 = vadd.f32 0.0, %v1165
        %v1167 = vpop.f32.mrb[0].mxu0
        %1168 = vmatprep.mubr.f32.mxu0 0.0
        %1169 = vmatmul.mubr.f32.gmra.mrb[0].mxu0 %v1069
        %v1170 = vpop.f32.mrb[0].mxu0
        %v1171 = vadd.f32 0.0, %v1170
        %v1172 = vpop.f32.mrb[0].mxu0
        %1173 = vmatprep.mubr.f32.mxu0 0.0
        %1174 = vmatmul.mubr.f32.gmra.mrb[0].mxu0 %v1072
        %v1175 = vpop.f32.mrb[0].mxu0
        %v1176 = vadd.f32 0.0, %v1175
        %v1177 = vpop.f32.mrb[0].mxu0
        %1178 = vdwg.mxu0
        %v1179 = vadd.f32 %v995, %v1141
        %v1180 = vadd.f32 %v1000, %v1146
        %v1181 = vadd.f32 %v1005, %v1151
        %v1182 = vadd.f32 %v1010, %v1156
        %v1183 = vadd.f32 %v1015, %v1161
        %v1184 = vadd.f32 %v1020, %v1166
        %v1185 = vadd.f32 %v1025, %v1171
        %v1186 = vadd.f32 %v1030, %v1176
        %v1187 = vld [vmem:[#allocation2 + $0x4] sm:$0xff]
        %v1188 = vld [vmem:[#allocation2 + $0xc] sm:$0xff]
        %v1189 = vld [vmem:[#allocation2 + $0x14] sm:$0xff]
        %v1190 = vld [vmem:[#allocation2 + $0x1c] sm:$0xff]
        %v1191 = vld [vmem:[#allocation2 + $0x24] sm:$0xff]
        %v1192 = vld [vmem:[#allocation2 + $0x2c] sm:$0xff]
        %v1193 = vld [vmem:[#allocation2 + $0x34] sm:$0xff]
        %v1194 = vld [vmem:[#allocation2 + $0x3c] sm:$0xff]
        %s1195 = scalar_lea.vmem %s5, 192
        %v1196 = vld [vmem:[%s1195] sm:$0xff]
        %v1197 = vld [vmem:[%s1195 + $0x8] sm:$0xff]
        %v1198 = vld [vmem:[%s1195 + $0x10] sm:$0xff]
        %v1199 = vld [vmem:[%s1195 + $0x18] sm:$0xff]
        %v1200 = vld [vmem:[%s1195 + $0x20] sm:$0xff]
        %v1201 = vld [vmem:[%s1195 + $0x28] sm:$0xff]
        %v1202 = vld [vmem:[%s1195 + $0x30] sm:$0xff]
        %v1203 = vld [vmem:[%s1195 + $0x38] sm:$0xff]
        %v1205 = vsel %vm731, %v1187, 0
        %v1208 = vsel %vm731, %v1188, 0
        %v1211 = vsel %vm731, %v1189, 0
        %v1214 = vsel %vm731, %v1190, 0
        %v1217 = vsel %vm731, %v1191, 0
        %v1220 = vsel %vm731, %v1192, 0
        %v1223 = vsel %vm731, %v1193, 0
        %v1226 = vsel %vm731, %v1194, 0
        %1228 = vmatprep.subr.mxu0 0.0
        %1229 = vmatpush1.msra.mxu0 %v1196
        %1230 = vmatprep.subr.mxu0 0.0
        %1231 = vmatpush1.msra.mxu0 %v1197
        %1232 = vmatprep.subr.mxu0 0.0
        %1233 = vmatpush1.msra.mxu0 %v1198
        %1234 = vmatprep.subr.mxu0 0.0
        %1235 = vmatpush1.msra.mxu0 %v1199
        %1236 = vmatprep.subr.mxu0 0.0
        %1237 = vmatpush1.msra.mxu0 %v1200
        %1238 = vmatprep.subr.mxu0 0.0
        %1239 = vmatpush1.msra.mxu0 %v1201
        %1240 = vmatprep.subr.mxu0 0.0
        %1241 = vmatpush1.msra.mxu0 %v1202
        %1242 = vmatprep.subr.mxu0 0.0
        %1243 = vmatpush1.msra.mxu0 %v1203
        %1244 = vmatprep.subr.mxu0 0.0
        %1245 = vmatpush1.msra.mxu0 0.0
        %1246 = vmatprep.subr.mxu0 0.0
        %1247 = vmatpush1.msra.mxu0 0.0
        %1248 = vmatprep.subr.mxu0 0.0
        %1249 = vmatpush1.msra.mxu0 0.0
        %1250 = vmatprep.subr.mxu0 0.0
        %1251 = vmatpush1.msra.mxu0 0.0
        %1252 = vmatprep.subr.mxu0 0.0
        %1253 = vmatpush1.msra.mxu0 0.0
        %1254 = vmatprep.subr.mxu0 0.0
        %1255 = vmatpush1.msra.mxu0 0.0
        %1256 = vmatprep.subr.mxu0 0.0
        %1257 = vmatpush1.msra.mxu0 0.0
        %1258 = vmatprep.subr.mxu0 0.0
        %1259 = vmatpush1.msra.mxu0 0.0
        %1260 = vmatprep.subr.mxu0 0.0
        %1261 = vmatpush1.msra.mxu0 0.0
        %1262 = vmatprep.subr.mxu0 0.0
        %1263 = vmatpush1.msra.mxu0 0.0
        %1264 = vmatprep.subr.mxu0 0.0
        %1265 = vmatpush1.msra.mxu0 0.0
        %1266 = vmatprep.subr.mxu0 0.0
        %1267 = vmatpush1.msra.mxu0 0.0
        %1268 = vmatprep.subr.mxu0 0.0
        %1269 = vmatpush1.msra.mxu0 0.0
        %1270 = vmatprep.subr.mxu0 0.0
        %1271 = vmatpush1.msra.mxu0 0.0
        %1272 = vmatprep.subr.mxu0 0.0
        %1273 = vmatpush1.msra.mxu0 0.0
        %1274 = vmatprep.subr.mxu0 0.0
        %1275 = vmatpush1.msra.mxu0 0.0
        %1276 = vmatprep.subr.mxu0 0.0
        %1277 = vmatpush1.msra.mxu0 0.0
        %1278 = vmatprep.subr.mxu0 0.0
        %1279 = vmatpush1.msra.mxu0 0.0
        %1280 = vmatprep.subr.mxu0 0.0
        %1281 = vmatpush1.msra.mxu0 0.0
        %1282 = vmatprep.subr.mxu0 0.0
        %1283 = vmatpush1.msra.mxu0 0.0
        %1284 = vmatprep.subr.mxu0 0.0
        %1285 = vmatpush1.msra.mxu0 0.0
        %1286 = vmatprep.subr.mxu0 0.0
        %1287 = vmatpush1.msra.mxu0 0.0
        %1288 = vmatprep.subr.mxu0 0.0
        %1289 = vmatpush1.msra.mxu0 0.0
        %1290 = vmatprep.subr.mxu0 0.0
        %1291 = vmatpush1.msra.mxu0 0.0
        %1292 = vmatprep.mubr.f32.mxu0 0.0
        %1293 = vmatmul.mubr.f32.gmra.mrb[0].mxu0 %v1205
        %v1294 = vpop.f32.mrb[0].mxu0
        %v1295 = vadd.f32 0.0, %v1294
        %v1296 = vpop.f32.mrb[0].mxu0
        %1297 = vmatprep.mubr.f32.mxu0 0.0
        %1298 = vmatmul.mubr.f32.gmra.mrb[0].mxu0 %v1208
        %v1299 = vpop.f32.mrb[0].mxu0
        %v1300 = vadd.f32 0.0, %v1299
        %v1301 = vpop.f32.mrb[0].mxu0
        %1302 = vmatprep.mubr.f32.mxu0 0.0
        %1303 = vmatmul.mubr.f32.gmra.mrb[0].mxu0 %v1211
        %v1304 = vpop.f32.mrb[0].mxu0
        %v1305 = vadd.f32 0.0, %v1304
        %v1306 = vpop.f32.mrb[0].mxu0
        %1307 = vmatprep.mubr.f32.mxu0 0.0
        %1308 = vmatmul.mubr.f32.gmra.mrb[0].mxu0 %v1214
        %v1309 = vpop.f32.mrb[0].mxu0
        %v1310 = vadd.f32 0.0, %v1309
        %v1311 = vpop.f32.mrb[0].mxu0
        %1312 = vmatprep.mubr.f32.mxu0 0.0
        %1313 = vmatmul.mubr.f32.gmra.mrb[0].mxu0 %v1217
        %v1314 = vpop.f32.mrb[0].mxu0
        %v1315 = vadd.f32 0.0, %v1314
        %v1316 = vpop.f32.mrb[0].mxu0
        %1317 = vmatprep.mubr.f32.mxu0 0.0
        %1318 = vmatmul.mubr.f32.gmra.mrb[0].mxu0 %v1220
        %v1319 = vpop.f32.mrb[0].mxu0
        %v1320 = vadd.f32 0.0, %v1319
        %v1321 = vpop.f32.mrb[0].mxu0
        %1322 = vmatprep.mubr.f32.mxu0 0.0
        %1323 = vmatmul.mubr.f32.gmra.mrb[0].mxu0 %v1223
        %v1324 = vpop.f32.mrb[0].mxu0
        %v1325 = vadd.f32 0.0, %v1324
        %v1326 = vpop.f32.mrb[0].mxu0
        %1327 = vmatprep.mubr.f32.mxu0 0.0
        %1328 = vmatmul.mubr.f32.gmra.mrb[0].mxu0 %v1226
        %v1329 = vpop.f32.mrb[0].mxu0
        %v1330 = vadd.f32 0.0, %v1329
        %v1331 = vpop.f32.mrb[0].mxu0
        %1332 = vdwg.mxu0
        %v1333 = vadd.f32 %v1179, %v1295
        %v1334 = vadd.f32 %v1180, %v1300
        %v1335 = vadd.f32 %v1181, %v1305
        %v1336 = vadd.f32 %v1182, %v1310
        %v1337 = vadd.f32 %v1183, %v1315
        %v1338 = vadd.f32 %v1184, %v1320
        %v1339 = vadd.f32 %v1185, %v1325
        %v1340 = vadd.f32 %v1186, %v1330
        %v1341 = vld [vmem:[#allocation2 + $0x5] sm:$0xff]
        %v1342 = vld [vmem:[#allocation2 + $0xd] sm:$0xff]
        %v1343 = vld [vmem:[#allocation2 + $0x15] sm:$0xff]
        %v1344 = vld [vmem:[#allocation2 + $0x1d] sm:$0xff]
        %v1345 = vld [vmem:[#allocation2 + $0x25] sm:$0xff]
        %v1346 = vld [vmem:[#allocation2 + $0x2d] sm:$0xff]
        %v1347 = vld [vmem:[#allocation2 + $0x35] sm:$0xff]
        %v1348 = vld [vmem:[#allocation2 + $0x3d] sm:$0xff]
        %s1349 = scalar_lea.vmem %s5, 256
        %v1350 = vld [vmem:[%s1349] sm:$0xff]
        %v1351 = vld [vmem:[%s1349 + $0x8] sm:$0xff]
        %v1352 = vld [vmem:[%s1349 + $0x10] sm:$0xff]
        %v1353 = vld [vmem:[%s1349 + $0x18] sm:$0xff]
        %v1354 = vld [vmem:[%s1349 + $0x20] sm:$0xff]
        %v1355 = vld [vmem:[%s1349 + $0x28] sm:$0xff]
        %v1356 = vld [vmem:[%s1349 + $0x30] sm:$0xff]
        %v1357 = vld [vmem:[%s1349 + $0x38] sm:$0xff]
        %v1359 = vsel %vm731, %v1341, 0
        %v1362 = vsel %vm731, %v1342, 0
        %v1365 = vsel %vm731, %v1343, 0
        %v1368 = vsel %vm731, %v1344, 0
        %v1371 = vsel %vm731, %v1345, 0
        %v1374 = vsel %vm731, %v1346, 0
        %v1377 = vsel %vm731, %v1347, 0
        %v1380 = vsel %vm731, %v1348, 0
        %1382 = vmatprep.subr.mxu0 0.0
        %1383 = vmatpush1.msra.mxu0 %v1350
        %1384 = vmatprep.subr.mxu0 0.0
        %1385 = vmatpush1.msra.mxu0 %v1351
        %1386 = vmatprep.subr.mxu0 0.0
        %1387 = vmatpush1.msra.mxu0 %v1352
        %1388 = vmatprep.subr.mxu0 0.0
        %1389 = vmatpush1.msra.mxu0 %v1353
        %1390 = vmatprep.subr.mxu0 0.0
        %1391 = vmatpush1.msra.mxu0 %v1354
        %1392 = vmatprep.subr.mxu0 0.0
        %1393 = vmatpush1.msra.mxu0 %v1355
        %1394 = vmatprep.subr.mxu0 0.0
        %1395 = vmatpush1.msra.mxu0 %v1356
        %1396 = vmatprep.subr.mxu0 0.0
        %1397 = vmatpush1.msra.mxu0 %v1357
        %1398 = vmatprep.subr.mxu0 0.0
        %1399 = vmatpush1.msra.mxu0 0.0
        %1400 = vmatprep.subr.mxu0 0.0
        %1401 = vmatpush1.msra.mxu0 0.0
        %1402 = vmatprep.subr.mxu0 0.0
        %1403 = vmatpush1.msra.mxu0 0.0
        %1404 = vmatprep.subr.mxu0 0.0
        %1405 = vmatpush1.msra.mxu0 0.0
        %1406 = vmatprep.subr.mxu0 0.0
        %1407 = vmatpush1.msra.mxu0 0.0
        %1408 = vmatprep.subr.mxu0 0.0
        %1409 = vmatpush1.msra.mxu0 0.0
        %1410 = vmatprep.subr.mxu0 0.0
        %1411 = vmatpush1.msra.mxu0 0.0
        %1412 = vmatprep.subr.mxu0 0.0
        %1413 = vmatpush1.msra.mxu0 0.0
        %1414 = vmatprep.subr.mxu0 0.0
        %1415 = vmatpush1.msra.mxu0 0.0
        %1416 = vmatprep.subr.mxu0 0.0
        %1417 = vmatpush1.msra.mxu0 0.0
        %1418 = vmatprep.subr.mxu0 0.0
        %1419 = vmatpush1.msra.mxu0 0.0
        %1420 = vmatprep.subr.mxu0 0.0
        %1421 = vmatpush1.msra.mxu0 0.0
        %1422 = vmatprep.subr.mxu0 0.0
        %1423 = vmatpush1.msra.mxu0 0.0
        %1424 = vmatprep.subr.mxu0 0.0
        %1425 = vmatpush1.msra.mxu0 0.0
        %1426 = vmatprep.subr.mxu0 0.0
        %1427 = vmatpush1.msra.mxu0 0.0
        %1428 = vmatprep.subr.mxu0 0.0
        %1429 = vmatpush1.msra.mxu0 0.0
        %1430 = vmatprep.subr.mxu0 0.0
        %1431 = vmatpush1.msra.mxu0 0.0
        %1432 = vmatprep.subr.mxu0 0.0
        %1433 = vmatpush1.msra.mxu0 0.0
        %1434 = vmatprep.subr.mxu0 0.0
        %1435 = vmatpush1.msra.mxu0 0.0
        %1436 = vmatprep.subr.mxu0 0.0
        %1437 = vmatpush1.msra.mxu0 0.0
        %1438 = vmatprep.subr.mxu0 0.0
        %1439 = vmatpush1.msra.mxu0 0.0
        %1440 = vmatprep.subr.mxu0 0.0
        %1441 = vmatpush1.msra.mxu0 0.0
        %1442 = vmatprep.subr.mxu0 0.0
        %1443 = vmatpush1.msra.mxu0 0.0
        %1444 = vmatprep.subr.mxu0 0.0
        %1445 = vmatpush1.msra.mxu0 0.0
        %1446 = vmatprep.mubr.f32.mxu0 0.0
        %1447 = vmatmul.mubr.f32.gmra.mrb[0].mxu0 %v1359
        %v1448 = vpop.f32.mrb[0].mxu0
        %v1449 = vadd.f32 0.0, %v1448
        %v1450 = vpop.f32.mrb[0].mxu0
        %1451 = vmatprep.mubr.f32.mxu0 0.0
        %1452 = vmatmul.mubr.f32.gmra.mrb[0].mxu0 %v1362
        %v1453 = vpop.f32.mrb[0].mxu0
        %v1454 = vadd.f32 0.0, %v1453
        %v1455 = vpop.f32.mrb[0].mxu0
        %1456 = vmatprep.mubr.f32.mxu0 0.0
        %1457 = vmatmul.mubr.f32.gmra.mrb[0].mxu0 %v1365
        %v1458 = vpop.f32.mrb[0].mxu0
        %v1459 = vadd.f32 0.0, %v1458
        %v1460 = vpop.f32.mrb[0].mxu0
        %1461 = vmatprep.mubr.f32.mxu0 0.0
        %1462 = vmatmul.mubr.f32.gmra.mrb[0].mxu0 %v1368
        %v1463 = vpop.f32.mrb[0].mxu0
        %v1464 = vadd.f32 0.0, %v1463
        %v1465 = vpop.f32.mrb[0].mxu0
        %1466 = vmatprep.mubr.f32.mxu0 0.0
        %1467 = vmatmul.mubr.f32.gmra.mrb[0].mxu0 %v1371
        %v1468 = vpop.f32.mrb[0].mxu0
        %v1469 = vadd.f32 0.0, %v1468
        %v1470 = vpop.f32.mrb[0].mxu0
        %1471 = vmatprep.mubr.f32.mxu0 0.0
        %1472 = vmatmul.mubr.f32.gmra.mrb[0].mxu0 %v1374
        %v1473 = vpop.f32.mrb[0].mxu0
        %v1474 = vadd.f32 0.0, %v1473
        %v1475 = vpop.f32.mrb[0].mxu0
        %1476 = vmatprep.mubr.f32.mxu0 0.0
        %1477 = vmatmul.mubr.f32.gmra.mrb[0].mxu0 %v1377
        %v1478 = vpop.f32.mrb[0].mxu0
        %v1479 = vadd.f32 0.0, %v1478
        %v1480 = vpop.f32.mrb[0].mxu0
        %1481 = vmatprep.mubr.f32.mxu0 0.0
        %1482 = vmatmul.mubr.f32.gmra.mrb[0].mxu0 %v1380
        %v1483 = vpop.f32.mrb[0].mxu0
        %v1484 = vadd.f32 0.0, %v1483
        %v1485 = vpop.f32.mrb[0].mxu0
        %1486 = vdwg.mxu0
        %v1487 = vadd.f32 %v1333, %v1449
        %v1488 = vadd.f32 %v1334, %v1454
        %v1489 = vadd.f32 %v1335, %v1459
        %v1490 = vadd.f32 %v1336, %v1464
        %v1491 = vadd.f32 %v1337, %v1469
        %v1492 = vadd.f32 %v1338, %v1474
        %v1493 = vadd.f32 %v1339, %v1479
        %v1494 = vadd.f32 %v1340, %v1484
        %v1495 = vld [vmem:[#allocation2 + $0x6] sm:$0xff]
        %v1496 = vld [vmem:[#allocation2 + $0xe] sm:$0xff]
        %v1497 = vld [vmem:[#allocation2 + $0x16] sm:$0xff]
        %v1498 = vld [vmem:[#allocation2 + $0x1e] sm:$0xff]
        %v1499 = vld [vmem:[#allocation2 + $0x26] sm:$0xff]
        %v1500 = vld [vmem:[#allocation2 + $0x2e] sm:$0xff]
        %v1501 = vld [vmem:[#allocation2 + $0x36] sm:$0xff]
        %v1502 = vld [vmem:[#allocation2 + $0x3e] sm:$0xff]
        %s1503 = scalar_lea.vmem %s5, 320
        %v1504 = vld [vmem:[%s1503] sm:$0xff]
        %v1505 = vld [vmem:[%s1503 + $0x8] sm:$0xff]
        %v1506 = vld [vmem:[%s1503 + $0x10] sm:$0xff]
        %v1507 = vld [vmem:[%s1503 + $0x18] sm:$0xff]
        %v1508 = vld [vmem:[%s1503 + $0x20] sm:$0xff]
        %v1509 = vld [vmem:[%s1503 + $0x28] sm:$0xff]
        %v1510 = vld [vmem:[%s1503 + $0x30] sm:$0xff]
        %v1511 = vld [vmem:[%s1503 + $0x38] sm:$0xff]
        %v1513 = vsel %vm731, %v1495, 0
        %v1516 = vsel %vm731, %v1496, 0
        %v1519 = vsel %vm731, %v1497, 0
        %v1522 = vsel %vm731, %v1498, 0
        %v1525 = vsel %vm731, %v1499, 0
        %v1528 = vsel %vm731, %v1500, 0
        %v1531 = vsel %vm731, %v1501, 0
        %v1534 = vsel %vm731, %v1502, 0
        %1536 = vmatprep.subr.mxu0 0.0
        %1537 = vmatpush1.msra.mxu0 %v1504
        %1538 = vmatprep.subr.mxu0 0.0
        %1539 = vmatpush1.msra.mxu0 %v1505
        %1540 = vmatprep.subr.mxu0 0.0
        %1541 = vmatpush1.msra.mxu0 %v1506
        %1542 = vmatprep.subr.mxu0 0.0
        %1543 = vmatpush1.msra.mxu0 %v1507
        %1544 = vmatprep.subr.mxu0 0.0
        %1545 = vmatpush1.msra.mxu0 %v1508
        %1546 = vmatprep.subr.mxu0 0.0
        %1547 = vmatpush1.msra.mxu0 %v1509
        %1548 = vmatprep.subr.mxu0 0.0
        %1549 = vmatpush1.msra.mxu0 %v1510
        %1550 = vmatprep.subr.mxu0 0.0
        %1551 = vmatpush1.msra.mxu0 %v1511
        %1552 = vmatprep.subr.mxu0 0.0
        %1553 = vmatpush1.msra.mxu0 0.0
        %1554 = vmatprep.subr.mxu0 0.0
        %1555 = vmatpush1.msra.mxu0 0.0
        %1556 = vmatprep.subr.mxu0 0.0
        %1557 = vmatpush1.msra.mxu0 0.0
        %1558 = vmatprep.subr.mxu0 0.0
        %1559 = vmatpush1.msra.mxu0 0.0
        %1560 = vmatprep.subr.mxu0 0.0
        %1561 = vmatpush1.msra.mxu0 0.0
        %1562 = vmatprep.subr.mxu0 0.0
        %1563 = vmatpush1.msra.mxu0 0.0
        %1564 = vmatprep.subr.mxu0 0.0
        %1565 = vmatpush1.msra.mxu0 0.0
        %1566 = vmatprep.subr.mxu0 0.0
        %1567 = vmatpush1.msra.mxu0 0.0
        %1568 = vmatprep.subr.mxu0 0.0
        %1569 = vmatpush1.msra.mxu0 0.0
        %1570 = vmatprep.subr.mxu0 0.0
        %1571 = vmatpush1.msra.mxu0 0.0
        %1572 = vmatprep.subr.mxu0 0.0
        %1573 = vmatpush1.msra.mxu0 0.0
        %1574 = vmatprep.subr.mxu0 0.0
        %1575 = vmatpush1.msra.mxu0 0.0
        %1576 = vmatprep.subr.mxu0 0.0
        %1577 = vmatpush1.msra.mxu0 0.0
        %1578 = vmatprep.subr.mxu0 0.0
        %1579 = vmatpush1.msra.mxu0 0.0
        %1580 = vmatprep.subr.mxu0 0.0
        %1581 = vmatpush1.msra.mxu0 0.0
        %1582 = vmatprep.subr.mxu0 0.0
        %1583 = vmatpush1.msra.mxu0 0.0
        %1584 = vmatprep.subr.mxu0 0.0
        %1585 = vmatpush1.msra.mxu0 0.0
        %1586 = vmatprep.subr.mxu0 0.0
        %1587 = vmatpush1.msra.mxu0 0.0
        %1588 = vmatprep.subr.mxu0 0.0
        %1589 = vmatpush1.msra.mxu0 0.0
        %1590 = vmatprep.subr.mxu0 0.0
        %1591 = vmatpush1.msra.mxu0 0.0
        %1592 = vmatprep.subr.mxu0 0.0
        %1593 = vmatpush1.msra.mxu0 0.0
        %1594 = vmatprep.subr.mxu0 0.0
        %1595 = vmatpush1.msra.mxu0 0.0
        %1596 = vmatprep.subr.mxu0 0.0
        %1597 = vmatpush1.msra.mxu0 0.0
        %1598 = vmatprep.subr.mxu0 0.0
        %1599 = vmatpush1.msra.mxu0 0.0
        %1600 = vmatprep.mubr.f32.mxu0 0.0
        %1601 = vmatmul.mubr.f32.gmra.mrb[0].mxu0 %v1513
        %v1602 = vpop.f32.mrb[0].mxu0
        %v1603 = vadd.f32 0.0, %v1602
        %v1604 = vpop.f32.mrb[0].mxu0
        %1605 = vmatprep.mubr.f32.mxu0 0.0
        %1606 = vmatmul.mubr.f32.gmra.mrb[0].mxu0 %v1516
        %v1607 = vpop.f32.mrb[0].mxu0
        %v1608 = vadd.f32 0.0, %v1607
        %v1609 = vpop.f32.mrb[0].mxu0
        %1610 = vmatprep.mubr.f32.mxu0 0.0
        %1611 = vmatmul.mubr.f32.gmra.mrb[0].mxu0 %v1519
        %v1612 = vpop.f32.mrb[0].mxu0
        %v1613 = vadd.f32 0.0, %v1612
        %v1614 = vpop.f32.mrb[0].mxu0
        %1615 = vmatprep.mubr.f32.mxu0 0.0
        %1616 = vmatmul.mubr.f32.gmra.mrb[0].mxu0 %v1522
        %v1617 = vpop.f32.mrb[0].mxu0
        %v1618 = vadd.f32 0.0, %v1617
        %v1619 = vpop.f32.mrb[0].mxu0
        %1620 = vmatprep.mubr.f32.mxu0 0.0
        %1621 = vmatmul.mubr.f32.gmra.mrb[0].mxu0 %v1525
        %v1622 = vpop.f32.mrb[0].mxu0
        %v1623 = vadd.f32 0.0, %v1622
        %v1624 = vpop.f32.mrb[0].mxu0
        %1625 = vmatprep.mubr.f32.mxu0 0.0
        %1626 = vmatmul.mubr.f32.gmra.mrb[0].mxu0 %v1528
        %v1627 = vpop.f32.mrb[0].mxu0
        %v1628 = vadd.f32 0.0, %v1627
        %v1629 = vpop.f32.mrb[0].mxu0
        %1630 = vmatprep.mubr.f32.mxu0 0.0
        %1631 = vmatmul.mubr.f32.gmra.mrb[0].mxu0 %v1531
        %v1632 = vpop.f32.mrb[0].mxu0
        %v1633 = vadd.f32 0.0, %v1632
        %v1634 = vpop.f32.mrb[0].mxu0
        %1635 = vmatprep.mubr.f32.mxu0 0.0
        %1636 = vmatmul.mubr.f32.gmra.mrb[0].mxu0 %v1534
        %v1637 = vpop.f32.mrb[0].mxu0
        %v1638 = vadd.f32 0.0, %v1637
        %v1639 = vpop.f32.mrb[0].mxu0
        %1640 = vdwg.mxu0
        %v1641 = vadd.f32 %v1487, %v1603
        %v1642 = vadd.f32 %v1488, %v1608
        %v1643 = vadd.f32 %v1489, %v1613
        %v1644 = vadd.f32 %v1490, %v1618
        %v1645 = vadd.f32 %v1491, %v1623
        %v1646 = vadd.f32 %v1492, %v1628
        %v1647 = vadd.f32 %v1493, %v1633
        %v1648 = vadd.f32 %v1494, %v1638
        %v1649 = vld [vmem:[#allocation2 + $0x7] sm:$0xff]
        %v1650 = vld [vmem:[#allocation2 + $0xf] sm:$0xff]
        %v1651 = vld [vmem:[#allocation2 + $0x17] sm:$0xff]
        %v1652 = vld [vmem:[#allocation2 + $0x1f] sm:$0xff]
        %v1653 = vld [vmem:[#allocation2 + $0x27] sm:$0xff]
        %v1654 = vld [vmem:[#allocation2 + $0x2f] sm:$0xff]
        %v1655 = vld [vmem:[#allocation2 + $0x37] sm:$0xff]
        %v1656 = vld [vmem:[#allocation2 + $0x3f] sm:$0xff]
        %s1657 = scalar_lea.vmem %s5, 384
        %v1658 = vld [vmem:[%s1657] sm:$0xff]
        %v1659 = vld [vmem:[%s1657 + $0x8] sm:$0xff]
        %v1660 = vld [vmem:[%s1657 + $0x10] sm:$0xff]
        %v1661 = vld [vmem:[%s1657 + $0x18] sm:$0xff]
        %v1662 = vld [vmem:[%s1657 + $0x20] sm:$0xff]
        %v1663 = vld [vmem:[%s1657 + $0x28] sm:$0xff]
        %v1664 = vld [vmem:[%s1657 + $0x30] sm:$0xff]
        %v1665 = vld [vmem:[%s1657 + $0x38] sm:$0xff]
        %v1667 = vsel %vm731, %v1649, 0
        %v1670 = vsel %vm731, %v1650, 0
        %v1673 = vsel %vm731, %v1651, 0
        %v1676 = vsel %vm731, %v1652, 0
        %v1679 = vsel %vm731, %v1653, 0
        %v1682 = vsel %vm731, %v1654, 0
        %v1685 = vsel %vm731, %v1655, 0
        %v1688 = vsel %vm731, %v1656, 0
        %1690 = vmatprep.subr.mxu0 0.0
        %1691 = vmatpush1.msra.mxu0 %v1658
        %1692 = vmatprep.subr.mxu0 0.0
        %1693 = vmatpush1.msra.mxu0 %v1659
        %1694 = vmatprep.subr.mxu0 0.0
        %1695 = vmatpush1.msra.mxu0 %v1660
        %1696 = vmatprep.subr.mxu0 0.0
        %1697 = vmatpush1.msra.mxu0 %v1661
        %1698 = vmatprep.subr.mxu0 0.0
        %1699 = vmatpush1.msra.mxu0 %v1662
        %1700 = vmatprep.subr.mxu0 0.0
        %1701 = vmatpush1.msra.mxu0 %v1663
        %1702 = vmatprep.subr.mxu0 0.0
        %1703 = vmatpush1.msra.mxu0 %v1664
        %1704 = vmatprep.subr.mxu0 0.0
        %1705 = vmatpush1.msra.mxu0 %v1665
        %1706 = vmatprep.subr.mxu0 0.0
        %1707 = vmatpush1.msra.mxu0 0.0
        %1708 = vmatprep.subr.mxu0 0.0
        %1709 = vmatpush1.msra.mxu0 0.0
        %1710 = vmatprep.subr.mxu0 0.0
        %1711 = vmatpush1.msra.mxu0 0.0
        %1712 = vmatprep.subr.mxu0 0.0
        %1713 = vmatpush1.msra.mxu0 0.0
        %1714 = vmatprep.subr.mxu0 0.0
        %1715 = vmatpush1.msra.mxu0 0.0
        %1716 = vmatprep.subr.mxu0 0.0
        %1717 = vmatpush1.msra.mxu0 0.0
        %1718 = vmatprep.subr.mxu0 0.0
        %1719 = vmatpush1.msra.mxu0 0.0
        %1720 = vmatprep.subr.mxu0 0.0
        %1721 = vmatpush1.msra.mxu0 0.0
        %1722 = vmatprep.subr.mxu0 0.0
        %1723 = vmatpush1.msra.mxu0 0.0
        %1724 = vmatprep.subr.mxu0 0.0
        %1725 = vmatpush1.msra.mxu0 0.0
        %1726 = vmatprep.subr.mxu0 0.0
        %1727 = vmatpush1.msra.mxu0 0.0
        %1728 = vmatprep.subr.mxu0 0.0
        %1729 = vmatpush1.msra.mxu0 0.0
        %1730 = vmatprep.subr.mxu0 0.0
        %1731 = vmatpush1.msra.mxu0 0.0
        %1732 = vmatprep.subr.mxu0 0.0
        %1733 = vmatpush1.msra.mxu0 0.0
        %1734 = vmatprep.subr.mxu0 0.0
        %1735 = vmatpush1.msra.mxu0 0.0
        %1736 = vmatprep.subr.mxu0 0.0
        %1737 = vmatpush1.msra.mxu0 0.0
        %1738 = vmatprep.subr.mxu0 0.0
        %1739 = vmatpush1.msra.mxu0 0.0
        %1740 = vmatprep.subr.mxu0 0.0
        %1741 = vmatpush1.msra.mxu0 0.0
        %1742 = vmatprep.subr.mxu0 0.0
        %1743 = vmatpush1.msra.mxu0 0.0
        %1744 = vmatprep.subr.mxu0 0.0
        %1745 = vmatpush1.msra.mxu0 0.0
        %1746 = vmatprep.subr.mxu0 0.0
        %1747 = vmatpush1.msra.mxu0 0.0
        %1748 = vmatprep.subr.mxu0 0.0
        %1749 = vmatpush1.msra.mxu0 0.0
        %1750 = vmatprep.subr.mxu0 0.0
        %1751 = vmatpush1.msra.mxu0 0.0
        %1752 = vmatprep.subr.mxu0 0.0
        %1753 = vmatpush1.msra.mxu0 0.0
        %1754 = vmatprep.mubr.f32.mxu0 0.0
        %1755 = vmatmul.mubr.f32.gmra.mrb[0].mxu0 %v1667
        %v1756 = vpop.f32.mrb[0].mxu0
        %v1757 = vadd.f32 0.0, %v1756
        %v1758 = vpop.f32.mrb[0].mxu0
        %1759 = vmatprep.mubr.f32.mxu0 0.0
        %1760 = vmatmul.mubr.f32.gmra.mrb[0].mxu0 %v1670
        %v1761 = vpop.f32.mrb[0].mxu0
        %v1762 = vadd.f32 0.0, %v1761
        %v1763 = vpop.f32.mrb[0].mxu0
        %1764 = vmatprep.mubr.f32.mxu0 0.0
        %1765 = vmatmul.mubr.f32.gmra.mrb[0].mxu0 %v1673
        %v1766 = vpop.f32.mrb[0].mxu0
        %v1767 = vadd.f32 0.0, %v1766
        %v1768 = vpop.f32.mrb[0].mxu0
        %1769 = vmatprep.mubr.f32.mxu0 0.0
        %1770 = vmatmul.mubr.f32.gmra.mrb[0].mxu0 %v1676
        %v1771 = vpop.f32.mrb[0].mxu0
        %v1772 = vadd.f32 0.0, %v1771
        %v1773 = vpop.f32.mrb[0].mxu0
        %1774 = vmatprep.mubr.f32.mxu0 0.0
        %1775 = vmatmul.mubr.f32.gmra.mrb[0].mxu0 %v1679
        %v1776 = vpop.f32.mrb[0].mxu0
        %v1777 = vadd.f32 0.0, %v1776
        %v1778 = vpop.f32.mrb[0].mxu0
        %1779 = vmatprep.mubr.f32.mxu0 0.0
        %1780 = vmatmul.mubr.f32.gmra.mrb[0].mxu0 %v1682
        %v1781 = vpop.f32.mrb[0].mxu0
        %v1782 = vadd.f32 0.0, %v1781
        %v1783 = vpop.f32.mrb[0].mxu0
        %1784 = vmatprep.mubr.f32.mxu0 0.0
        %1785 = vmatmul.mubr.f32.gmra.mrb[0].mxu0 %v1685
        %v1786 = vpop.f32.mrb[0].mxu0
        %v1787 = vadd.f32 0.0, %v1786
        %v1788 = vpop.f32.mrb[0].mxu0
        %1789 = vmatprep.mubr.f32.mxu0 0.0
        %1790 = vmatmul.mubr.f32.gmra.mrb[0].mxu0 %v1688
        %v1791 = vpop.f32.mrb[0].mxu0
        %v1792 = vadd.f32 0.0, %v1791
        %v1793 = vpop.f32.mrb[0].mxu0
        %1794 = vdwg.mxu0
        %v1795 = vadd.f32 %v1641, %v1757
        %v1796 = vadd.f32 %v1642, %v1762
        %v1797 = vadd.f32 %v1643, %v1767
        %v1798 = vadd.f32 %v1644, %v1772
        %v1799 = vadd.f32 %v1645, %v1777
        %v1800 = vadd.f32 %v1646, %v1782
        %v1801 = vadd.f32 %v1647, %v1787
        %v1802 = vadd.f32 %v1648, %v1792
        %v1803 = vld [vmem:[#allocation2 + $0x8] sm:$0xff]
        %v1804 = vld [vmem:[#allocation2 + $0x10] sm:$0xff]
        %v1805 = vld [vmem:[#allocation2 + $0x18] sm:$0xff]
        %v1806 = vld [vmem:[#allocation2 + $0x20] sm:$0xff]
        %v1807 = vld [vmem:[#allocation2 + $0x28] sm:$0xff]
        %v1808 = vld [vmem:[#allocation2 + $0x30] sm:$0xff]
        %v1809 = vld [vmem:[#allocation2 + $0x38] sm:$0xff]
        %v1810 = vld [vmem:[#allocation2 + $0x40] sm:$0xff]
        %s1811 = scalar_lea.vmem %s5, 448
        %v1812 = vld [vmem:[%s1811] sm:$0xff]
        %v1813 = vld [vmem:[%s1811 + $0x8] sm:$0xff]
        %v1814 = vld [vmem:[%s1811 + $0x10] sm:$0xff]
        %v1815 = vld [vmem:[%s1811 + $0x18] sm:$0xff]
        %v1816 = vld [vmem:[%s1811 + $0x20] sm:$0xff]
        %v1817 = vld [vmem:[%s1811 + $0x28] sm:$0xff]
        %v1818 = vld [vmem:[%s1811 + $0x30] sm:$0xff]
        %v1819 = vld [vmem:[%s1811 + $0x38] sm:$0xff]
        %v1821 = vsel %vm731, %v1803, 0
        %v1824 = vsel %vm731, %v1804, 0
        %v1827 = vsel %vm731, %v1805, 0
        %v1830 = vsel %vm731, %v1806, 0
        %v1833 = vsel %vm731, %v1807, 0
        %v1836 = vsel %vm731, %v1808, 0
        %v1839 = vsel %vm731, %v1809, 0
        %v1842 = vsel %vm731, %v1810, 0
        %1844 = vmatprep.subr.mxu0 0.0
        %1845 = vmatpush1.msra.mxu0 %v1812
        %1846 = vmatprep.subr.mxu0 0.0
        %1847 = vmatpush1.msra.mxu0 %v1813
        %1848 = vmatprep.subr.mxu0 0.0
        %1849 = vmatpush1.msra.mxu0 %v1814
        %1850 = vmatprep.subr.mxu0 0.0
        %1851 = vmatpush1.msra.mxu0 %v1815
        %1852 = vmatprep.subr.mxu0 0.0
        %1853 = vmatpush1.msra.mxu0 %v1816
        %1854 = vmatprep.subr.mxu0 0.0
        %1855 = vmatpush1.msra.mxu0 %v1817
        %1856 = vmatprep.subr.mxu0 0.0
        %1857 = vmatpush1.msra.mxu0 %v1818
        %1858 = vmatprep.subr.mxu0 0.0
        %1859 = vmatpush1.msra.mxu0 %v1819
        %1860 = vmatprep.subr.mxu0 0.0
        %1861 = vmatpush1.msra.mxu0 0.0
        %1862 = vmatprep.subr.mxu0 0.0
        %1863 = vmatpush1.msra.mxu0 0.0
        %1864 = vmatprep.subr.mxu0 0.0
        %1865 = vmatpush1.msra.mxu0 0.0
        %1866 = vmatprep.subr.mxu0 0.0
        %1867 = vmatpush1.msra.mxu0 0.0
        %1868 = vmatprep.subr.mxu0 0.0
        %1869 = vmatpush1.msra.mxu0 0.0
        %1870 = vmatprep.subr.mxu0 0.0
        %1871 = vmatpush1.msra.mxu0 0.0
        %1872 = vmatprep.subr.mxu0 0.0
        %1873 = vmatpush1.msra.mxu0 0.0
        %1874 = vmatprep.subr.mxu0 0.0
        %1875 = vmatpush1.msra.mxu0 0.0
        %1876 = vmatprep.subr.mxu0 0.0
        %1877 = vmatpush1.msra.mxu0 0.0
        %1878 = vmatprep.subr.mxu0 0.0
        %1879 = vmatpush1.msra.mxu0 0.0
        %1880 = vmatprep.subr.mxu0 0.0
        %1881 = vmatpush1.msra.mxu0 0.0
        %1882 = vmatprep.subr.mxu0 0.0
        %1883 = vmatpush1.msra.mxu0 0.0
        %1884 = vmatprep.subr.mxu0 0.0
        %1885 = vmatpush1.msra.mxu0 0.0
        %1886 = vmatprep.subr.mxu0 0.0
        %1887 = vmatpush1.msra.mxu0 0.0
        %1888 = vmatprep.subr.mxu0 0.0
        %1889 = vmatpush1.msra.mxu0 0.0
        %1890 = vmatprep.subr.mxu0 0.0
        %1891 = vmatpush1.msra.mxu0 0.0
        %1892 = vmatprep.subr.mxu0 0.0
        %1893 = vmatpush1.msra.mxu0 0.0
        %1894 = vmatprep.subr.mxu0 0.0
        %1895 = vmatpush1.msra.mxu0 0.0
        %1896 = vmatprep.subr.mxu0 0.0
        %1897 = vmatpush1.msra.mxu0 0.0
        %1898 = vmatprep.subr.mxu0 0.0
        %1899 = vmatpush1.msra.mxu0 0.0
        %1900 = vmatprep.subr.mxu0 0.0
        %1901 = vmatpush1.msra.mxu0 0.0
        %1902 = vmatprep.subr.mxu0 0.0
        %1903 = vmatpush1.msra.mxu0 0.0
        %1904 = vmatprep.subr.mxu0 0.0
        %1905 = vmatpush1.msra.mxu0 0.0
        %1906 = vmatprep.subr.mxu0 0.0
        %1907 = vmatpush1.msra.mxu0 0.0
        %1908 = vmatprep.mubr.f32.mxu0 0.0
        %1909 = vmatmul.mubr.f32.gmra.mrb[0].mxu0 %v1821
        %v1910 = vpop.f32.mrb[0].mxu0
        %v1911 = vadd.f32 0.0, %v1910
        %v1912 = vpop.f32.mrb[0].mxu0
        %1913 = vmatprep.mubr.f32.mxu0 0.0
        %1914 = vmatmul.mubr.f32.gmra.mrb[0].mxu0 %v1824
        %v1915 = vpop.f32.mrb[0].mxu0
        %v1916 = vadd.f32 0.0, %v1915
        %v1917 = vpop.f32.mrb[0].mxu0
        %1918 = vmatprep.mubr.f32.mxu0 0.0
        %1919 = vmatmul.mubr.f32.gmra.mrb[0].mxu0 %v1827
        %v1920 = vpop.f32.mrb[0].mxu0
        %v1921 = vadd.f32 0.0, %v1920
        %v1922 = vpop.f32.mrb[0].mxu0
        %1923 = vmatprep.mubr.f32.mxu0 0.0
        %1924 = vmatmul.mubr.f32.gmra.mrb[0].mxu0 %v1830
        %v1925 = vpop.f32.mrb[0].mxu0
        %v1926 = vadd.f32 0.0, %v1925
        %v1927 = vpop.f32.mrb[0].mxu0
        %1928 = vmatprep.mubr.f32.mxu0 0.0
        %1929 = vmatmul.mubr.f32.gmra.mrb[0].mxu0 %v1833
        %v1930 = vpop.f32.mrb[0].mxu0
        %v1931 = vadd.f32 0.0, %v1930
        %v1932 = vpop.f32.mrb[0].mxu0
        %1933 = vmatprep.mubr.f32.mxu0 0.0
        %1934 = vmatmul.mubr.f32.gmra.mrb[0].mxu0 %v1836
        %v1935 = vpop.f32.mrb[0].mxu0
        %v1936 = vadd.f32 0.0, %v1935
        %v1937 = vpop.f32.mrb[0].mxu0
        %1938 = vmatprep.mubr.f32.mxu0 0.0
        %1939 = vmatmul.mubr.f32.gmra.mrb[0].mxu0 %v1839
        %v1940 = vpop.f32.mrb[0].mxu0
        %v1941 = vadd.f32 0.0, %v1940
        %v1942 = vpop.f32.mrb[0].mxu0
        %1943 = vmatprep.mubr.f32.mxu0 0.0
        %1944 = vmatmul.mubr.f32.gmra.mrb[0].mxu0 %v1842
        %v1945 = vpop.f32.mrb[0].mxu0
        %v1946 = vadd.f32 0.0, %v1945
        %v1947 = vpop.f32.mrb[0].mxu0
        %1948 = vdwg.mxu0
        %v1949 = vadd.f32 %v1795, %v1911
        %v1950 = vadd.f32 %v1796, %v1916
        %v1951 = vadd.f32 %v1797, %v1921
        %v1952 = vadd.f32 %v1798, %v1926
        %v1953 = vadd.f32 %v1799, %v1931
        %v1954 = vadd.f32 %v1800, %v1936
        %v1955 = vadd.f32 %v1801, %v1941
        %v1956 = vadd.f32 %v1802, %v1946
        %v1957 = vld [vmem:[#allocation2 + $0x9] sm:$0xff]
        %v1958 = vld [vmem:[#allocation2 + $0x11] sm:$0xff]
        %v1959 = vld [vmem:[#allocation2 + $0x19] sm:$0xff]
        %v1960 = vld [vmem:[#allocation2 + $0x21] sm:$0xff]
        %v1961 = vld [vmem:[#allocation2 + $0x29] sm:$0xff]
        %v1962 = vld [vmem:[#allocation2 + $0x31] sm:$0xff]
        %v1963 = vld [vmem:[#allocation2 + $0x39] sm:$0xff]
        %v1964 = vld [vmem:[#allocation2 + $0x41] sm:$0xff]
        %s1965 = scalar_lea.vmem %s5, 512
        %v1966 = vld [vmem:[%s1965] sm:$0xff]
        %v1967 = vld [vmem:[%s1965 + $0x8] sm:$0xff]
        %v1968 = vld [vmem:[%s1965 + $0x10] sm:$0xff]
        %v1969 = vld [vmem:[%s1965 + $0x18] sm:$0xff]
        %v1970 = vld [vmem:[%s1965 + $0x20] sm:$0xff]
        %v1971 = vld [vmem:[%s1965 + $0x28] sm:$0xff]
        %v1972 = vld [vmem:[%s1965 + $0x30] sm:$0xff]
        %v1973 = vld [vmem:[%s1965 + $0x38] sm:$0xff]
        %v1975 = vsel %vm731, %v1957, 0
        %v1978 = vsel %vm731, %v1958, 0
        %v1981 = vsel %vm731, %v1959, 0
        %v1984 = vsel %vm731, %v1960, 0
        %v1987 = vsel %vm731, %v1961, 0
        %v1990 = vsel %vm731, %v1962, 0
        %v1993 = vsel %vm731, %v1963, 0
        %v1996 = vsel %vm731, %v1964, 0
        %1998 = vmatprep.subr.mxu0 0.0
        %1999 = vmatpush1.msra.mxu0 %v1966
        %2000 = vmatprep.subr.mxu0 0.0
        %2001 = vmatpush1.msra.mxu0 %v1967
        %2002 = vmatprep.subr.mxu0 0.0
        %2003 = vmatpush1.msra.mxu0 %v1968
        %2004 = vmatprep.subr.mxu0 0.0
        %2005 = vmatpush1.msra.mxu0 %v1969
        %2006 = vmatprep.subr.mxu0 0.0
        %2007 = vmatpush1.msra.mxu0 %v1970
        %2008 = vmatprep.subr.mxu0 0.0
        %2009 = vmatpush1.msra.mxu0 %v1971
        %2010 = vmatprep.subr.mxu0 0.0
        %2011 = vmatpush1.msra.mxu0 %v1972
        %2012 = vmatprep.subr.mxu0 0.0
        %2013 = vmatpush1.msra.mxu0 %v1973
        %2014 = vmatprep.subr.mxu0 0.0
        %2015 = vmatpush1.msra.mxu0 0.0
        %2016 = vmatprep.subr.mxu0 0.0
        %2017 = vmatpush1.msra.mxu0 0.0
        %2018 = vmatprep.subr.mxu0 0.0
        %2019 = vmatpush1.msra.mxu0 0.0
        %2020 = vmatprep.subr.mxu0 0.0
        %2021 = vmatpush1.msra.mxu0 0.0
        %2022 = vmatprep.subr.mxu0 0.0
        %2023 = vmatpush1.msra.mxu0 0.0
        %2024 = vmatprep.subr.mxu0 0.0
        %2025 = vmatpush1.msra.mxu0 0.0
        %2026 = vmatprep.subr.mxu0 0.0
        %2027 = vmatpush1.msra.mxu0 0.0
        %2028 = vmatprep.subr.mxu0 0.0
        %2029 = vmatpush1.msra.mxu0 0.0
        %2030 = vmatprep.subr.mxu0 0.0
        %2031 = vmatpush1.msra.mxu0 0.0
        %2032 = vmatprep.subr.mxu0 0.0
        %2033 = vmatpush1.msra.mxu0 0.0
        %2034 = vmatprep.subr.mxu0 0.0
        %2035 = vmatpush1.msra.mxu0 0.0
        %2036 = vmatprep.subr.mxu0 0.0
        %2037 = vmatpush1.msra.mxu0 0.0
        %2038 = vmatprep.subr.mxu0 0.0
        %2039 = vmatpush1.msra.mxu0 0.0
        %2040 = vmatprep.subr.mxu0 0.0
        %2041 = vmatpush1.msra.mxu0 0.0
        %2042 = vmatprep.subr.mxu0 0.0
        %2043 = vmatpush1.msra.mxu0 0.0
        %2044 = vmatprep.subr.mxu0 0.0
        %2045 = vmatpush1.msra.mxu0 0.0
        %2046 = vmatprep.subr.mxu0 0.0
        %2047 = vmatpush1.msra.mxu0 0.0
        %2048 = vmatprep.subr.mxu0 0.0
        %2049 = vmatpush1.msra.mxu0 0.0
        %2050 = vmatprep.subr.mxu0 0.0
        %2051 = vmatpush1.msra.mxu0 0.0
        %2052 = vmatprep.subr.mxu0 0.0
        %2053 = vmatpush1.msra.mxu0 0.0
        %2054 = vmatprep.subr.mxu0 0.0
        %2055 = vmatpush1.msra.mxu0 0.0
        %2056 = vmatprep.subr.mxu0 0.0
        %2057 = vmatpush1.msra.mxu0 0.0
        %2058 = vmatprep.subr.mxu0 0.0
        %2059 = vmatpush1.msra.mxu0 0.0
        %2060 = vmatprep.subr.mxu0 0.0
        %2061 = vmatpush1.msra.mxu0 0.0
        %2062 = vmatprep.mubr.f32.mxu0 0.0
        %2063 = vmatmul.mubr.f32.gmra.mrb[0].mxu0 %v1975
        %v2064 = vpop.f32.mrb[0].mxu0
        %v2065 = vadd.f32 0.0, %v2064
        %v2066 = vpop.f32.mrb[0].mxu0
        %2067 = vmatprep.mubr.f32.mxu0 0.0
        %2068 = vmatmul.mubr.f32.gmra.mrb[0].mxu0 %v1978
        %v2069 = vpop.f32.mrb[0].mxu0
        %v2070 = vadd.f32 0.0, %v2069
        %v2071 = vpop.f32.mrb[0].mxu0
        %2072 = vmatprep.mubr.f32.mxu0 0.0
        %2073 = vmatmul.mubr.f32.gmra.mrb[0].mxu0 %v1981
        %v2074 = vpop.f32.mrb[0].mxu0
        %v2075 = vadd.f32 0.0, %v2074
        %v2076 = vpop.f32.mrb[0].mxu0
        %2077 = vmatprep.mubr.f32.mxu0 0.0
        %2078 = vmatmul.mubr.f32.gmra.mrb[0].mxu0 %v1984
        %v2079 = vpop.f32.mrb[0].mxu0
        %v2080 = vadd.f32 0.0, %v2079
        %v2081 = vpop.f32.mrb[0].mxu0
        %2082 = vmatprep.mubr.f32.mxu0 0.0
        %2083 = vmatmul.mubr.f32.gmra.mrb[0].mxu0 %v1987
        %v2084 = vpop.f32.mrb[0].mxu0
        %v2085 = vadd.f32 0.0, %v2084
        %v2086 = vpop.f32.mrb[0].mxu0
        %2087 = vmatprep.mubr.f32.mxu0 0.0
        %2088 = vmatmul.mubr.f32.gmra.mrb[0].mxu0 %v1990
        %v2089 = vpop.f32.mrb[0].mxu0
        %v2090 = vadd.f32 0.0, %v2089
        %v2091 = vpop.f32.mrb[0].mxu0
        %2092 = vmatprep.mubr.f32.mxu0 0.0
        %2093 = vmatmul.mubr.f32.gmra.mrb[0].mxu0 %v1993
        %v2094 = vpop.f32.mrb[0].mxu0
        %v2095 = vadd.f32 0.0, %v2094
        %v2096 = vpop.f32.mrb[0].mxu0
        %2097 = vmatprep.mubr.f32.mxu0 0.0
        %2098 = vmatmul.mubr.f32.gmra.mrb[0].mxu0 %v1996
        %v2099 = vpop.f32.mrb[0].mxu0
        %v2100 = vadd.f32 0.0, %v2099
        %v2101 = vpop.f32.mrb[0].mxu0
        %2102 = vdwg.mxu0
        %v2103 = vadd.f32 %v1949, %v2065
        %v2104 = vadd.f32 %v1950, %v2070
        %v2105 = vadd.f32 %v1951, %v2075
        %v2106 = vadd.f32 %v1952, %v2080
        %v2107 = vadd.f32 %v1953, %v2085
        %v2108 = vadd.f32 %v1954, %v2090
        %v2109 = vadd.f32 %v1955, %v2095
        %v2110 = vadd.f32 %v1956, %v2100
        %v2111 = vld [vmem:[#allocation2 + $0xa] sm:$0xff]
        %v2112 = vld [vmem:[#allocation2 + $0x12] sm:$0xff]
        %v2113 = vld [vmem:[#allocation2 + $0x1a] sm:$0xff]
        %v2114 = vld [vmem:[#allocation2 + $0x22] sm:$0xff]
        %v2115 = vld [vmem:[#allocation2 + $0x2a] sm:$0xff]
        %v2116 = vld [vmem:[#allocation2 + $0x32] sm:$0xff]
        %v2117 = vld [vmem:[#allocation2 + $0x3a] sm:$0xff]
        %v2118 = vld [vmem:[#allocation2 + $0x42] sm:$0xff]
        %s2119 = scalar_lea.vmem %s5, 576
        %v2120 = vld [vmem:[%s2119] sm:$0xff]
        %v2121 = vld [vmem:[%s2119 + $0x8] sm:$0xff]
        %v2122 = vld [vmem:[%s2119 + $0x10] sm:$0xff]
        %v2123 = vld [vmem:[%s2119 + $0x18] sm:$0xff]
        %v2124 = vld [vmem:[%s2119 + $0x20] sm:$0xff]
        %v2125 = vld [vmem:[%s2119 + $0x28] sm:$0xff]
        %v2126 = vld [vmem:[%s2119 + $0x30] sm:$0xff]
        %v2127 = vld [vmem:[%s2119 + $0x38] sm:$0xff]
        %v2129 = vsel %vm731, %v2111, 0
        %v2132 = vsel %vm731, %v2112, 0
        %v2135 = vsel %vm731, %v2113, 0
        %v2138 = vsel %vm731, %v2114, 0
        %v2141 = vsel %vm731, %v2115, 0
        %v2144 = vsel %vm731, %v2116, 0
        %v2147 = vsel %vm731, %v2117, 0
        %v2150 = vsel %vm731, %v2118, 0
        %2152 = vmatprep.subr.mxu0 0.0
        %2153 = vmatpush1.msra.mxu0 %v2120
        %2154 = vmatprep.subr.mxu0 0.0
        %2155 = vmatpush1.msra.mxu0 %v2121
        %2156 = vmatprep.subr.mxu0 0.0
        %2157 = vmatpush1.msra.mxu0 %v2122
        %2158 = vmatprep.subr.mxu0 0.0
        %2159 = vmatpush1.msra.mxu0 %v2123
        %2160 = vmatprep.subr.mxu0 0.0
        %2161 = vmatpush1.msra.mxu0 %v2124
        %2162 = vmatprep.subr.mxu0 0.0
        %2163 = vmatpush1.msra.mxu0 %v2125
        %2164 = vmatprep.subr.mxu0 0.0
        %2165 = vmatpush1.msra.mxu0 %v2126
        %2166 = vmatprep.subr.mxu0 0.0
        %2167 = vmatpush1.msra.mxu0 %v2127
        %2168 = vmatprep.subr.mxu0 0.0
        %2169 = vmatpush1.msra.mxu0 0.0
        %2170 = vmatprep.subr.mxu0 0.0
        %2171 = vmatpush1.msra.mxu0 0.0
        %2172 = vmatprep.subr.mxu0 0.0
        %2173 = vmatpush1.msra.mxu0 0.0
        %2174 = vmatprep.subr.mxu0 0.0
        %2175 = vmatpush1.msra.mxu0 0.0
        %2176 = vmatprep.subr.mxu0 0.0
        %2177 = vmatpush1.msra.mxu0 0.0
        %2178 = vmatprep.subr.mxu0 0.0
        %2179 = vmatpush1.msra.mxu0 0.0
        %2180 = vmatprep.subr.mxu0 0.0
        %2181 = vmatpush1.msra.mxu0 0.0
        %2182 = vmatprep.subr.mxu0 0.0
        %2183 = vmatpush1.msra.mxu0 0.0
        %2184 = vmatprep.subr.mxu0 0.0
        %2185 = vmatpush1.msra.mxu0 0.0
        %2186 = vmatprep.subr.mxu0 0.0
        %2187 = vmatpush1.msra.mxu0 0.0
        %2188 = vmatprep.subr.mxu0 0.0
        %2189 = vmatpush1.msra.mxu0 0.0
        %2190 = vmatprep.subr.mxu0 0.0
        %2191 = vmatpush1.msra.mxu0 0.0
        %2192 = vmatprep.subr.mxu0 0.0
        %2193 = vmatpush1.msra.mxu0 0.0
        %2194 = vmatprep.subr.mxu0 0.0
        %2195 = vmatpush1.msra.mxu0 0.0
        %2196 = vmatprep.subr.mxu0 0.0
        %2197 = vmatpush1.msra.mxu0 0.0
        %2198 = vmatprep.subr.mxu0 0.0
        %2199 = vmatpush1.msra.mxu0 0.0
        %2200 = vmatprep.subr.mxu0 0.0
        %2201 = vmatpush1.msra.mxu0 0.0
        %2202 = vmatprep.subr.mxu0 0.0
        %2203 = vmatpush1.msra.mxu0 0.0
        %2204 = vmatprep.subr.mxu0 0.0
        %2205 = vmatpush1.msra.mxu0 0.0
        %2206 = vmatprep.subr.mxu0 0.0
        %2207 = vmatpush1.msra.mxu0 0.0
        %2208 = vmatprep.subr.mxu0 0.0
        %2209 = vmatpush1.msra.mxu0 0.0
        %2210 = vmatprep.subr.mxu0 0.0
        %2211 = vmatpush1.msra.mxu0 0.0
        %2212 = vmatprep.subr.mxu0 0.0
        %2213 = vmatpush1.msra.mxu0 0.0
        %2214 = vmatprep.subr.mxu0 0.0
        %2215 = vmatpush1.msra.mxu0 0.0
        %2216 = vmatprep.mubr.f32.mxu0 0.0
        %2217 = vmatmul.mubr.f32.gmra.mrb[0].mxu0 %v2129
        %v2218 = vpop.f32.mrb[0].mxu0
        %v2219 = vadd.f32 0.0, %v2218
        %v2220 = vpop.f32.mrb[0].mxu0
        %2221 = vmatprep.mubr.f32.mxu0 0.0
        %2222 = vmatmul.mubr.f32.gmra.mrb[0].mxu0 %v2132
        %v2223 = vpop.f32.mrb[0].mxu0
        %v2224 = vadd.f32 0.0, %v2223
        %v2225 = vpop.f32.mrb[0].mxu0
        %2226 = vmatprep.mubr.f32.mxu0 0.0
        %2227 = vmatmul.mubr.f32.gmra.mrb[0].mxu0 %v2135
        %v2228 = vpop.f32.mrb[0].mxu0
        %v2229 = vadd.f32 0.0, %v2228
        %v2230 = vpop.f32.mrb[0].mxu0
        %2231 = vmatprep.mubr.f32.mxu0 0.0
        %2232 = vmatmul.mubr.f32.gmra.mrb[0].mxu0 %v2138
        %v2233 = vpop.f32.mrb[0].mxu0
        %v2234 = vadd.f32 0.0, %v2233
        %v2235 = vpop.f32.mrb[0].mxu0
        %2236 = vmatprep.mubr.f32.mxu0 0.0
        %2237 = vmatmul.mubr.f32.gmra.mrb[0].mxu0 %v2141
        %v2238 = vpop.f32.mrb[0].mxu0
        %v2239 = vadd.f32 0.0, %v2238
        %v2240 = vpop.f32.mrb[0].mxu0
        %2241 = vmatprep.mubr.f32.mxu0 0.0
        %2242 = vmatmul.mubr.f32.gmra.mrb[0].mxu0 %v2144
        %v2243 = vpop.f32.mrb[0].mxu0
        %v2244 = vadd.f32 0.0, %v2243
        %v2245 = vpop.f32.mrb[0].mxu0
        %2246 = vmatprep.mubr.f32.mxu0 0.0
        %2247 = vmatmul.mubr.f32.gmra.mrb[0].mxu0 %v2147
        %v2248 = vpop.f32.mrb[0].mxu0
        %v2249 = vadd.f32 0.0, %v2248
        %v2250 = vpop.f32.mrb[0].mxu0
        %2251 = vmatprep.mubr.f32.mxu0 0.0
        %2252 = vmatmul.mubr.f32.gmra.mrb[0].mxu0 %v2150
        %v2253 = vpop.f32.mrb[0].mxu0
        %v2254 = vadd.f32 0.0, %v2253
        %v2255 = vpop.f32.mrb[0].mxu0
        %2256 = vdwg.mxu0
        %v2257 = vadd.f32 %v2103, %v2219
        %v2258 = vadd.f32 %v2104, %v2224
        %v2259 = vadd.f32 %v2105, %v2229
        %v2260 = vadd.f32 %v2106, %v2234
        %v2261 = vadd.f32 %v2107, %v2239
        %v2262 = vadd.f32 %v2108, %v2244
        %v2263 = vadd.f32 %v2109, %v2249
        %v2264 = vadd.f32 %v2110, %v2254
        %v2265 = vld [vmem:[#allocation2 + $0xb] sm:$0xff]
        %v2266 = vld [vmem:[#allocation2 + $0x13] sm:$0xff]
        %v2267 = vld [vmem:[#allocation2 + $0x1b] sm:$0xff]
        %v2268 = vld [vmem:[#allocation2 + $0x23] sm:$0xff]
        %v2269 = vld [vmem:[#allocation2 + $0x2b] sm:$0xff]
        %v2270 = vld [vmem:[#allocation2 + $0x33] sm:$0xff]
        %v2271 = vld [vmem:[#allocation2 + $0x3b] sm:$0xff]
        %v2272 = vld [vmem:[#allocation2 + $0x43] sm:$0xff]
        %s2273 = scalar_lea.vmem %s5, 640
        %v2274 = vld [vmem:[%s2273] sm:$0xff]
        %v2275 = vld [vmem:[%s2273 + $0x8] sm:$0xff]
        %v2276 = vld [vmem:[%s2273 + $0x10] sm:$0xff]
        %v2277 = vld [vmem:[%s2273 + $0x18] sm:$0xff]
        %v2278 = vld [vmem:[%s2273 + $0x20] sm:$0xff]
        %v2279 = vld [vmem:[%s2273 + $0x28] sm:$0xff]
        %v2280 = vld [vmem:[%s2273 + $0x30] sm:$0xff]
        %v2281 = vld [vmem:[%s2273 + $0x38] sm:$0xff]
        %v2283 = vsel %vm731, %v2265, 0
        %v2286 = vsel %vm731, %v2266, 0
        %v2289 = vsel %vm731, %v2267, 0
        %v2292 = vsel %vm731, %v2268, 0
        %v2295 = vsel %vm731, %v2269, 0
        %v2298 = vsel %vm731, %v2270, 0
        %v2301 = vsel %vm731, %v2271, 0
        %v2304 = vsel %vm731, %v2272, 0
        %2306 = vmatprep.subr.mxu0 0.0
        %2307 = vmatpush1.msra.mxu0 %v2274
        %2308 = vmatprep.subr.mxu0 0.0
        %2309 = vmatpush1.msra.mxu0 %v2275
        %2310 = vmatprep.subr.mxu0 0.0
        %2311 = vmatpush1.msra.mxu0 %v2276
        %2312 = vmatprep.subr.mxu0 0.0
        %2313 = vmatpush1.msra.mxu0 %v2277
        %2314 = vmatprep.subr.mxu0 0.0
        %2315 = vmatpush1.msra.mxu0 %v2278
        %2316 = vmatprep.subr.mxu0 0.0
        %2317 = vmatpush1.msra.mxu0 %v2279
        %2318 = vmatprep.subr.mxu0 0.0
        %2319 = vmatpush1.msra.mxu0 %v2280
        %2320 = vmatprep.subr.mxu0 0.0
        %2321 = vmatpush1.msra.mxu0 %v2281
        %2322 = vmatprep.subr.mxu0 0.0
        %2323 = vmatpush1.msra.mxu0 0.0
        %2324 = vmatprep.subr.mxu0 0.0
        %2325 = vmatpush1.msra.mxu0 0.0
        %2326 = vmatprep.subr.mxu0 0.0
        %2327 = vmatpush1.msra.mxu0 0.0
        %2328 = vmatprep.subr.mxu0 0.0
        %2329 = vmatpush1.msra.mxu0 0.0
        %2330 = vmatprep.subr.mxu0 0.0
        %2331 = vmatpush1.msra.mxu0 0.0
        %2332 = vmatprep.subr.mxu0 0.0
        %2333 = vmatpush1.msra.mxu0 0.0
        %2334 = vmatprep.subr.mxu0 0.0
        %2335 = vmatpush1.msra.mxu0 0.0
        %2336 = vmatprep.subr.mxu0 0.0
        %2337 = vmatpush1.msra.mxu0 0.0
        %2338 = vmatprep.subr.mxu0 0.0
        %2339 = vmatpush1.msra.mxu0 0.0
        %2340 = vmatprep.subr.mxu0 0.0
        %2341 = vmatpush1.msra.mxu0 0.0
        %2342 = vmatprep.subr.mxu0 0.0
        %2343 = vmatpush1.msra.mxu0 0.0
        %2344 = vmatprep.subr.mxu0 0.0
        %2345 = vmatpush1.msra.mxu0 0.0
        %2346 = vmatprep.subr.mxu0 0.0
        %2347 = vmatpush1.msra.mxu0 0.0
        %2348 = vmatprep.subr.mxu0 0.0
        %2349 = vmatpush1.msra.mxu0 0.0
        %2350 = vmatprep.subr.mxu0 0.0
        %2351 = vmatpush1.msra.mxu0 0.0
        %2352 = vmatprep.subr.mxu0 0.0
        %2353 = vmatpush1.msra.mxu0 0.0
        %2354 = vmatprep.subr.mxu0 0.0
        %2355 = vmatpush1.msra.mxu0 0.0
        %2356 = vmatprep.subr.mxu0 0.0
        %2357 = vmatpush1.msra.mxu0 0.0
        %2358 = vmatprep.subr.mxu0 0.0
        %2359 = vmatpush1.msra.mxu0 0.0
        %2360 = vmatprep.subr.mxu0 0.0
        %2361 = vmatpush1.msra.mxu0 0.0
        %2362 = vmatprep.subr.mxu0 0.0
        %2363 = vmatpush1.msra.mxu0 0.0
        %2364 = vmatprep.subr.mxu0 0.0
        %2365 = vmatpush1.msra.mxu0 0.0
        %2366 = vmatprep.subr.mxu0 0.0
        %2367 = vmatpush1.msra.mxu0 0.0
        %2368 = vmatprep.subr.mxu0 0.0
        %2369 = vmatpush1.msra.mxu0 0.0
        %2370 = vmatprep.mubr.f32.mxu0 0.0
        %2371 = vmatmul.mubr.f32.gmra.mrb[0].mxu0 %v2283
        %v2372 = vpop.f32.mrb[0].mxu0
        %v2373 = vadd.f32 0.0, %v2372
        %v2374 = vpop.f32.mrb[0].mxu0
        %2375 = vmatprep.mubr.f32.mxu0 0.0
        %2376 = vmatmul.mubr.f32.gmra.mrb[0].mxu0 %v2286
        %v2377 = vpop.f32.mrb[0].mxu0
        %v2378 = vadd.f32 0.0, %v2377
        %v2379 = vpop.f32.mrb[0].mxu0
        %2380 = vmatprep.mubr.f32.mxu0 0.0
        %2381 = vmatmul.mubr.f32.gmra.mrb[0].mxu0 %v2289
        %v2382 = vpop.f32.mrb[0].mxu0
        %v2383 = vadd.f32 0.0, %v2382
        %v2384 = vpop.f32.mrb[0].mxu0
        %2385 = vmatprep.mubr.f32.mxu0 0.0
        %2386 = vmatmul.mubr.f32.gmra.mrb[0].mxu0 %v2292
        %v2387 = vpop.f32.mrb[0].mxu0
        %v2388 = vadd.f32 0.0, %v2387
        %v2389 = vpop.f32.mrb[0].mxu0
        %2390 = vmatprep.mubr.f32.mxu0 0.0
        %2391 = vmatmul.mubr.f32.gmra.mrb[0].mxu0 %v2295
        %v2392 = vpop.f32.mrb[0].mxu0
        %v2393 = vadd.f32 0.0, %v2392
        %v2394 = vpop.f32.mrb[0].mxu0
        %2395 = vmatprep.mubr.f32.mxu0 0.0
        %2396 = vmatmul.mubr.f32.gmra.mrb[0].mxu0 %v2298
        %v2397 = vpop.f32.mrb[0].mxu0
        %v2398 = vadd.f32 0.0, %v2397
        %v2399 = vpop.f32.mrb[0].mxu0
        %2400 = vmatprep.mubr.f32.mxu0 0.0
        %2401 = vmatmul.mubr.f32.gmra.mrb[0].mxu0 %v2301
        %v2402 = vpop.f32.mrb[0].mxu0
        %v2403 = vadd.f32 0.0, %v2402
        %v2404 = vpop.f32.mrb[0].mxu0
        %2405 = vmatprep.mubr.f32.mxu0 0.0
        %2406 = vmatmul.mubr.f32.gmra.mrb[0].mxu0 %v2304
        %v2407 = vpop.f32.mrb[0].mxu0
        %v2408 = vadd.f32 0.0, %v2407
        %v2409 = vpop.f32.mrb[0].mxu0
        %2410 = vdwg.mxu0
        %v2411 = vadd.f32 %v2257, %v2373
        %v2412 = vadd.f32 %v2258, %v2378
        %v2413 = vadd.f32 %v2259, %v2383
        %v2414 = vadd.f32 %v2260, %v2388
        %v2415 = vadd.f32 %v2261, %v2393
        %v2416 = vadd.f32 %v2262, %v2398
        %v2417 = vadd.f32 %v2263, %v2403
        %v2418 = vadd.f32 %v2264, %v2408
        %v2419 = vld [vmem:[#allocation2 + $0xc] sm:$0xff]
        %v2420 = vld [vmem:[#allocation2 + $0x14] sm:$0xff]
        %v2421 = vld [vmem:[#allocation2 + $0x1c] sm:$0xff]
        %v2422 = vld [vmem:[#allocation2 + $0x24] sm:$0xff]
        %v2423 = vld [vmem:[#allocation2 + $0x2c] sm:$0xff]
        %v2424 = vld [vmem:[#allocation2 + $0x34] sm:$0xff]
        %v2425 = vld [vmem:[#allocation2 + $0x3c] sm:$0xff]
        %v2426 = vld [vmem:[#allocation2 + $0x44] sm:$0xff]
        %s2427 = scalar_lea.vmem %s5, 704
        %v2428 = vld [vmem:[%s2427] sm:$0xff]
        %v2429 = vld [vmem:[%s2427 + $0x8] sm:$0xff]
        %v2430 = vld [vmem:[%s2427 + $0x10] sm:$0xff]
        %v2431 = vld [vmem:[%s2427 + $0x18] sm:$0xff]
        %v2432 = vld [vmem:[%s2427 + $0x20] sm:$0xff]
        %v2433 = vld [vmem:[%s2427 + $0x28] sm:$0xff]
        %v2434 = vld [vmem:[%s2427 + $0x30] sm:$0xff]
        %v2435 = vld [vmem:[%s2427 + $0x38] sm:$0xff]
        %v2437 = vsel %vm731, %v2419, 0
        %v2440 = vsel %vm731, %v2420, 0
        %v2443 = vsel %vm731, %v2421, 0
        %v2446 = vsel %vm731, %v2422, 0
        %v2449 = vsel %vm731, %v2423, 0
        %v2452 = vsel %vm731, %v2424, 0
        %v2455 = vsel %vm731, %v2425, 0
        %v2458 = vsel %vm731, %v2426, 0
        %2460 = vmatprep.subr.mxu0 0.0
        %2461 = vmatpush1.msra.mxu0 %v2428
        %2462 = vmatprep.subr.mxu0 0.0
        %2463 = vmatpush1.msra.mxu0 %v2429
        %2464 = vmatprep.subr.mxu0 0.0
        %2465 = vmatpush1.msra.mxu0 %v2430
        %2466 = vmatprep.subr.mxu0 0.0
        %2467 = vmatpush1.msra.mxu0 %v2431
        %2468 = vmatprep.subr.mxu0 0.0
        %2469 = vmatpush1.msra.mxu0 %v2432
        %2470 = vmatprep.subr.mxu0 0.0
        %2471 = vmatpush1.msra.mxu0 %v2433
        %2472 = vmatprep.subr.mxu0 0.0
        %2473 = vmatpush1.msra.mxu0 %v2434
        %2474 = vmatprep.subr.mxu0 0.0
        %2475 = vmatpush1.msra.mxu0 %v2435
        %2476 = vmatprep.subr.mxu0 0.0
        %2477 = vmatpush1.msra.mxu0 0.0
        %2478 = vmatprep.subr.mxu0 0.0
        %2479 = vmatpush1.msra.mxu0 0.0
        %2480 = vmatprep.subr.mxu0 0.0
        %2481 = vmatpush1.msra.mxu0 0.0
        %2482 = vmatprep.subr.mxu0 0.0
        %2483 = vmatpush1.msra.mxu0 0.0
        %2484 = vmatprep.subr.mxu0 0.0
        %2485 = vmatpush1.msra.mxu0 0.0
        %2486 = vmatprep.subr.mxu0 0.0
        %2487 = vmatpush1.msra.mxu0 0.0
        %2488 = vmatprep.subr.mxu0 0.0
        %2489 = vmatpush1.msra.mxu0 0.0
        %2490 = vmatprep.subr.mxu0 0.0
        %2491 = vmatpush1.msra.mxu0 0.0
        %2492 = vmatprep.subr.mxu0 0.0
        %2493 = vmatpush1.msra.mxu0 0.0
        %2494 = vmatprep.subr.mxu0 0.0
        %2495 = vmatpush1.msra.mxu0 0.0
        %2496 = vmatprep.subr.mxu0 0.0
        %2497 = vmatpush1.msra.mxu0 0.0
        %2498 = vmatprep.subr.mxu0 0.0
        %2499 = vmatpush1.msra.mxu0 0.0
        %2500 = vmatprep.subr.mxu0 0.0
        %2501 = vmatpush1.msra.mxu0 0.0
        %2502 = vmatprep.subr.mxu0 0.0
        %2503 = vmatpush1.msra.mxu0 0.0
        %2504 = vmatprep.subr.mxu0 0.0
        %2505 = vmatpush1.msra.mxu0 0.0
        %2506 = vmatprep.subr.mxu0 0.0
        %2507 = vmatpush1.msra.mxu0 0.0
        %2508 = vmatprep.subr.mxu0 0.0
        %2509 = vmatpush1.msra.mxu0 0.0
        %2510 = vmatprep.subr.mxu0 0.0
        %2511 = vmatpush1.msra.mxu0 0.0
        %2512 = vmatprep.subr.mxu0 0.0
        %2513 = vmatpush1.msra.mxu0 0.0
        %2514 = vmatprep.subr.mxu0 0.0
        %2515 = vmatpush1.msra.mxu0 0.0
        %2516 = vmatprep.subr.mxu0 0.0
        %2517 = vmatpush1.msra.mxu0 0.0
        %2518 = vmatprep.subr.mxu0 0.0
        %2519 = vmatpush1.msra.mxu0 0.0
        %2520 = vmatprep.subr.mxu0 0.0
        %2521 = vmatpush1.msra.mxu0 0.0
        %2522 = vmatprep.subr.mxu0 0.0
        %2523 = vmatpush1.msra.mxu0 0.0
        %2524 = vmatprep.mubr.f32.mxu0 0.0
        %2525 = vmatmul.mubr.f32.gmra.mrb[0].mxu0 %v2437
        %v2526 = vpop.f32.mrb[0].mxu0
        %v2527 = vadd.f32 0.0, %v2526
        %v2528 = vpop.f32.mrb[0].mxu0
        %2529 = vmatprep.mubr.f32.mxu0 0.0
        %2530 = vmatmul.mubr.f32.gmra.mrb[0].mxu0 %v2440
        %v2531 = vpop.f32.mrb[0].mxu0
        %v2532 = vadd.f32 0.0, %v2531
        %v2533 = vpop.f32.mrb[0].mxu0
        %2534 = vmatprep.mubr.f32.mxu0 0.0
        %2535 = vmatmul.mubr.f32.gmra.mrb[0].mxu0 %v2443
        %v2536 = vpop.f32.mrb[0].mxu0
        %v2537 = vadd.f32 0.0, %v2536
        %v2538 = vpop.f32.mrb[0].mxu0
        %2539 = vmatprep.mubr.f32.mxu0 0.0
        %2540 = vmatmul.mubr.f32.gmra.mrb[0].mxu0 %v2446
        %v2541 = vpop.f32.mrb[0].mxu0
        %v2542 = vadd.f32 0.0, %v2541
        %v2543 = vpop.f32.mrb[0].mxu0
        %2544 = vmatprep.mubr.f32.mxu0 0.0
        %2545 = vmatmul.mubr.f32.gmra.mrb[0].mxu0 %v2449
        %v2546 = vpop.f32.mrb[0].mxu0
        %v2547 = vadd.f32 0.0, %v2546
        %v2548 = vpop.f32.mrb[0].mxu0
        %2549 = vmatprep.mubr.f32.mxu0 0.0
        %2550 = vmatmul.mubr.f32.gmra.mrb[0].mxu0 %v2452
        %v2551 = vpop.f32.mrb[0].mxu0
        %v2552 = vadd.f32 0.0, %v2551
        %v2553 = vpop.f32.mrb[0].mxu0
        %2554 = vmatprep.mubr.f32.mxu0 0.0
        %2555 = vmatmul.mubr.f32.gmra.mrb[0].mxu0 %v2455
        %v2556 = vpop.f32.mrb[0].mxu0
        %v2557 = vadd.f32 0.0, %v2556
        %v2558 = vpop.f32.mrb[0].mxu0
        %2559 = vmatprep.mubr.f32.mxu0 0.0
        %2560 = vmatmul.mubr.f32.gmra.mrb[0].mxu0 %v2458
        %v2561 = vpop.f32.mrb[0].mxu0
        %v2562 = vadd.f32 0.0, %v2561
        %v2563 = vpop.f32.mrb[0].mxu0
        %2564 = vdwg.mxu0
        %v2565 = vadd.f32 %v2411, %v2527
        %v2566 = vadd.f32 %v2412, %v2532
        %v2567 = vadd.f32 %v2413, %v2537
        %v2568 = vadd.f32 %v2414, %v2542
        %v2569 = vadd.f32 %v2415, %v2547
        %v2570 = vadd.f32 %v2416, %v2552
        %v2571 = vadd.f32 %v2417, %v2557
        %v2572 = vadd.f32 %v2418, %v2562
        %v2573 = vld [vmem:[#allocation2 + $0xd] sm:$0xff]
        %v2574 = vld [vmem:[#allocation2 + $0x15] sm:$0xff]
        %v2575 = vld [vmem:[#allocation2 + $0x1d] sm:$0xff]
        %v2576 = vld [vmem:[#allocation2 + $0x25] sm:$0xff]
        %v2577 = vld [vmem:[#allocation2 + $0x2d] sm:$0xff]
        %v2578 = vld [vmem:[#allocation2 + $0x35] sm:$0xff]
        %v2579 = vld [vmem:[#allocation2 + $0x3d] sm:$0xff]
        %v2580 = vld [vmem:[#allocation2 + $0x45] sm:$0xff]
        %s2581 = scalar_lea.vmem %s5, 768
        %v2582 = vld [vmem:[%s2581] sm:$0xff]
        %v2583 = vld [vmem:[%s2581 + $0x8] sm:$0xff]
        %v2584 = vld [vmem:[%s2581 + $0x10] sm:$0xff]
        %v2585 = vld [vmem:[%s2581 + $0x18] sm:$0xff]
        %v2586 = vld [vmem:[%s2581 + $0x20] sm:$0xff]
        %v2587 = vld [vmem:[%s2581 + $0x28] sm:$0xff]
        %v2588 = vld [vmem:[%s2581 + $0x30] sm:$0xff]
        %v2589 = vld [vmem:[%s2581 + $0x38] sm:$0xff]
        %v2591 = vsel %vm731, %v2573, 0
        %v2594 = vsel %vm731, %v2574, 0
        %v2597 = vsel %vm731, %v2575, 0
        %v2600 = vsel %vm731, %v2576, 0
        %v2603 = vsel %vm731, %v2577, 0
        %v2606 = vsel %vm731, %v2578, 0
        %v2609 = vsel %vm731, %v2579, 0
        %v2612 = vsel %vm731, %v2580, 0
        %2614 = vmatprep.subr.mxu0 0.0
        %2615 = vmatpush1.msra.mxu0 %v2582
        %2616 = vmatprep.subr.mxu0 0.0
        %2617 = vmatpush1.msra.mxu0 %v2583
        %2618 = vmatprep.subr.mxu0 0.0
        %2619 = vmatpush1.msra.mxu0 %v2584
        %2620 = vmatprep.subr.mxu0 0.0
        %2621 = vmatpush1.msra.mxu0 %v2585
        %2622 = vmatprep.subr.mxu0 0.0
        %2623 = vmatpush1.msra.mxu0 %v2586
        %2624 = vmatprep.subr.mxu0 0.0
        %2625 = vmatpush1.msra.mxu0 %v2587
        %2626 = vmatprep.subr.mxu0 0.0
        %2627 = vmatpush1.msra.mxu0 %v2588
        %2628 = vmatprep.subr.mxu0 0.0
        %2629 = vmatpush1.msra.mxu0 %v2589
        %2630 = vmatprep.subr.mxu0 0.0
        %2631 = vmatpush1.msra.mxu0 0.0
        %2632 = vmatprep.subr.mxu0 0.0
        %2633 = vmatpush1.msra.mxu0 0.0
        %2634 = vmatprep.subr.mxu0 0.0
        %2635 = vmatpush1.msra.mxu0 0.0
        %2636 = vmatprep.subr.mxu0 0.0
        %2637 = vmatpush1.msra.mxu0 0.0
        %2638 = vmatprep.subr.mxu0 0.0
        %2639 = vmatpush1.msra.mxu0 0.0
        %2640 = vmatprep.subr.mxu0 0.0
        %2641 = vmatpush1.msra.mxu0 0.0
        %2642 = vmatprep.subr.mxu0 0.0
        %2643 = vmatpush1.msra.mxu0 0.0
        %2644 = vmatprep.subr.mxu0 0.0
        %2645 = vmatpush1.msra.mxu0 0.0
        %2646 = vmatprep.subr.mxu0 0.0
        %2647 = vmatpush1.msra.mxu0 0.0
        %2648 = vmatprep.subr.mxu0 0.0
        %2649 = vmatpush1.msra.mxu0 0.0
        %2650 = vmatprep.subr.mxu0 0.0
        %2651 = vmatpush1.msra.mxu0 0.0
        %2652 = vmatprep.subr.mxu0 0.0
        %2653 = vmatpush1.msra.mxu0 0.0
        %2654 = vmatprep.subr.mxu0 0.0
        %2655 = vmatpush1.msra.mxu0 0.0
        %2656 = vmatprep.subr.mxu0 0.0
        %2657 = vmatpush1.msra.mxu0 0.0
        %2658 = vmatprep.subr.mxu0 0.0
        %2659 = vmatpush1.msra.mxu0 0.0
        %2660 = vmatprep.subr.mxu0 0.0
        %2661 = vmatpush1.msra.mxu0 0.0
        %2662 = vmatprep.subr.mxu0 0.0
        %2663 = vmatpush1.msra.mxu0 0.0
        %2664 = vmatprep.subr.mxu0 0.0
        %2665 = vmatpush1.msra.mxu0 0.0
        %2666 = vmatprep.subr.mxu0 0.0
        %2667 = vmatpush1.msra.mxu0 0.0
        %2668 = vmatprep.subr.mxu0 0.0
        %2669 = vmatpush1.msra.mxu0 0.0
        %2670 = vmatprep.subr.mxu0 0.0
        %2671 = vmatpush1.msra.mxu0 0.0
        %2672 = vmatprep.subr.mxu0 0.0
        %2673 = vmatpush1.msra.mxu0 0.0
        %2674 = vmatprep.subr.mxu0 0.0
        %2675 = vmatpush1.msra.mxu0 0.0
        %2676 = vmatprep.subr.mxu0 0.0
        %2677 = vmatpush1.msra.mxu0 0.0
        %2678 = vmatprep.mubr.f32.mxu0 0.0
        %2679 = vmatmul.mubr.f32.gmra.mrb[0].mxu0 %v2591
        %v2680 = vpop.f32.mrb[0].mxu0
        %v2681 = vadd.f32 0.0, %v2680
        %v2682 = vpop.f32.mrb[0].mxu0
        %2683 = vmatprep.mubr.f32.mxu0 0.0
        %2684 = vmatmul.mubr.f32.gmra.mrb[0].mxu0 %v2594
        %v2685 = vpop.f32.mrb[0].mxu0
        %v2686 = vadd.f32 0.0, %v2685
        %v2687 = vpop.f32.mrb[0].mxu0
        %2688 = vmatprep.mubr.f32.mxu0 0.0
        %2689 = vmatmul.mubr.f32.gmra.mrb[0].mxu0 %v2597
        %v2690 = vpop.f32.mrb[0].mxu0
        %v2691 = vadd.f32 0.0, %v2690
        %v2692 = vpop.f32.mrb[0].mxu0
        %2693 = vmatprep.mubr.f32.mxu0 0.0
        %2694 = vmatmul.mubr.f32.gmra.mrb[0].mxu0 %v2600
        %v2695 = vpop.f32.mrb[0].mxu0
        %v2696 = vadd.f32 0.0, %v2695
        %v2697 = vpop.f32.mrb[0].mxu0
        %2698 = vmatprep.mubr.f32.mxu0 0.0
        %2699 = vmatmul.mubr.f32.gmra.mrb[0].mxu0 %v2603
        %v2700 = vpop.f32.mrb[0].mxu0
        %v2701 = vadd.f32 0.0, %v2700
        %v2702 = vpop.f32.mrb[0].mxu0
        %2703 = vmatprep.mubr.f32.mxu0 0.0
        %2704 = vmatmul.mubr.f32.gmra.mrb[0].mxu0 %v2606
        %v2705 = vpop.f32.mrb[0].mxu0
        %v2706 = vadd.f32 0.0, %v2705
        %v2707 = vpop.f32.mrb[0].mxu0
        %2708 = vmatprep.mubr.f32.mxu0 0.0
        %2709 = vmatmul.mubr.f32.gmra.mrb[0].mxu0 %v2609
        %v2710 = vpop.f32.mrb[0].mxu0
        %v2711 = vadd.f32 0.0, %v2710
        %v2712 = vpop.f32.mrb[0].mxu0
        %2713 = vmatprep.mubr.f32.mxu0 0.0
        %2714 = vmatmul.mubr.f32.gmra.mrb[0].mxu0 %v2612
        %v2715 = vpop.f32.mrb[0].mxu0
        %v2716 = vadd.f32 0.0, %v2715
        %v2717 = vpop.f32.mrb[0].mxu0
        %2718 = vdwg.mxu0
        %v2719 = vadd.f32 %v2565, %v2681
        %v2720 = vadd.f32 %v2566, %v2686
        %v2721 = vadd.f32 %v2567, %v2691
        %v2722 = vadd.f32 %v2568, %v2696
        %v2723 = vadd.f32 %v2569, %v2701
        %v2724 = vadd.f32 %v2570, %v2706
        %v2725 = vadd.f32 %v2571, %v2711
        %v2726 = vadd.f32 %v2572, %v2716
        %v2727 = vld [vmem:[#allocation2 + $0xe] sm:$0xff]
        %v2728 = vld [vmem:[#allocation2 + $0x16] sm:$0xff]
        %v2729 = vld [vmem:[#allocation2 + $0x1e] sm:$0xff]
        %v2730 = vld [vmem:[#allocation2 + $0x26] sm:$0xff]
        %v2731 = vld [vmem:[#allocation2 + $0x2e] sm:$0xff]
        %v2732 = vld [vmem:[#allocation2 + $0x36] sm:$0xff]
        %v2733 = vld [vmem:[#allocation2 + $0x3e] sm:$0xff]
        %v2734 = vld [vmem:[#allocation2 + $0x46] sm:$0xff]
        %s2735 = scalar_lea.vmem %s5, 832
        %v2736 = vld [vmem:[%s2735] sm:$0xff]
        %v2737 = vld [vmem:[%s2735 + $0x8] sm:$0xff]
        %v2738 = vld [vmem:[%s2735 + $0x10] sm:$0xff]
        %v2739 = vld [vmem:[%s2735 + $0x18] sm:$0xff]
        %v2740 = vld [vmem:[%s2735 + $0x20] sm:$0xff]
        %v2741 = vld [vmem:[%s2735 + $0x28] sm:$0xff]
        %v2742 = vld [vmem:[%s2735 + $0x30] sm:$0xff]
        %v2743 = vld [vmem:[%s2735 + $0x38] sm:$0xff]
        %v2745 = vsel %vm731, %v2727, 0
        %v2748 = vsel %vm731, %v2728, 0
        %v2751 = vsel %vm731, %v2729, 0
        %v2754 = vsel %vm731, %v2730, 0
        %v2757 = vsel %vm731, %v2731, 0
        %v2760 = vsel %vm731, %v2732, 0
        %v2763 = vsel %vm731, %v2733, 0
        %v2766 = vsel %vm731, %v2734, 0
        %2768 = vmatprep.subr.mxu0 0.0
        %2769 = vmatpush1.msra.mxu0 %v2736
        %2770 = vmatprep.subr.mxu0 0.0
        %2771 = vmatpush1.msra.mxu0 %v2737
        %2772 = vmatprep.subr.mxu0 0.0
        %2773 = vmatpush1.msra.mxu0 %v2738
        %2774 = vmatprep.subr.mxu0 0.0
        %2775 = vmatpush1.msra.mxu0 %v2739
        %2776 = vmatprep.subr.mxu0 0.0
        %2777 = vmatpush1.msra.mxu0 %v2740
        %2778 = vmatprep.subr.mxu0 0.0
        %2779 = vmatpush1.msra.mxu0 %v2741
        %2780 = vmatprep.subr.mxu0 0.0
        %2781 = vmatpush1.msra.mxu0 %v2742
        %2782 = vmatprep.subr.mxu0 0.0
        %2783 = vmatpush1.msra.mxu0 %v2743
        %2784 = vmatprep.subr.mxu0 0.0
        %2785 = vmatpush1.msra.mxu0 0.0
        %2786 = vmatprep.subr.mxu0 0.0
        %2787 = vmatpush1.msra.mxu0 0.0
        %2788 = vmatprep.subr.mxu0 0.0
        %2789 = vmatpush1.msra.mxu0 0.0
        %2790 = vmatprep.subr.mxu0 0.0
        %2791 = vmatpush1.msra.mxu0 0.0
        %2792 = vmatprep.subr.mxu0 0.0
        %2793 = vmatpush1.msra.mxu0 0.0
        %2794 = vmatprep.subr.mxu0 0.0
        %2795 = vmatpush1.msra.mxu0 0.0
        %2796 = vmatprep.subr.mxu0 0.0
        %2797 = vmatpush1.msra.mxu0 0.0
        %2798 = vmatprep.subr.mxu0 0.0
        %2799 = vmatpush1.msra.mxu0 0.0
        %2800 = vmatprep.subr.mxu0 0.0
        %2801 = vmatpush1.msra.mxu0 0.0
        %2802 = vmatprep.subr.mxu0 0.0
        %2803 = vmatpush1.msra.mxu0 0.0
        %2804 = vmatprep.subr.mxu0 0.0
        %2805 = vmatpush1.msra.mxu0 0.0
        %2806 = vmatprep.subr.mxu0 0.0
        %2807 = vmatpush1.msra.mxu0 0.0
        %2808 = vmatprep.subr.mxu0 0.0
        %2809 = vmatpush1.msra.mxu0 0.0
        %2810 = vmatprep.subr.mxu0 0.0
        %2811 = vmatpush1.msra.mxu0 0.0
        %2812 = vmatprep.subr.mxu0 0.0
        %2813 = vmatpush1.msra.mxu0 0.0
        %2814 = vmatprep.subr.mxu0 0.0
        %2815 = vmatpush1.msra.mxu0 0.0
        %2816 = vmatprep.subr.mxu0 0.0
        %2817 = vmatpush1.msra.mxu0 0.0
        %2818 = vmatprep.subr.mxu0 0.0
        %2819 = vmatpush1.msra.mxu0 0.0
        %2820 = vmatprep.subr.mxu0 0.0
        %2821 = vmatpush1.msra.mxu0 0.0
        %2822 = vmatprep.subr.mxu0 0.0
        %2823 = vmatpush1.msra.mxu0 0.0
        %2824 = vmatprep.subr.mxu0 0.0
        %2825 = vmatpush1.msra.mxu0 0.0
        %2826 = vmatprep.subr.mxu0 0.0
        %2827 = vmatpush1.msra.mxu0 0.0
        %2828 = vmatprep.subr.mxu0 0.0
        %2829 = vmatpush1.msra.mxu0 0.0
        %2830 = vmatprep.subr.mxu0 0.0
        %2831 = vmatpush1.msra.mxu0 0.0
        %2832 = vmatprep.mubr.f32.mxu0 0.0
        %2833 = vmatmul.mubr.f32.gmra.mrb[0].mxu0 %v2745
        %v2834 = vpop.f32.mrb[0].mxu0
        %v2835 = vadd.f32 0.0, %v2834
        %v2836 = vpop.f32.mrb[0].mxu0
        %2837 = vmatprep.mubr.f32.mxu0 0.0
        %2838 = vmatmul.mubr.f32.gmra.mrb[0].mxu0 %v2748
        %v2839 = vpop.f32.mrb[0].mxu0
        %v2840 = vadd.f32 0.0, %v2839
        %v2841 = vpop.f32.mrb[0].mxu0
        %2842 = vmatprep.mubr.f32.mxu0 0.0
        %2843 = vmatmul.mubr.f32.gmra.mrb[0].mxu0 %v2751
        %v2844 = vpop.f32.mrb[0].mxu0
        %v2845 = vadd.f32 0.0, %v2844
        %v2846 = vpop.f32.mrb[0].mxu0
        %2847 = vmatprep.mubr.f32.mxu0 0.0
        %2848 = vmatmul.mubr.f32.gmra.mrb[0].mxu0 %v2754
        %v2849 = vpop.f32.mrb[0].mxu0
        %v2850 = vadd.f32 0.0, %v2849
        %v2851 = vpop.f32.mrb[0].mxu0
        %2852 = vmatprep.mubr.f32.mxu0 0.0
        %2853 = vmatmul.mubr.f32.gmra.mrb[0].mxu0 %v2757
        %v2854 = vpop.f32.mrb[0].mxu0
        %v2855 = vadd.f32 0.0, %v2854
        %v2856 = vpop.f32.mrb[0].mxu0
        %2857 = vmatprep.mubr.f32.mxu0 0.0
        %2858 = vmatmul.mubr.f32.gmra.mrb[0].mxu0 %v2760
        %v2859 = vpop.f32.mrb[0].mxu0
        %v2860 = vadd.f32 0.0, %v2859
        %v2861 = vpop.f32.mrb[0].mxu0
        %2862 = vmatprep.mubr.f32.mxu0 0.0
        %2863 = vmatmul.mubr.f32.gmra.mrb[0].mxu0 %v2763
        %v2864 = vpop.f32.mrb[0].mxu0
        %v2865 = vadd.f32 0.0, %v2864
        %v2866 = vpop.f32.mrb[0].mxu0
        %2867 = vmatprep.mubr.f32.mxu0 0.0
        %2868 = vmatmul.mubr.f32.gmra.mrb[0].mxu0 %v2766
        %v2869 = vpop.f32.mrb[0].mxu0
        %v2870 = vadd.f32 0.0, %v2869
        %v2871 = vpop.f32.mrb[0].mxu0
        %2872 = vdwg.mxu0
        %v2873 = vadd.f32 %v2719, %v2835
        %v2874 = vadd.f32 %v2720, %v2840
        %v2875 = vadd.f32 %v2721, %v2845
        %v2876 = vadd.f32 %v2722, %v2850
        %v2877 = vadd.f32 %v2723, %v2855
        %v2878 = vadd.f32 %v2724, %v2860
        %v2879 = vadd.f32 %v2725, %v2865
        %v2880 = vadd.f32 %v2726, %v2870
        %v2881 = vld [vmem:[#allocation2 + $0xf] sm:$0xff]
        %v2882 = vld [vmem:[#allocation2 + $0x17] sm:$0xff]
        %v2883 = vld [vmem:[#allocation2 + $0x1f] sm:$0xff]
        %v2884 = vld [vmem:[#allocation2 + $0x27] sm:$0xff]
        %v2885 = vld [vmem:[#allocation2 + $0x2f] sm:$0xff]
        %v2886 = vld [vmem:[#allocation2 + $0x37] sm:$0xff]
        %v2887 = vld [vmem:[#allocation2 + $0x3f] sm:$0xff]
        %v2888 = vld [vmem:[#allocation2 + $0x47] sm:$0xff]
        %s2889 = scalar_lea.vmem %s5, 896
        %v2890 = vld [vmem:[%s2889] sm:$0xff]
        %v2891 = vld [vmem:[%s2889 + $0x8] sm:$0xff]
        %v2892 = vld [vmem:[%s2889 + $0x10] sm:$0xff]
        %v2893 = vld [vmem:[%s2889 + $0x18] sm:$0xff]
        %v2894 = vld [vmem:[%s2889 + $0x20] sm:$0xff]
        %v2895 = vld [vmem:[%s2889 + $0x28] sm:$0xff]
        %v2896 = vld [vmem:[%s2889 + $0x30] sm:$0xff]
        %v2897 = vld [vmem:[%s2889 + $0x38] sm:$0xff]
        %v2899 = vsel %vm731, %v2881, 0
        %v2902 = vsel %vm731, %v2882, 0
        %v2905 = vsel %vm731, %v2883, 0
        %v2908 = vsel %vm731, %v2884, 0
        %v2911 = vsel %vm731, %v2885, 0
        %v2914 = vsel %vm731, %v2886, 0
        %v2917 = vsel %vm731, %v2887, 0
        %v2920 = vsel %vm731, %v2888, 0
        %2922 = vmatprep.subr.mxu0 0.0
        %2923 = vmatpush1.msra.mxu0 %v2890
        %2924 = vmatprep.subr.mxu0 0.0
        %2925 = vmatpush1.msra.mxu0 %v2891
        %2926 = vmatprep.subr.mxu0 0.0
        %2927 = vmatpush1.msra.mxu0 %v2892
        %2928 = vmatprep.subr.mxu0 0.0
        %2929 = vmatpush1.msra.mxu0 %v2893
        %2930 = vmatprep.subr.mxu0 0.0
        %2931 = vmatpush1.msra.mxu0 %v2894
        %2932 = vmatprep.subr.mxu0 0.0
        %2933 = vmatpush1.msra.mxu0 %v2895
        %2934 = vmatprep.subr.mxu0 0.0
        %2935 = vmatpush1.msra.mxu0 %v2896
        %2936 = vmatprep.subr.mxu0 0.0
        %2937 = vmatpush1.msra.mxu0 %v2897
        %2938 = vmatprep.subr.mxu0 0.0
        %2939 = vmatpush1.msra.mxu0 0.0
        %2940 = vmatprep.subr.mxu0 0.0
        %2941 = vmatpush1.msra.mxu0 0.0
        %2942 = vmatprep.subr.mxu0 0.0
        %2943 = vmatpush1.msra.mxu0 0.0
        %2944 = vmatprep.subr.mxu0 0.0
        %2945 = vmatpush1.msra.mxu0 0.0
        %2946 = vmatprep.subr.mxu0 0.0
        %2947 = vmatpush1.msra.mxu0 0.0
        %2948 = vmatprep.subr.mxu0 0.0
        %2949 = vmatpush1.msra.mxu0 0.0
        %2950 = vmatprep.subr.mxu0 0.0
        %2951 = vmatpush1.msra.mxu0 0.0
        %2952 = vmatprep.subr.mxu0 0.0
        %2953 = vmatpush1.msra.mxu0 0.0
        %2954 = vmatprep.subr.mxu0 0.0
        %2955 = vmatpush1.msra.mxu0 0.0
        %2956 = vmatprep.subr.mxu0 0.0
        %2957 = vmatpush1.msra.mxu0 0.0
        %2958 = vmatprep.subr.mxu0 0.0
        %2959 = vmatpush1.msra.mxu0 0.0
        %2960 = vmatprep.subr.mxu0 0.0
        %2961 = vmatpush1.msra.mxu0 0.0
        %2962 = vmatprep.subr.mxu0 0.0
        %2963 = vmatpush1.msra.mxu0 0.0
        %2964 = vmatprep.subr.mxu0 0.0
        %2965 = vmatpush1.msra.mxu0 0.0
        %2966 = vmatprep.subr.mxu0 0.0
        %2967 = vmatpush1.msra.mxu0 0.0
        %2968 = vmatprep.subr.mxu0 0.0
        %2969 = vmatpush1.msra.mxu0 0.0
        %2970 = vmatprep.subr.mxu0 0.0
        %2971 = vmatpush1.msra.mxu0 0.0
        %2972 = vmatprep.subr.mxu0 0.0
        %2973 = vmatpush1.msra.mxu0 0.0
        %2974 = vmatprep.subr.mxu0 0.0
        %2975 = vmatpush1.msra.mxu0 0.0
        %2976 = vmatprep.subr.mxu0 0.0
        %2977 = vmatpush1.msra.mxu0 0.0
        %2978 = vmatprep.subr.mxu0 0.0
        %2979 = vmatpush1.msra.mxu0 0.0
        %2980 = vmatprep.subr.mxu0 0.0
        %2981 = vmatpush1.msra.mxu0 0.0
        %2982 = vmatprep.subr.mxu0 0.0
        %2983 = vmatpush1.msra.mxu0 0.0
        %2984 = vmatprep.subr.mxu0 0.0
        %2985 = vmatpush1.msra.mxu0 0.0
        %2986 = vmatprep.mubr.f32.mxu0 0.0
        %2987 = vmatmul.mubr.f32.gmra.mrb[0].mxu0 %v2899
        %v2988 = vpop.f32.mrb[0].mxu0
        %v2989 = vadd.f32 0.0, %v2988
        %v2990 = vpop.f32.mrb[0].mxu0
        %2991 = vmatprep.mubr.f32.mxu0 0.0
        %2992 = vmatmul.mubr.f32.gmra.mrb[0].mxu0 %v2902
        %v2993 = vpop.f32.mrb[0].mxu0
        %v2994 = vadd.f32 0.0, %v2993
        %v2995 = vpop.f32.mrb[0].mxu0
        %2996 = vmatprep.mubr.f32.mxu0 0.0
        %2997 = vmatmul.mubr.f32.gmra.mrb[0].mxu0 %v2905
        %v2998 = vpop.f32.mrb[0].mxu0
        %v2999 = vadd.f32 0.0, %v2998
        %v3000 = vpop.f32.mrb[0].mxu0
        %3001 = vmatprep.mubr.f32.mxu0 0.0
        %3002 = vmatmul.mubr.f32.gmra.mrb[0].mxu0 %v2908
        %v3003 = vpop.f32.mrb[0].mxu0
        %v3004 = vadd.f32 0.0, %v3003
        %v3005 = vpop.f32.mrb[0].mxu0
        %3006 = vmatprep.mubr.f32.mxu0 0.0
        %3007 = vmatmul.mubr.f32.gmra.mrb[0].mxu0 %v2911
        %v3008 = vpop.f32.mrb[0].mxu0
        %v3009 = vadd.f32 0.0, %v3008
        %v3010 = vpop.f32.mrb[0].mxu0
        %3011 = vmatprep.mubr.f32.mxu0 0.0
        %3012 = vmatmul.mubr.f32.gmra.mrb[0].mxu0 %v2914
        %v3013 = vpop.f32.mrb[0].mxu0
        %v3014 = vadd.f32 0.0, %v3013
        %v3015 = vpop.f32.mrb[0].mxu0
        %3016 = vmatprep.mubr.f32.mxu0 0.0
        %3017 = vmatmul.mubr.f32.gmra.mrb[0].mxu0 %v2917
        %v3018 = vpop.f32.mrb[0].mxu0
        %v3019 = vadd.f32 0.0, %v3018
        %v3020 = vpop.f32.mrb[0].mxu0
        %3021 = vmatprep.mubr.f32.mxu0 0.0
        %3022 = vmatmul.mubr.f32.gmra.mrb[0].mxu0 %v2920
        %v3023 = vpop.f32.mrb[0].mxu0
        %v3024 = vadd.f32 0.0, %v3023
        %v3025 = vpop.f32.mrb[0].mxu0
        %3026 = vdwg.mxu0
        %v3027 = vadd.f32 %v2873, %v2989
        %v3028 = vadd.f32 %v2874, %v2994
        %v3029 = vadd.f32 %v2875, %v2999
        %v3030 = vadd.f32 %v2876, %v3004
        %v3031 = vadd.f32 %v2877, %v3009
        %v3032 = vadd.f32 %v2878, %v3014
        %v3033 = vadd.f32 %v2879, %v3019
        %v3034 = vadd.f32 %v2880, %v3024
        %v3035 = vld [vmem:[%s6] sm:$0x1]
        %v3037 = vlaneseq
        %v3038 = vshrl.u32 %v3037, 7
        %v3039 = vsub.s32 0, %v3038
        %v3040 = vrot.slane %v3035, %v3039
        %v3042 = vadd.f32 %v3027, %v3040
        %v3043 = vadd.f32 %v3028, %v3040
        %v3044 = vadd.f32 %v3029, %v3040
        %v3045 = vadd.f32 %v3030, %v3040
        %v3046 = vadd.f32 %v3031, %v3040
        %v3047 = vadd.f32 %v3032, %v3040
        %v3048 = vadd.f32 %v3033, %v3040
        %v3049 = vadd.f32 %v3034, %v3040
        %v3050 = vmax.f32 %v3042, 0.0
        %v3051 = vmax.f32 %v3043, 0.0
        %v3052 = vmax.f32 %v3044, 0.0
        %v3053 = vmax.f32 %v3045, 0.0
        %v3054 = vmax.f32 %v3046, 0.0
        %v3055 = vmax.f32 %v3047, 0.0
        %v3056 = vmax.f32 %v3048, 0.0
        %v3057 = vmax.f32 %v3049, 0.0
        %v3058 = vadd.f32 %v3050, %v655
        %v3059 = vadd.f32 %v3051, %v660
        %v3060 = vadd.f32 %v3052, %v665
        %v3061 = vadd.f32 %v3053, %v670
        %v3062 = vadd.f32 %v3054, %v675
        %v3063 = vadd.f32 %v3055, %v680
        %v3064 = vadd.f32 %v3056, %v685
        %v3065 = vadd.f32 %v3057, %v690
        %3066 = vst.msk [vmem:[#allocation5] sm:$0xff] %vm731, %v3058
        %3067 = vst.msk [vmem:[#allocation5 + $0x8] sm:$0xff] %vm731, %v3059
        %3068 = vst.msk [vmem:[#allocation5 + $0x10] sm:$0xff] %vm731, %v3060
        %3069 = vst.msk [vmem:[#allocation5 + $0x18] sm:$0xff] %vm731, %v3061
        %3070 = vst.msk [vmem:[#allocation5 + $0x20] sm:$0xff] %vm731, %v3062
        %3071 = vst.msk [vmem:[#allocation5 + $0x28] sm:$0xff] %vm731, %v3063
        %3072 = vst.msk [vmem:[#allocation5 + $0x30] sm:$0xff] %vm731, %v3064
        %3073 = vst.msk [vmem:[#allocation5 + $0x38] sm:$0xff] %vm731, %v3065
        %v3074 = vld [vmem:[#allocation5] ss:$2 sm:$0xff]
        %s3075 = scalar_lea.vmem [#allocation5], 16
        %v3076 = vld [vmem:[%s3075] ss:$2 sm:$0xff]
        %s3077 = scalar_lea.vmem [#allocation5], 32
        %v3078 = vld [vmem:[%s3077] ss:$2 sm:$0xff]
        %s3079 = scalar_lea.vmem [#allocation5], 48
        %v3080 = vld [vmem:[%s3079] ss:$2 sm:$0xff]
        %s3081 = scalar_lea.vmem [#allocation5], 1
        %v3082 = vld [vmem:[%s3081] ss:$2 sm:$0xff]
        %s3083 = scalar_lea.vmem [#allocation5], 17
        %v3084 = vld [vmem:[%s3083] ss:$2 sm:$0xff]
        %s3085 = scalar_lea.vmem [#allocation5], 33
        %v3086 = vld [vmem:[%s3085] ss:$2 sm:$0xff]
        %s3087 = scalar_lea.vmem [#allocation5], 49
        %v3088 = vld [vmem:[%s3087] ss:$2 sm:$0xff]
        %v3089 = vmax.f32 %v3074, %v3082
        %v3090 = vmax.f32 %v3076, %v3084
        %v3091 = vmax.f32 %v3078, %v3086
        %v3092 = vmax.f32 %v3080, %v3088
        %3093 = vst.msk [vmem:[#allocation3] sm:$0xff] %vm731, 0.0
        %3094 = vst.msk [vmem:[#allocation3 + $0x28] sm:$0xff] %vm731, 0.0
        %3095 = vst.msk [vmem:[#allocation3 + $0x8] sm:$0xff] %vm731, %v3089
        %3096 = vst.msk [vmem:[#allocation3 + $0x10] sm:$0xff] %vm731, %v3090
        %3097 = vst.msk [vmem:[#allocation3 + $0x18] sm:$0xff] %vm731, %v3091
        %3098 = vst.msk [vmem:[#allocation3 + $0x20] sm:$0xff] %vm731, %v3092
        %v3099 = vld [vmem:[#allocation3 + $0x4] sm:$0xff]
        %v3100 = vld [vmem:[#allocation3 + $0xc] sm:$0xff]
        %v3101 = vld [vmem:[#allocation3 + $0x14] sm:$0xff]
        %v3102 = vld [vmem:[#allocation3 + $0x1c] sm:$0xff]
        %v3103 = vld [vmem:[%s7] sm:$0xff]
        %v3104 = vld [vmem:[%s7 + $0x8] sm:$0xff]
        %v3105 = vld [vmem:[%s7 + $0x10] sm:$0xff]
        %v3106 = vld [vmem:[%s7 + $0x18] sm:$0xff]
        %v3107 = vld [vmem:[%s7 + $0x20] sm:$0xff]
        %v3108 = vld [vmem:[%s7 + $0x28] sm:$0xff]
        %v3109 = vld [vmem:[%s7 + $0x30] sm:$0xff]
        %v3110 = vld [vmem:[%s7 + $0x38] sm:$0xff]
        %v3111 = vld [vmem:[#allocation3 + $0x5] sm:$0xff]
        %v3112 = vld [vmem:[#allocation3 + $0xd] sm:$0xff]
        %v3113 = vld [vmem:[#allocation3 + $0x15] sm:$0xff]
        %v3114 = vld [vmem:[#allocation3 + $0x1d] sm:$0xff]
        %s3115 = scalar_lea.vmem %s7, 64
        %v3116 = vld [vmem:[%s3115] sm:$0xff]
        %v3117 = vld [vmem:[%s3115 + $0x8] sm:$0xff]
        %v3118 = vld [vmem:[%s3115 + $0x10] sm:$0xff]
        %v3119 = vld [vmem:[%s3115 + $0x18] sm:$0xff]
        %v3120 = vld [vmem:[%s3115 + $0x20] sm:$0xff]
        %v3121 = vld [vmem:[%s3115 + $0x28] sm:$0xff]
        %v3122 = vld [vmem:[%s3115 + $0x30] sm:$0xff]
        %v3123 = vld [vmem:[%s3115 + $0x38] sm:$0xff]
        %v3125 = vsel %vm731, %v3111, 0
        %v3128 = vsel %vm731, %v3112, 0
        %v3131 = vsel %vm731, %v3113, 0
        %v3134 = vsel %vm731, %v3114, 0
        %3136 = vmatprep.subr.mxu0 0.0
        %3137 = vmatpush1.msra.mxu0 %v3116
        %3138 = vmatprep.subr.mxu0 0.0
        %3139 = vmatpush1.msra.mxu0 %v3117
        %3140 = vmatprep.subr.mxu0 0.0
        %3141 = vmatpush1.msra.mxu0 %v3118
        %3142 = vmatprep.subr.mxu0 0.0
        %3143 = vmatpush1.msra.mxu0 %v3119
        %3144 = vmatprep.subr.mxu0 0.0
        %3145 = vmatpush1.msra.mxu0 %v3120
        %3146 = vmatprep.subr.mxu0 0.0
        %3147 = vmatpush1.msra.mxu0 %v3121
        %3148 = vmatprep.subr.mxu0 0.0
        %3149 = vmatpush1.msra.mxu0 %v3122
        %3150 = vmatprep.subr.mxu0 0.0
        %3151 = vmatpush1.msra.mxu0 %v3123
        %3152 = vmatprep.subr.mxu0 0.0
        %3153 = vmatpush1.msra.mxu0 0.0
        %3154 = vmatprep.subr.mxu0 0.0
        %3155 = vmatpush1.msra.mxu0 0.0
        %3156 = vmatprep.subr.mxu0 0.0
        %3157 = vmatpush1.msra.mxu0 0.0
        %3158 = vmatprep.subr.mxu0 0.0
        %3159 = vmatpush1.msra.mxu0 0.0
        %3160 = vmatprep.subr.mxu0 0.0
        %3161 = vmatpush1.msra.mxu0 0.0
        %3162 = vmatprep.subr.mxu0 0.0
        %3163 = vmatpush1.msra.mxu0 0.0
        %3164 = vmatprep.subr.mxu0 0.0
        %3165 = vmatpush1.msra.mxu0 0.0
        %3166 = vmatprep.subr.mxu0 0.0
        %3167 = vmatpush1.msra.mxu0 0.0
        %3168 = vmatprep.subr.mxu0 0.0
        %3169 = vmatpush1.msra.mxu0 0.0
        %3170 = vmatprep.subr.mxu0 0.0
        %3171 = vmatpush1.msra.mxu0 0.0
        %3172 = vmatprep.subr.mxu0 0.0
        %3173 = vmatpush1.msra.mxu0 0.0
        %3174 = vmatprep.subr.mxu0 0.0
        %3175 = vmatpush1.msra.mxu0 0.0
        %3176 = vmatprep.subr.mxu0 0.0
        %3177 = vmatpush1.msra.mxu0 0.0
        %3178 = vmatprep.subr.mxu0 0.0
        %3179 = vmatpush1.msra.mxu0 0.0
        %3180 = vmatprep.subr.mxu0 0.0
        %3181 = vmatpush1.msra.mxu0 0.0
        %3182 = vmatprep.subr.mxu0 0.0
        %3183 = vmatpush1.msra.mxu0 0.0
        %3184 = vmatprep.subr.mxu0 0.0
        %3185 = vmatpush1.msra.mxu0 0.0
        %3186 = vmatprep.subr.mxu0 0.0
        %3187 = vmatpush1.msra.mxu0 0.0
        %3188 = vmatprep.subr.mxu0 0.0
        %3189 = vmatpush1.msra.mxu0 0.0
        %3190 = vmatprep.subr.mxu0 0.0
        %3191 = vmatpush1.msra.mxu0 0.0
        %3192 = vmatprep.subr.mxu0 0.0
        %3193 = vmatpush1.msra.mxu0 0.0
        %3194 = vmatprep.subr.mxu0 0.0
        %3195 = vmatpush1.msra.mxu0 0.0
        %3196 = vmatprep.subr.mxu0 0.0
        %3197 = vmatpush1.msra.mxu0 0.0
        %3198 = vmatprep.subr.mxu0 0.0
        %3199 = vmatpush1.msra.mxu0 0.0
        %3200 = vmatprep.mubr.f32.mxu0 0.0
        %3201 = vmatmul.mubr.f32.gmra.mrb[0].mxu0 %v3125
        %v3202 = vpop.f32.mrb[0].mxu0
        %v3203 = vadd.f32 0.0, %v3202
        %v3204 = vpop.f32.mrb[0].mxu0
        %3205 = vmatprep.mubr.f32.mxu0 0.0
        %3206 = vmatmul.mubr.f32.gmra.mrb[0].mxu0 %v3128
        %v3207 = vpop.f32.mrb[0].mxu0
        %v3208 = vadd.f32 0.0, %v3207
        %v3209 = vpop.f32.mrb[0].mxu0
        %3210 = vmatprep.mubr.f32.mxu0 0.0
        %3211 = vmatmul.mubr.f32.gmra.mrb[0].mxu0 %v3131
        %v3212 = vpop.f32.mrb[0].mxu0
        %v3213 = vadd.f32 0.0, %v3212
        %v3214 = vpop.f32.mrb[0].mxu0
        %3215 = vmatprep.mubr.f32.mxu0 0.0
        %3216 = vmatmul.mubr.f32.gmra.mrb[0].mxu0 %v3134
        %v3217 = vpop.f32.mrb[0].mxu0
        %v3218 = vadd.f32 0.0, %v3217
        %v3219 = vpop.f32.mrb[0].mxu0
        %3220 = vdwg.mxu0
        %v3222 = vsel %vm731, %v3099, 0
        %v3225 = vsel %vm731, %v3100, 0
        %v3228 = vsel %vm731, %v3101, 0
        %v3231 = vsel %vm731, %v3102, 0
        %3233 = vmatprep.subr.mxu0 0.0
        %3234 = vmatpush1.msra.mxu0 %v3103
        %3235 = vmatprep.subr.mxu0 0.0
        %3236 = vmatpush1.msra.mxu0 %v3104
        %3237 = vmatprep.subr.mxu0 0.0
        %3238 = vmatpush1.msra.mxu0 %v3105
        %3239 = vmatprep.subr.mxu0 0.0
        %3240 = vmatpush1.msra.mxu0 %v3106
        %3241 = vmatprep.subr.mxu0 0.0
        %3242 = vmatpush1.msra.mxu0 %v3107
        %3243 = vmatprep.subr.mxu0 0.0
        %3244 = vmatpush1.msra.mxu0 %v3108
        %3245 = vmatprep.subr.mxu0 0.0
        %3246 = vmatpush1.msra.mxu0 %v3109
        %3247 = vmatprep.subr.mxu0 0.0
        %3248 = vmatpush1.msra.mxu0 %v3110
        %3249 = vmatprep.subr.mxu0 0.0
        %3250 = vmatpush1.msra.mxu0 0.0
        %3251 = vmatprep.subr.mxu0 0.0
        %3252 = vmatpush1.msra.mxu0 0.0
        %3253 = vmatprep.subr.mxu0 0.0
        %3254 = vmatpush1.msra.mxu0 0.0
        %3255 = vmatprep.subr.mxu0 0.0
        %3256 = vmatpush1.msra.mxu0 0.0
        %3257 = vmatprep.subr.mxu0 0.0
        %3258 = vmatpush1.msra.mxu0 0.0
        %3259 = vmatprep.subr.mxu0 0.0
        %3260 = vmatpush1.msra.mxu0 0.0
        %3261 = vmatprep.subr.mxu0 0.0
        %3262 = vmatpush1.msra.mxu0 0.0
        %3263 = vmatprep.subr.mxu0 0.0
        %3264 = vmatpush1.msra.mxu0 0.0
        %3265 = vmatprep.subr.mxu0 0.0
        %3266 = vmatpush1.msra.mxu0 0.0
        %3267 = vmatprep.subr.mxu0 0.0
        %3268 = vmatpush1.msra.mxu0 0.0
        %3269 = vmatprep.subr.mxu0 0.0
        %3270 = vmatpush1.msra.mxu0 0.0
        %3271 = vmatprep.subr.mxu0 0.0
        %3272 = vmatpush1.msra.mxu0 0.0
        %3273 = vmatprep.subr.mxu0 0.0
        %3274 = vmatpush1.msra.mxu0 0.0
        %3275 = vmatprep.subr.mxu0 0.0
        %3276 = vmatpush1.msra.mxu0 0.0
        %3277 = vmatprep.subr.mxu0 0.0
        %3278 = vmatpush1.msra.mxu0 0.0
        %3279 = vmatprep.subr.mxu0 0.0
        %3280 = vmatpush1.msra.mxu0 0.0
        %3281 = vmatprep.subr.mxu0 0.0
        %3282 = vmatpush1.msra.mxu0 0.0
        %3283 = vmatprep.subr.mxu0 0.0
        %3284 = vmatpush1.msra.mxu0 0.0
        %3285 = vmatprep.subr.mxu0 0.0
        %3286 = vmatpush1.msra.mxu0 0.0
        %3287 = vmatprep.subr.mxu0 0.0
        %3288 = vmatpush1.msra.mxu0 0.0
        %3289 = vmatprep.subr.mxu0 0.0
        %3290 = vmatpush1.msra.mxu0 0.0
        %3291 = vmatprep.subr.mxu0 0.0
        %3292 = vmatpush1.msra.mxu0 0.0
        %3293 = vmatprep.subr.mxu0 0.0
        %3294 = vmatpush1.msra.mxu0 0.0
        %3295 = vmatprep.subr.mxu0 0.0
        %3296 = vmatpush1.msra.mxu0 0.0
        %3297 = vmatprep.mubr.f32.mxu0 0.0
        %3298 = vmatmul.mubr.f32.gmra.mrb[0].mxu0 %v3222
        %v3299 = vpop.f32.mrb[0].mxu0
        %v3300 = vadd.f32 %v3203, %v3299
        %v3301 = vpop.f32.mrb[0].mxu0
        %3302 = vmatprep.mubr.f32.mxu0 0.0
        %3303 = vmatmul.mubr.f32.gmra.mrb[0].mxu0 %v3225
        %v3304 = vpop.f32.mrb[0].mxu0
        %v3305 = vadd.f32 %v3208, %v3304
        %v3306 = vpop.f32.mrb[0].mxu0
        %3307 = vmatprep.mubr.f32.mxu0 0.0
        %3308 = vmatmul.mubr.f32.gmra.mrb[0].mxu0 %v3228
        %v3309 = vpop.f32.mrb[0].mxu0
        %v3310 = vadd.f32 %v3213, %v3309
        %v3311 = vpop.f32.mrb[0].mxu0
        %3312 = vmatprep.mubr.f32.mxu0 0.0
        %3313 = vmatmul.mubr.f32.gmra.mrb[0].mxu0 %v3231
        %v3314 = vpop.f32.mrb[0].mxu0
        %v3315 = vadd.f32 %v3218, %v3314
        %v3316 = vpop.f32.mrb[0].mxu0
        %3317 = vdwg.mxu0
        %v3318 = vld [vmem:[#allocation3 + $0x6] sm:$0xff]
        %v3319 = vld [vmem:[#allocation3 + $0xe] sm:$0xff]
        %v3320 = vld [vmem:[#allocation3 + $0x16] sm:$0xff]
        %v3321 = vld [vmem:[#allocation3 + $0x1e] sm:$0xff]
        %s3322 = scalar_lea.vmem %s7, 128
        %v3323 = vld [vmem:[%s3322] sm:$0xff]
        %v3324 = vld [vmem:[%s3322 + $0x8] sm:$0xff]
        %v3325 = vld [vmem:[%s3322 + $0x10] sm:$0xff]
        %v3326 = vld [vmem:[%s3322 + $0x18] sm:$0xff]
        %v3327 = vld [vmem:[%s3322 + $0x20] sm:$0xff]
        %v3328 = vld [vmem:[%s3322 + $0x28] sm:$0xff]
        %v3329 = vld [vmem:[%s3322 + $0x30] sm:$0xff]
        %v3330 = vld [vmem:[%s3322 + $0x38] sm:$0xff]
        %v3332 = vsel %vm731, %v3318, 0
        %v3335 = vsel %vm731, %v3319, 0
        %v3338 = vsel %vm731, %v3320, 0
        %v3341 = vsel %vm731, %v3321, 0
        %3343 = vmatprep.subr.mxu0 0.0
        %3344 = vmatpush1.msra.mxu0 %v3323
        %3345 = vmatprep.subr.mxu0 0.0
        %3346 = vmatpush1.msra.mxu0 %v3324
        %3347 = vmatprep.subr.mxu0 0.0
        %3348 = vmatpush1.msra.mxu0 %v3325
        %3349 = vmatprep.subr.mxu0 0.0
        %3350 = vmatpush1.msra.mxu0 %v3326
        %3351 = vmatprep.subr.mxu0 0.0
        %3352 = vmatpush1.msra.mxu0 %v3327
        %3353 = vmatprep.subr.mxu0 0.0
        %3354 = vmatpush1.msra.mxu0 %v3328
        %3355 = vmatprep.subr.mxu0 0.0
        %3356 = vmatpush1.msra.mxu0 %v3329
        %3357 = vmatprep.subr.mxu0 0.0
        %3358 = vmatpush1.msra.mxu0 %v3330
        %3359 = vmatprep.subr.mxu0 0.0
        %3360 = vmatpush1.msra.mxu0 0.0
        %3361 = vmatprep.subr.mxu0 0.0
        %3362 = vmatpush1.msra.mxu0 0.0
        %3363 = vmatprep.subr.mxu0 0.0
        %3364 = vmatpush1.msra.mxu0 0.0
        %3365 = vmatprep.subr.mxu0 0.0
        %3366 = vmatpush1.msra.mxu0 0.0
        %3367 = vmatprep.subr.mxu0 0.0
        %3368 = vmatpush1.msra.mxu0 0.0
        %3369 = vmatprep.subr.mxu0 0.0
        %3370 = vmatpush1.msra.mxu0 0.0
        %3371 = vmatprep.subr.mxu0 0.0
        %3372 = vmatpush1.msra.mxu0 0.0
        %3373 = vmatprep.subr.mxu0 0.0
        %3374 = vmatpush1.msra.mxu0 0.0
        %3375 = vmatprep.subr.mxu0 0.0
        %3376 = vmatpush1.msra.mxu0 0.0
        %3377 = vmatprep.subr.mxu0 0.0
        %3378 = vmatpush1.msra.mxu0 0.0
        %3379 = vmatprep.subr.mxu0 0.0
        %3380 = vmatpush1.msra.mxu0 0.0
        %3381 = vmatprep.subr.mxu0 0.0
        %3382 = vmatpush1.msra.mxu0 0.0
        %3383 = vmatprep.subr.mxu0 0.0
        %3384 = vmatpush1.msra.mxu0 0.0
        %3385 = vmatprep.subr.mxu0 0.0
        %3386 = vmatpush1.msra.mxu0 0.0
        %3387 = vmatprep.subr.mxu0 0.0
        %3388 = vmatpush1.msra.mxu0 0.0
        %3389 = vmatprep.subr.mxu0 0.0
        %3390 = vmatpush1.msra.mxu0 0.0
        %3391 = vmatprep.subr.mxu0 0.0
        %3392 = vmatpush1.msra.mxu0 0.0
        %3393 = vmatprep.subr.mxu0 0.0
        %3394 = vmatpush1.msra.mxu0 0.0
        %3395 = vmatprep.subr.mxu0 0.0
        %3396 = vmatpush1.msra.mxu0 0.0
        %3397 = vmatprep.subr.mxu0 0.0
        %3398 = vmatpush1.msra.mxu0 0.0
        %3399 = vmatprep.subr.mxu0 0.0
        %3400 = vmatpush1.msra.mxu0 0.0
        %3401 = vmatprep.subr.mxu0 0.0
        %3402 = vmatpush1.msra.mxu0 0.0
        %3403 = vmatprep.subr.mxu0 0.0
        %3404 = vmatpush1.msra.mxu0 0.0
        %3405 = vmatprep.subr.mxu0 0.0
        %3406 = vmatpush1.msra.mxu0 0.0
        %3407 = vmatprep.mubr.f32.mxu0 0.0
        %3408 = vmatmul.mubr.f32.gmra.mrb[0].mxu0 %v3332
        %v3409 = vpop.f32.mrb[0].mxu0
        %v3410 = vadd.f32 0.0, %v3409
        %v3411 = vpop.f32.mrb[0].mxu0
        %3412 = vmatprep.mubr.f32.mxu0 0.0
        %3413 = vmatmul.mubr.f32.gmra.mrb[0].mxu0 %v3335
        %v3414 = vpop.f32.mrb[0].mxu0
        %v3415 = vadd.f32 0.0, %v3414
        %v3416 = vpop.f32.mrb[0].mxu0
        %3417 = vmatprep.mubr.f32.mxu0 0.0
        %3418 = vmatmul.mubr.f32.gmra.mrb[0].mxu0 %v3338
        %v3419 = vpop.f32.mrb[0].mxu0
        %v3420 = vadd.f32 0.0, %v3419
        %v3421 = vpop.f32.mrb[0].mxu0
        %3422 = vmatprep.mubr.f32.mxu0 0.0
        %3423 = vmatmul.mubr.f32.gmra.mrb[0].mxu0 %v3341
        %v3424 = vpop.f32.mrb[0].mxu0
        %v3425 = vadd.f32 0.0, %v3424
        %v3426 = vpop.f32.mrb[0].mxu0
        %3427 = vdwg.mxu0
        %v3428 = vadd.f32 %v3300, %v3410
        %v3429 = vadd.f32 %v3305, %v3415
        %v3430 = vadd.f32 %v3310, %v3420
        %v3431 = vadd.f32 %v3315, %v3425
        %v3432 = vld [vmem:[#allocation3 + $0x7] sm:$0xff]
        %v3433 = vld [vmem:[#allocation3 + $0xf] sm:$0xff]
        %v3434 = vld [vmem:[#allocation3 + $0x17] sm:$0xff]
        %v3435 = vld [vmem:[#allocation3 + $0x1f] sm:$0xff]
        %s3436 = scalar_lea.vmem %s7, 192
        %v3437 = vld [vmem:[%s3436] sm:$0xff]
        %v3438 = vld [vmem:[%s3436 + $0x8] sm:$0xff]
        %v3439 = vld [vmem:[%s3436 + $0x10] sm:$0xff]
        %v3440 = vld [vmem:[%s3436 + $0x18] sm:$0xff]
        %v3441 = vld [vmem:[%s3436 + $0x20] sm:$0xff]
        %v3442 = vld [vmem:[%s3436 + $0x28] sm:$0xff]
        %v3443 = vld [vmem:[%s3436 + $0x30] sm:$0xff]
        %v3444 = vld [vmem:[%s3436 + $0x38] sm:$0xff]
        %v3446 = vsel %vm731, %v3432, 0
        %v3449 = vsel %vm731, %v3433, 0
        %v3452 = vsel %vm731, %v3434, 0
        %v3455 = vsel %vm731, %v3435, 0
        %3457 = vmatprep.subr.mxu0 0.0
        %3458 = vmatpush1.msra.mxu0 %v3437
        %3459 = vmatprep.subr.mxu0 0.0
        %3460 = vmatpush1.msra.mxu0 %v3438
        %3461 = vmatprep.subr.mxu0 0.0
        %3462 = vmatpush1.msra.mxu0 %v3439
        %3463 = vmatprep.subr.mxu0 0.0
        %3464 = vmatpush1.msra.mxu0 %v3440
        %3465 = vmatprep.subr.mxu0 0.0
        %3466 = vmatpush1.msra.mxu0 %v3441
        %3467 = vmatprep.subr.mxu0 0.0
        %3468 = vmatpush1.msra.mxu0 %v3442
        %3469 = vmatprep.subr.mxu0 0.0
        %3470 = vmatpush1.msra.mxu0 %v3443
        %3471 = vmatprep.subr.mxu0 0.0
        %3472 = vmatpush1.msra.mxu0 %v3444
        %3473 = vmatprep.subr.mxu0 0.0
        %3474 = vmatpush1.msra.mxu0 0.0
        %3475 = vmatprep.subr.mxu0 0.0
        %3476 = vmatpush1.msra.mxu0 0.0
        %3477 = vmatprep.subr.mxu0 0.0
        %3478 = vmatpush1.msra.mxu0 0.0
        %3479 = vmatprep.subr.mxu0 0.0
        %3480 = vmatpush1.msra.mxu0 0.0
        %3481 = vmatprep.subr.mxu0 0.0
        %3482 = vmatpush1.msra.mxu0 0.0
        %3483 = vmatprep.subr.mxu0 0.0
        %3484 = vmatpush1.msra.mxu0 0.0
        %3485 = vmatprep.subr.mxu0 0.0
        %3486 = vmatpush1.msra.mxu0 0.0
        %3487 = vmatprep.subr.mxu0 0.0
        %3488 = vmatpush1.msra.mxu0 0.0
        %3489 = vmatprep.subr.mxu0 0.0
        %3490 = vmatpush1.msra.mxu0 0.0
        %3491 = vmatprep.subr.mxu0 0.0
        %3492 = vmatpush1.msra.mxu0 0.0
        %3493 = vmatprep.subr.mxu0 0.0
        %3494 = vmatpush1.msra.mxu0 0.0
        %3495 = vmatprep.subr.mxu0 0.0
        %3496 = vmatpush1.msra.mxu0 0.0
        %3497 = vmatprep.subr.mxu0 0.0
        %3498 = vmatpush1.msra.mxu0 0.0
        %3499 = vmatprep.subr.mxu0 0.0
        %3500 = vmatpush1.msra.mxu0 0.0
        %3501 = vmatprep.subr.mxu0 0.0
        %3502 = vmatpush1.msra.mxu0 0.0
        %3503 = vmatprep.subr.mxu0 0.0
        %3504 = vmatpush1.msra.mxu0 0.0
        %3505 = vmatprep.subr.mxu0 0.0
        %3506 = vmatpush1.msra.mxu0 0.0
        %3507 = vmatprep.subr.mxu0 0.0
        %3508 = vmatpush1.msra.mxu0 0.0
        %3509 = vmatprep.subr.mxu0 0.0
        %3510 = vmatpush1.msra.mxu0 0.0
        %3511 = vmatprep.subr.mxu0 0.0
        %3512 = vmatpush1.msra.mxu0 0.0
        %3513 = vmatprep.subr.mxu0 0.0
        %3514 = vmatpush1.msra.mxu0 0.0
        %3515 = vmatprep.subr.mxu0 0.0
        %3516 = vmatpush1.msra.mxu0 0.0
        %3517 = vmatprep.subr.mxu0 0.0
        %3518 = vmatpush1.msra.mxu0 0.0
        %3519 = vmatprep.subr.mxu0 0.0
        %3520 = vmatpush1.msra.mxu0 0.0
        %3521 = vmatprep.mubr.f32.mxu0 0.0
        %3522 = vmatmul.mubr.f32.gmra.mrb[0].mxu0 %v3446
        %v3523 = vpop.f32.mrb[0].mxu0
        %v3524 = vadd.f32 0.0, %v3523
        %v3525 = vpop.f32.mrb[0].mxu0
        %3526 = vmatprep.mubr.f32.mxu0 0.0
        %3527 = vmatmul.mubr.f32.gmra.mrb[0].mxu0 %v3449
        %v3528 = vpop.f32.mrb[0].mxu0
        %v3529 = vadd.f32 0.0, %v3528
        %v3530 = vpop.f32.mrb[0].mxu0
        %3531 = vmatprep.mubr.f32.mxu0 0.0
        %3532 = vmatmul.mubr.f32.gmra.mrb[0].mxu0 %v3452
        %v3533 = vpop.f32.mrb[0].mxu0
        %v3534 = vadd.f32 0.0, %v3533
        %v3535 = vpop.f32.mrb[0].mxu0
        %3536 = vmatprep.mubr.f32.mxu0 0.0
        %3537 = vmatmul.mubr.f32.gmra.mrb[0].mxu0 %v3455
        %v3538 = vpop.f32.mrb[0].mxu0
        %v3539 = vadd.f32 0.0, %v3538
        %v3540 = vpop.f32.mrb[0].mxu0
        %3541 = vdwg.mxu0
        %v3542 = vadd.f32 %v3428, %v3524
        %v3543 = vadd.f32 %v3429, %v3529
        %v3544 = vadd.f32 %v3430, %v3534
        %v3545 = vadd.f32 %v3431, %v3539
        %v3546 = vld [vmem:[#allocation3 + $0x8] sm:$0xff]
        %v3547 = vld [vmem:[#allocation3 + $0x10] sm:$0xff]
        %v3548 = vld [vmem:[#allocation3 + $0x18] sm:$0xff]
        %v3549 = vld [vmem:[#allocation3 + $0x20] sm:$0xff]
        %s3550 = scalar_lea.vmem %s7, 256
        %v3551 = vld [vmem:[%s3550] sm:$0xff]
        %v3552 = vld [vmem:[%s3550 + $0x8] sm:$0xff]
        %v3553 = vld [vmem:[%s3550 + $0x10] sm:$0xff]
        %v3554 = vld [vmem:[%s3550 + $0x18] sm:$0xff]
        %v3555 = vld [vmem:[%s3550 + $0x20] sm:$0xff]
        %v3556 = vld [vmem:[%s3550 + $0x28] sm:$0xff]
        %v3557 = vld [vmem:[%s3550 + $0x30] sm:$0xff]
        %v3558 = vld [vmem:[%s3550 + $0x38] sm:$0xff]
        %v3560 = vsel %vm731, %v3546, 0
        %v3563 = vsel %vm731, %v3547, 0
        %v3566 = vsel %vm731, %v3548, 0
        %v3569 = vsel %vm731, %v3549, 0
        %3571 = vmatprep.subr.mxu0 0.0
        %3572 = vmatpush1.msra.mxu0 %v3551
        %3573 = vmatprep.subr.mxu0 0.0
        %3574 = vmatpush1.msra.mxu0 %v3552
        %3575 = vmatprep.subr.mxu0 0.0
        %3576 = vmatpush1.msra.mxu0 %v3553
        %3577 = vmatprep.subr.mxu0 0.0
        %3578 = vmatpush1.msra.mxu0 %v3554
        %3579 = vmatprep.subr.mxu0 0.0
        %3580 = vmatpush1.msra.mxu0 %v3555
        %3581 = vmatprep.subr.mxu0 0.0
        %3582 = vmatpush1.msra.mxu0 %v3556
        %3583 = vmatprep.subr.mxu0 0.0
        %3584 = vmatpush1.msra.mxu0 %v3557
        %3585 = vmatprep.subr.mxu0 0.0
        %3586 = vmatpush1.msra.mxu0 %v3558
        %3587 = vmatprep.subr.mxu0 0.0
        %3588 = vmatpush1.msra.mxu0 0.0
        %3589 = vmatprep.subr.mxu0 0.0
        %3590 = vmatpush1.msra.mxu0 0.0
        %3591 = vmatprep.subr.mxu0 0.0
        %3592 = vmatpush1.msra.mxu0 0.0
        %3593 = vmatprep.subr.mxu0 0.0
        %3594 = vmatpush1.msra.mxu0 0.0
        %3595 = vmatprep.subr.mxu0 0.0
        %3596 = vmatpush1.msra.mxu0 0.0
        %3597 = vmatprep.subr.mxu0 0.0
        %3598 = vmatpush1.msra.mxu0 0.0
        %3599 = vmatprep.subr.mxu0 0.0
        %3600 = vmatpush1.msra.mxu0 0.0
        %3601 = vmatprep.subr.mxu0 0.0
        %3602 = vmatpush1.msra.mxu0 0.0
        %3603 = vmatprep.subr.mxu0 0.0
        %3604 = vmatpush1.msra.mxu0 0.0
        %3605 = vmatprep.subr.mxu0 0.0
        %3606 = vmatpush1.msra.mxu0 0.0
        %3607 = vmatprep.subr.mxu0 0.0
        %3608 = vmatpush1.msra.mxu0 0.0
        %3609 = vmatprep.subr.mxu0 0.0
        %3610 = vmatpush1.msra.mxu0 0.0
        %3611 = vmatprep.subr.mxu0 0.0
        %3612 = vmatpush1.msra.mxu0 0.0
        %3613 = vmatprep.subr.mxu0 0.0
        %3614 = vmatpush1.msra.mxu0 0.0
        %3615 = vmatprep.subr.mxu0 0.0
        %3616 = vmatpush1.msra.mxu0 0.0
        %3617 = vmatprep.subr.mxu0 0.0
        %3618 = vmatpush1.msra.mxu0 0.0
        %3619 = vmatprep.subr.mxu0 0.0
        %3620 = vmatpush1.msra.mxu0 0.0
        %3621 = vmatprep.subr.mxu0 0.0
        %3622 = vmatpush1.msra.mxu0 0.0
        %3623 = vmatprep.subr.mxu0 0.0
        %3624 = vmatpush1.msra.mxu0 0.0
        %3625 = vmatprep.subr.mxu0 0.0
        %3626 = vmatpush1.msra.mxu0 0.0
        %3627 = vmatprep.subr.mxu0 0.0
        %3628 = vmatpush1.msra.mxu0 0.0
        %3629 = vmatprep.subr.mxu0 0.0
        %3630 = vmatpush1.msra.mxu0 0.0
        %3631 = vmatprep.subr.mxu0 0.0
        %3632 = vmatpush1.msra.mxu0 0.0
        %3633 = vmatprep.subr.mxu0 0.0
        %3634 = vmatpush1.msra.mxu0 0.0
        %3635 = vmatprep.mubr.f32.mxu0 0.0
        %3636 = vmatmul.mubr.f32.gmra.mrb[0].mxu0 %v3560
        %v3637 = vpop.f32.mrb[0].mxu0
        %v3638 = vadd.f32 0.0, %v3637
        %v3639 = vpop.f32.mrb[0].mxu0
        %3640 = vmatprep.mubr.f32.mxu0 0.0
        %3641 = vmatmul.mubr.f32.gmra.mrb[0].mxu0 %v3563
        %v3642 = vpop.f32.mrb[0].mxu0
        %v3643 = vadd.f32 0.0, %v3642
        %v3644 = vpop.f32.mrb[0].mxu0
        %3645 = vmatprep.mubr.f32.mxu0 0.0
        %3646 = vmatmul.mubr.f32.gmra.mrb[0].mxu0 %v3566
        %v3647 = vpop.f32.mrb[0].mxu0
        %v3648 = vadd.f32 0.0, %v3647
        %v3649 = vpop.f32.mrb[0].mxu0
        %3650 = vmatprep.mubr.f32.mxu0 0.0
        %3651 = vmatmul.mubr.f32.gmra.mrb[0].mxu0 %v3569
        %v3652 = vpop.f32.mrb[0].mxu0
        %v3653 = vadd.f32 0.0, %v3652
        %v3654 = vpop.f32.mrb[0].mxu0
        %3655 = vdwg.mxu0
        %v3656 = vadd.f32 %v3542, %v3638
        %v3657 = vadd.f32 %v3543, %v3643
        %v3658 = vadd.f32 %v3544, %v3648
        %v3659 = vadd.f32 %v3545, %v3653
        %v3660 = vld [vmem:[#allocation3 + $0x9] sm:$0xff]
        %v3661 = vld [vmem:[#allocation3 + $0x11] sm:$0xff]
        %v3662 = vld [vmem:[#allocation3 + $0x19] sm:$0xff]
        %v3663 = vld [vmem:[#allocation3 + $0x21] sm:$0xff]
        %s3664 = scalar_lea.vmem %s7, 320
        %v3665 = vld [vmem:[%s3664] sm:$0xff]
        %v3666 = vld [vmem:[%s3664 + $0x8] sm:$0xff]
        %v3667 = vld [vmem:[%s3664 + $0x10] sm:$0xff]
        %v3668 = vld [vmem:[%s3664 + $0x18] sm:$0xff]
        %v3669 = vld [vmem:[%s3664 + $0x20] sm:$0xff]
        %v3670 = vld [vmem:[%s3664 + $0x28] sm:$0xff]
        %v3671 = vld [vmem:[%s3664 + $0x30] sm:$0xff]
        %v3672 = vld [vmem:[%s3664 + $0x38] sm:$0xff]
        %v3674 = vsel %vm731, %v3660, 0
        %v3677 = vsel %vm731, %v3661, 0
        %v3680 = vsel %vm731, %v3662, 0
        %v3683 = vsel %vm731, %v3663, 0
        %3685 = vmatprep.subr.mxu0 0.0
        %3686 = vmatpush1.msra.mxu0 %v3665
        %3687 = vmatprep.subr.mxu0 0.0
        %3688 = vmatpush1.msra.mxu0 %v3666
        %3689 = vmatprep.subr.mxu0 0.0
        %3690 = vmatpush1.msra.mxu0 %v3667
        %3691 = vmatprep.subr.mxu0 0.0
        %3692 = vmatpush1.msra.mxu0 %v3668
        %3693 = vmatprep.subr.mxu0 0.0
        %3694 = vmatpush1.msra.mxu0 %v3669
        %3695 = vmatprep.subr.mxu0 0.0
        %3696 = vmatpush1.msra.mxu0 %v3670
        %3697 = vmatprep.subr.mxu0 0.0
        %3698 = vmatpush1.msra.mxu0 %v3671
        %3699 = vmatprep.subr.mxu0 0.0
        %3700 = vmatpush1.msra.mxu0 %v3672
        %3701 = vmatprep.subr.mxu0 0.0
        %3702 = vmatpush1.msra.mxu0 0.0
        %3703 = vmatprep.subr.mxu0 0.0
        %3704 = vmatpush1.msra.mxu0 0.0
        %3705 = vmatprep.subr.mxu0 0.0
        %3706 = vmatpush1.msra.mxu0 0.0
        %3707 = vmatprep.subr.mxu0 0.0
        %3708 = vmatpush1.msra.mxu0 0.0
        %3709 = vmatprep.subr.mxu0 0.0
        %3710 = vmatpush1.msra.mxu0 0.0
        %3711 = vmatprep.subr.mxu0 0.0
        %3712 = vmatpush1.msra.mxu0 0.0
        %3713 = vmatprep.subr.mxu0 0.0
        %3714 = vmatpush1.msra.mxu0 0.0
        %3715 = vmatprep.subr.mxu0 0.0
        %3716 = vmatpush1.msra.mxu0 0.0
        %3717 = vmatprep.subr.mxu0 0.0
        %3718 = vmatpush1.msra.mxu0 0.0
        %3719 = vmatprep.subr.mxu0 0.0
        %3720 = vmatpush1.msra.mxu0 0.0
        %3721 = vmatprep.subr.mxu0 0.0
        %3722 = vmatpush1.msra.mxu0 0.0
        %3723 = vmatprep.subr.mxu0 0.0
        %3724 = vmatpush1.msra.mxu0 0.0
        %3725 = vmatprep.subr.mxu0 0.0
        %3726 = vmatpush1.msra.mxu0 0.0
        %3727 = vmatprep.subr.mxu0 0.0
        %3728 = vmatpush1.msra.mxu0 0.0
        %3729 = vmatprep.subr.mxu0 0.0
        %3730 = vmatpush1.msra.mxu0 0.0
        %3731 = vmatprep.subr.mxu0 0.0
        %3732 = vmatpush1.msra.mxu0 0.0
        %3733 = vmatprep.subr.mxu0 0.0
        %3734 = vmatpush1.msra.mxu0 0.0
        %3735 = vmatprep.subr.mxu0 0.0
        %3736 = vmatpush1.msra.mxu0 0.0
        %3737 = vmatprep.subr.mxu0 0.0
        %3738 = vmatpush1.msra.mxu0 0.0
        %3739 = vmatprep.subr.mxu0 0.0
        %3740 = vmatpush1.msra.mxu0 0.0
        %3741 = vmatprep.subr.mxu0 0.0
        %3742 = vmatpush1.msra.mxu0 0.0
        %3743 = vmatprep.subr.mxu0 0.0
        %3744 = vmatpush1.msra.mxu0 0.0
        %3745 = vmatprep.subr.mxu0 0.0
        %3746 = vmatpush1.msra.mxu0 0.0
        %3747 = vmatprep.subr.mxu0 0.0
        %3748 = vmatpush1.msra.mxu0 0.0
        %3749 = vmatprep.mubr.f32.mxu0 0.0
        %3750 = vmatmul.mubr.f32.gmra.mrb[0].mxu0 %v3674
        %v3751 = vpop.f32.mrb[0].mxu0
        %v3752 = vadd.f32 0.0, %v3751
        %v3753 = vpop.f32.mrb[0].mxu0
        %3754 = vmatprep.mubr.f32.mxu0 0.0
        %3755 = vmatmul.mubr.f32.gmra.mrb[0].mxu0 %v3677
        %v3756 = vpop.f32.mrb[0].mxu0
        %v3757 = vadd.f32 0.0, %v3756
        %v3758 = vpop.f32.mrb[0].mxu0
        %3759 = vmatprep.mubr.f32.mxu0 0.0
        %3760 = vmatmul.mubr.f32.gmra.mrb[0].mxu0 %v3680
        %v3761 = vpop.f32.mrb[0].mxu0
        %v3762 = vadd.f32 0.0, %v3761
        %v3763 = vpop.f32.mrb[0].mxu0
        %3764 = vmatprep.mubr.f32.mxu0 0.0
        %3765 = vmatmul.mubr.f32.gmra.mrb[0].mxu0 %v3683
        %v3766 = vpop.f32.mrb[0].mxu0
        %v3767 = vadd.f32 0.0, %v3766
        %v3768 = vpop.f32.mrb[0].mxu0
        %3769 = vdwg.mxu0
        %v3770 = vadd.f32 %v3656, %v3752
        %v3771 = vadd.f32 %v3657, %v3757
        %v3772 = vadd.f32 %v3658, %v3762
        %v3773 = vadd.f32 %v3659, %v3767
        %v3774 = vld [vmem:[#allocation3 + $0xa] sm:$0xff]
        %v3775 = vld [vmem:[#allocation3 + $0x12] sm:$0xff]
        %v3776 = vld [vmem:[#allocation3 + $0x1a] sm:$0xff]
        %v3777 = vld [vmem:[#allocation3 + $0x22] sm:$0xff]
        %s3778 = scalar_lea.vmem %s7, 384
        %v3779 = vld [vmem:[%s3778] sm:$0xff]
        %v3780 = vld [vmem:[%s3778 + $0x8] sm:$0xff]
        %v3781 = vld [vmem:[%s3778 + $0x10] sm:$0xff]
        %v3782 = vld [vmem:[%s3778 + $0x18] sm:$0xff]
        %v3783 = vld [vmem:[%s3778 + $0x20] sm:$0xff]
        %v3784 = vld [vmem:[%s3778 + $0x28] sm:$0xff]
        %v3785 = vld [vmem:[%s3778 + $0x30] sm:$0xff]
        %v3786 = vld [vmem:[%s3778 + $0x38] sm:$0xff]
        %v3788 = vsel %vm731, %v3774, 0
        %v3791 = vsel %vm731, %v3775, 0
        %v3794 = vsel %vm731, %v3776, 0
        %v3797 = vsel %vm731, %v3777, 0
        %3799 = vmatprep.subr.mxu0 0.0
        %3800 = vmatpush1.msra.mxu0 %v3779
        %3801 = vmatprep.subr.mxu0 0.0
        %3802 = vmatpush1.msra.mxu0 %v3780
        %3803 = vmatprep.subr.mxu0 0.0
        %3804 = vmatpush1.msra.mxu0 %v3781
        %3805 = vmatprep.subr.mxu0 0.0
        %3806 = vmatpush1.msra.mxu0 %v3782
        %3807 = vmatprep.subr.mxu0 0.0
        %3808 = vmatpush1.msra.mxu0 %v3783
        %3809 = vmatprep.subr.mxu0 0.0
        %3810 = vmatpush1.msra.mxu0 %v3784
        %3811 = vmatprep.subr.mxu0 0.0
        %3812 = vmatpush1.msra.mxu0 %v3785
        %3813 = vmatprep.subr.mxu0 0.0
        %3814 = vmatpush1.msra.mxu0 %v3786
        %3815 = vmatprep.subr.mxu0 0.0
        %3816 = vmatpush1.msra.mxu0 0.0
        %3817 = vmatprep.subr.mxu0 0.0
        %3818 = vmatpush1.msra.mxu0 0.0
        %3819 = vmatprep.subr.mxu0 0.0
        %3820 = vmatpush1.msra.mxu0 0.0
        %3821 = vmatprep.subr.mxu0 0.0
        %3822 = vmatpush1.msra.mxu0 0.0
        %3823 = vmatprep.subr.mxu0 0.0
        %3824 = vmatpush1.msra.mxu0 0.0
        %3825 = vmatprep.subr.mxu0 0.0
        %3826 = vmatpush1.msra.mxu0 0.0
        %3827 = vmatprep.subr.mxu0 0.0
        %3828 = vmatpush1.msra.mxu0 0.0
        %3829 = vmatprep.subr.mxu0 0.0
        %3830 = vmatpush1.msra.mxu0 0.0
        %3831 = vmatprep.subr.mxu0 0.0
        %3832 = vmatpush1.msra.mxu0 0.0
        %3833 = vmatprep.subr.mxu0 0.0
        %3834 = vmatpush1.msra.mxu0 0.0
        %3835 = vmatprep.subr.mxu0 0.0
        %3836 = vmatpush1.msra.mxu0 0.0
        %3837 = vmatprep.subr.mxu0 0.0
        %3838 = vmatpush1.msra.mxu0 0.0
        %3839 = vmatprep.subr.mxu0 0.0
        %3840 = vmatpush1.msra.mxu0 0.0
        %3841 = vmatprep.subr.mxu0 0.0
        %3842 = vmatpush1.msra.mxu0 0.0
        %3843 = vmatprep.subr.mxu0 0.0
        %3844 = vmatpush1.msra.mxu0 0.0
        %3845 = vmatprep.subr.mxu0 0.0
        %3846 = vmatpush1.msra.mxu0 0.0
        %3847 = vmatprep.subr.mxu0 0.0
        %3848 = vmatpush1.msra.mxu0 0.0
        %3849 = vmatprep.subr.mxu0 0.0
        %3850 = vmatpush1.msra.mxu0 0.0
        %3851 = vmatprep.subr.mxu0 0.0
        %3852 = vmatpush1.msra.mxu0 0.0
        %3853 = vmatprep.subr.mxu0 0.0
        %3854 = vmatpush1.msra.mxu0 0.0
        %3855 = vmatprep.subr.mxu0 0.0
        %3856 = vmatpush1.msra.mxu0 0.0
        %3857 = vmatprep.subr.mxu0 0.0
        %3858 = vmatpush1.msra.mxu0 0.0
        %3859 = vmatprep.subr.mxu0 0.0
        %3860 = vmatpush1.msra.mxu0 0.0
        %3861 = vmatprep.subr.mxu0 0.0
        %3862 = vmatpush1.msra.mxu0 0.0
        %3863 = vmatprep.mubr.f32.mxu0 0.0
        %3864 = vmatmul.mubr.f32.gmra.mrb[0].mxu0 %v3788
        %v3865 = vpop.f32.mrb[0].mxu0
        %v3866 = vadd.f32 0.0, %v3865
        %v3867 = vpop.f32.mrb[0].mxu0
        %3868 = vmatprep.mubr.f32.mxu0 0.0
        %3869 = vmatmul.mubr.f32.gmra.mrb[0].mxu0 %v3791
        %v3870 = vpop.f32.mrb[0].mxu0
        %v3871 = vadd.f32 0.0, %v3870
        %v3872 = vpop.f32.mrb[0].mxu0
        %3873 = vmatprep.mubr.f32.mxu0 0.0
        %3874 = vmatmul.mubr.f32.gmra.mrb[0].mxu0 %v3794
        %v3875 = vpop.f32.mrb[0].mxu0
        %v3876 = vadd.f32 0.0, %v3875
        %v3877 = vpop.f32.mrb[0].mxu0
        %3878 = vmatprep.mubr.f32.mxu0 0.0
        %3879 = vmatmul.mubr.f32.gmra.mrb[0].mxu0 %v3797
        %v3880 = vpop.f32.mrb[0].mxu0
        %v3881 = vadd.f32 0.0, %v3880
        %v3882 = vpop.f32.mrb[0].mxu0
        %3883 = vdwg.mxu0
        %v3884 = vadd.f32 %v3770, %v3866
        %v3885 = vadd.f32 %v3771, %v3871
        %v3886 = vadd.f32 %v3772, %v3876
        %v3887 = vadd.f32 %v3773, %v3881
        %v3888 = vld [vmem:[#allocation3 + $0xb] sm:$0xff]
        %v3889 = vld [vmem:[#allocation3 + $0x13] sm:$0xff]
        %v3890 = vld [vmem:[#allocation3 + $0x1b] sm:$0xff]
        %v3891 = vld [vmem:[#allocation3 + $0x23] sm:$0xff]
        %s3892 = scalar_lea.vmem %s7, 448
        %v3893 = vld [vmem:[%s3892] sm:$0xff]
        %v3894 = vld [vmem:[%s3892 + $0x8] sm:$0xff]
        %v3895 = vld [vmem:[%s3892 + $0x10] sm:$0xff]
        %v3896 = vld [vmem:[%s3892 + $0x18] sm:$0xff]
        %v3897 = vld [vmem:[%s3892 + $0x20] sm:$0xff]
        %v3898 = vld [vmem:[%s3892 + $0x28] sm:$0xff]
        %v3899 = vld [vmem:[%s3892 + $0x30] sm:$0xff]
        %v3900 = vld [vmem:[%s3892 + $0x38] sm:$0xff]
        %v3902 = vsel %vm731, %v3888, 0
        %v3905 = vsel %vm731, %v3889, 0
        %v3908 = vsel %vm731, %v3890, 0
        %v3911 = vsel %vm731, %v3891, 0
        %3913 = vmatprep.subr.mxu0 0.0
        %3914 = vmatpush1.msra.mxu0 %v3893
        %3915 = vmatprep.subr.mxu0 0.0
        %3916 = vmatpush1.msra.mxu0 %v3894
        %3917 = vmatprep.subr.mxu0 0.0
        %3918 = vmatpush1.msra.mxu0 %v3895
        %3919 = vmatprep.subr.mxu0 0.0
        %3920 = vmatpush1.msra.mxu0 %v3896
        %3921 = vmatprep.subr.mxu0 0.0
        %3922 = vmatpush1.msra.mxu0 %v3897
        %3923 = vmatprep.subr.mxu0 0.0
        %3924 = vmatpush1.msra.mxu0 %v3898
        %3925 = vmatprep.subr.mxu0 0.0
        %3926 = vmatpush1.msra.mxu0 %v3899
        %3927 = vmatprep.subr.mxu0 0.0
        %3928 = vmatpush1.msra.mxu0 %v3900
        %3929 = vmatprep.subr.mxu0 0.0
        %3930 = vmatpush1.msra.mxu0 0.0
        %3931 = vmatprep.subr.mxu0 0.0
        %3932 = vmatpush1.msra.mxu0 0.0
        %3933 = vmatprep.subr.mxu0 0.0
        %3934 = vmatpush1.msra.mxu0 0.0
        %3935 = vmatprep.subr.mxu0 0.0
        %3936 = vmatpush1.msra.mxu0 0.0
        %3937 = vmatprep.subr.mxu0 0.0
        %3938 = vmatpush1.msra.mxu0 0.0
        %3939 = vmatprep.subr.mxu0 0.0
        %3940 = vmatpush1.msra.mxu0 0.0
        %3941 = vmatprep.subr.mxu0 0.0
        %3942 = vmatpush1.msra.mxu0 0.0
        %3943 = vmatprep.subr.mxu0 0.0
        %3944 = vmatpush1.msra.mxu0 0.0
        %3945 = vmatprep.subr.mxu0 0.0
        %3946 = vmatpush1.msra.mxu0 0.0
        %3947 = vmatprep.subr.mxu0 0.0
        %3948 = vmatpush1.msra.mxu0 0.0
        %3949 = vmatprep.subr.mxu0 0.0
        %3950 = vmatpush1.msra.mxu0 0.0
        %3951 = vmatprep.subr.mxu0 0.0
        %3952 = vmatpush1.msra.mxu0 0.0
        %3953 = vmatprep.subr.mxu0 0.0
        %3954 = vmatpush1.msra.mxu0 0.0
        %3955 = vmatprep.subr.mxu0 0.0
        %3956 = vmatpush1.msra.mxu0 0.0
        %3957 = vmatprep.subr.mxu0 0.0
        %3958 = vmatpush1.msra.mxu0 0.0
        %3959 = vmatprep.subr.mxu0 0.0
        %3960 = vmatpush1.msra.mxu0 0.0
        %3961 = vmatprep.subr.mxu0 0.0
        %3962 = vmatpush1.msra.mxu0 0.0
        %3963 = vmatprep.subr.mxu0 0.0
        %3964 = vmatpush1.msra.mxu0 0.0
        %3965 = vmatprep.subr.mxu0 0.0
        %3966 = vmatpush1.msra.mxu0 0.0
        %3967 = vmatprep.subr.mxu0 0.0
        %3968 = vmatpush1.msra.mxu0 0.0
        %3969 = vmatprep.subr.mxu0 0.0
        %3970 = vmatpush1.msra.mxu0 0.0
        %3971 = vmatprep.subr.mxu0 0.0
        %3972 = vmatpush1.msra.mxu0 0.0
        %3973 = vmatprep.subr.mxu0 0.0
        %3974 = vmatpush1.msra.mxu0 0.0
        %3975 = vmatprep.subr.mxu0 0.0
        %3976 = vmatpush1.msra.mxu0 0.0
        %3977 = vmatprep.mubr.f32.mxu0 0.0
        %3978 = vmatmul.mubr.f32.gmra.mrb[0].mxu0 %v3902
        %v3979 = vpop.f32.mrb[0].mxu0
        %v3980 = vadd.f32 0.0, %v3979
        %v3981 = vpop.f32.mrb[0].mxu0
        %3982 = vmatprep.mubr.f32.mxu0 0.0
        %3983 = vmatmul.mubr.f32.gmra.mrb[0].mxu0 %v3905
        %v3984 = vpop.f32.mrb[0].mxu0
        %v3985 = vadd.f32 0.0, %v3984
        %v3986 = vpop.f32.mrb[0].mxu0
        %3987 = vmatprep.mubr.f32.mxu0 0.0
        %3988 = vmatmul.mubr.f32.gmra.mrb[0].mxu0 %v3908
        %v3989 = vpop.f32.mrb[0].mxu0
        %v3990 = vadd.f32 0.0, %v3989
        %v3991 = vpop.f32.mrb[0].mxu0
        %3992 = vmatprep.mubr.f32.mxu0 0.0
        %3993 = vmatmul.mubr.f32.gmra.mrb[0].mxu0 %v3911
        %v3994 = vpop.f32.mrb[0].mxu0
        %v3995 = vadd.f32 0.0, %v3994
        %v3996 = vpop.f32.mrb[0].mxu0
        %3997 = vdwg.mxu0
        %v3998 = vadd.f32 %v3884, %v3980
        %v3999 = vadd.f32 %v3885, %v3985
        %v4000 = vadd.f32 %v3886, %v3990
        %v4001 = vadd.f32 %v3887, %v3995
        %v4002 = vld [vmem:[#allocation3 + $0xc] sm:$0xff]
        %v4003 = vld [vmem:[#allocation3 + $0x14] sm:$0xff]
        %v4004 = vld [vmem:[#allocation3 + $0x1c] sm:$0xff]
        %v4005 = vld [vmem:[#allocation3 + $0x24] sm:$0xff]
        %s4006 = scalar_lea.vmem %s7, 512
        %v4007 = vld [vmem:[%s4006] sm:$0xff]
        %v4008 = vld [vmem:[%s4006 + $0x8] sm:$0xff]
        %v4009 = vld [vmem:[%s4006 + $0x10] sm:$0xff]
        %v4010 = vld [vmem:[%s4006 + $0x18] sm:$0xff]
        %v4011 = vld [vmem:[%s4006 + $0x20] sm:$0xff]
        %v4012 = vld [vmem:[%s4006 + $0x28] sm:$0xff]
        %v4013 = vld [vmem:[%s4006 + $0x30] sm:$0xff]
        %v4014 = vld [vmem:[%s4006 + $0x38] sm:$0xff]
        %v4016 = vsel %vm731, %v4002, 0
        %v4019 = vsel %vm731, %v4003, 0
        %v4022 = vsel %vm731, %v4004, 0
        %v4025 = vsel %vm731, %v4005, 0
        %4027 = vmatprep.subr.mxu0 0.0
        %4028 = vmatpush1.msra.mxu0 %v4007
        %4029 = vmatprep.subr.mxu0 0.0
        %4030 = vmatpush1.msra.mxu0 %v4008
        %4031 = vmatprep.subr.mxu0 0.0
        %4032 = vmatpush1.msra.mxu0 %v4009
        %4033 = vmatprep.subr.mxu0 0.0
        %4034 = vmatpush1.msra.mxu0 %v4010
        %4035 = vmatprep.subr.mxu0 0.0
        %4036 = vmatpush1.msra.mxu0 %v4011
        %4037 = vmatprep.subr.mxu0 0.0
        %4038 = vmatpush1.msra.mxu0 %v4012
        %4039 = vmatprep.subr.mxu0 0.0
        %4040 = vmatpush1.msra.mxu0 %v4013
        %4041 = vmatprep.subr.mxu0 0.0
        %4042 = vmatpush1.msra.mxu0 %v4014
        %4043 = vmatprep.subr.mxu0 0.0
        %4044 = vmatpush1.msra.mxu0 0.0
        %4045 = vmatprep.subr.mxu0 0.0
        %4046 = vmatpush1.msra.mxu0 0.0
        %4047 = vmatprep.subr.mxu0 0.0
        %4048 = vmatpush1.msra.mxu0 0.0
        %4049 = vmatprep.subr.mxu0 0.0
        %4050 = vmatpush1.msra.mxu0 0.0
        %4051 = vmatprep.subr.mxu0 0.0
        %4052 = vmatpush1.msra.mxu0 0.0
        %4053 = vmatprep.subr.mxu0 0.0
        %4054 = vmatpush1.msra.mxu0 0.0
        %4055 = vmatprep.subr.mxu0 0.0
        %4056 = vmatpush1.msra.mxu0 0.0
        %4057 = vmatprep.subr.mxu0 0.0
        %4058 = vmatpush1.msra.mxu0 0.0
        %4059 = vmatprep.subr.mxu0 0.0
        %4060 = vmatpush1.msra.mxu0 0.0
        %4061 = vmatprep.subr.mxu0 0.0
        %4062 = vmatpush1.msra.mxu0 0.0
        %4063 = vmatprep.subr.mxu0 0.0
        %4064 = vmatpush1.msra.mxu0 0.0
        %4065 = vmatprep.subr.mxu0 0.0
        %4066 = vmatpush1.msra.mxu0 0.0
        %4067 = vmatprep.subr.mxu0 0.0
        %4068 = vmatpush1.msra.mxu0 0.0
        %4069 = vmatprep.subr.mxu0 0.0
        %4070 = vmatpush1.msra.mxu0 0.0
        %4071 = vmatprep.subr.mxu0 0.0
        %4072 = vmatpush1.msra.mxu0 0.0
        %4073 = vmatprep.subr.mxu0 0.0
        %4074 = vmatpush1.msra.mxu0 0.0
        %4075 = vmatprep.subr.mxu0 0.0
        %4076 = vmatpush1.msra.mxu0 0.0
        %4077 = vmatprep.subr.mxu0 0.0
        %4078 = vmatpush1.msra.mxu0 0.0
        %4079 = vmatprep.subr.mxu0 0.0
        %4080 = vmatpush1.msra.mxu0 0.0
        %4081 = vmatprep.subr.mxu0 0.0
        %4082 = vmatpush1.msra.mxu0 0.0
        %4083 = vmatprep.subr.mxu0 0.0
        %4084 = vmatpush1.msra.mxu0 0.0
        %4085 = vmatprep.subr.mxu0 0.0
        %4086 = vmatpush1.msra.mxu0 0.0
        %4087 = vmatprep.subr.mxu0 0.0
        %4088 = vmatpush1.msra.mxu0 0.0
        %4089 = vmatprep.subr.mxu0 0.0
        %4090 = vmatpush1.msra.mxu0 0.0
        %4091 = vmatprep.mubr.f32.mxu0 0.0
        %4092 = vmatmul.mubr.f32.gmra.mrb[0].mxu0 %v4016
        %v4093 = vpop.f32.mrb[0].mxu0
        %v4094 = vadd.f32 0.0, %v4093
        %v4095 = vpop.f32.mrb[0].mxu0
        %4096 = vmatprep.mubr.f32.mxu0 0.0
        %4097 = vmatmul.mubr.f32.gmra.mrb[0].mxu0 %v4019
        %v4098 = vpop.f32.mrb[0].mxu0
        %v4099 = vadd.f32 0.0, %v4098
        %v4100 = vpop.f32.mrb[0].mxu0
        %4101 = vmatprep.mubr.f32.mxu0 0.0
        %4102 = vmatmul.mubr.f32.gmra.mrb[0].mxu0 %v4022
        %v4103 = vpop.f32.mrb[0].mxu0
        %v4104 = vadd.f32 0.0, %v4103
        %v4105 = vpop.f32.mrb[0].mxu0
        %4106 = vmatprep.mubr.f32.mxu0 0.0
        %4107 = vmatmul.mubr.f32.gmra.mrb[0].mxu0 %v4025
        %v4108 = vpop.f32.mrb[0].mxu0
        %v4109 = vadd.f32 0.0, %v4108
        %v4110 = vpop.f32.mrb[0].mxu0
        %4111 = vdwg.mxu0
        %v4112 = vadd.f32 %v3998, %v4094
        %v4113 = vadd.f32 %v3999, %v4099
        %v4114 = vadd.f32 %v4000, %v4104
        %v4115 = vadd.f32 %v4001, %v4109
        %v4116 = vld [vmem:[%s8] sm:$0x1]
        %v4118 = vlaneseq
        %v4119 = vshrl.u32 %v4118, 7
        %v4120 = vsub.s32 0, %v4119
        %v4121 = vrot.slane %v4116, %v4120
        %v4123 = vadd.f32 %v4112, %v4121
        %v4124 = vadd.f32 %v4113, %v4121
        %v4125 = vadd.f32 %v4114, %v4121
        %v4126 = vadd.f32 %v4115, %v4121
        %v4127 = vld [vmem:[%s9] sm:$0x1]
        %v4129 = vlaneseq
        %v4130 = vshrl.u32 %v4129, 7
        %v4131 = vsub.s32 0, %v4130
        %v4132 = vrot.slane %v4127, %v4131
        %v4134 = vmul.f32 %v4123, %v4132
        %v4135 = vmul.f32 %v4124, %v4132
        %v4136 = vmul.f32 %v4125, %v4132
        %v4137 = vmul.f32 %v4126, %v4132
        %v4138 = vld [vmem:[%s10] sm:$0x1]
        %v4140 = vlaneseq
        %v4141 = vshrl.u32 %v4140, 7
        %v4142 = vsub.s32 0, %v4141
        %v4143 = vrot.slane %v4138, %v4142
        %v4145 = vadd.f32 %v4134, %v4143
        %v4146 = vadd.f32 %v4135, %v4143
        %v4147 = vadd.f32 %v4136, %v4143
        %v4148 = vadd.f32 %v4137, %v4143
        %v4149 = vmax.f32 %v4145, 0.0
        %v4150 = vmax.f32 %v4146, 0.0
        %v4151 = vmax.f32 %v4147, 0.0
        %v4152 = vmax.f32 %v4148, 0.0
        %4153 = vst [vmem:[#allocation4] sm:$0xff] 0.0
        %4154 = vst [vmem:[#allocation4 + $0x28] sm:$0xff] 0.0
        %4155 = vst [vmem:[#allocation4 + $0x8] sm:$0xff] %v4149
        %4156 = vst [vmem:[#allocation4 + $0x10] sm:$0xff] %v4150
        %4157 = vst [vmem:[#allocation4 + $0x18] sm:$0xff] %v4151
        %4158 = vst [vmem:[#allocation4 + $0x20] sm:$0xff] %v4152
        %v4159 = vld [vmem:[#allocation4 + $0x4] sm:$0xff]
        %v4160 = vld [vmem:[#allocation4 + $0xc] sm:$0xff]
        %v4161 = vld [vmem:[#allocation4 + $0x14] sm:$0xff]
        %v4162 = vld [vmem:[#allocation4 + $0x1c] sm:$0xff]
        %v4163 = vld [vmem:[%s11] sm:$0xff]
        %v4164 = vld [vmem:[%s11 + $0x8] sm:$0xff]
        %v4165 = vld [vmem:[%s11 + $0x10] sm:$0xff]
        %v4166 = vld [vmem:[%s11 + $0x18] sm:$0xff]
        %v4167 = vld [vmem:[%s11 + $0x20] sm:$0xff]
        %v4168 = vld [vmem:[%s11 + $0x28] sm:$0xff]
        %v4169 = vld [vmem:[%s11 + $0x30] sm:$0xff]
        %v4170 = vld [vmem:[%s11 + $0x38] sm:$0xff]
        %v4171 = vld [vmem:[%s11 + $0x40] sm:$0xff]
        %v4172 = vld [vmem:[%s11 + $0x48] sm:$0xff]
        %v4173 = vld [vmem:[%s11 + $0x50] sm:$0xff]
        %v4174 = vld [vmem:[%s11 + $0x58] sm:$0xff]
        %v4175 = vld [vmem:[%s11 + $0x60] sm:$0xff]
        %v4176 = vld [vmem:[%s11 + $0x68] sm:$0xff]
        %v4177 = vld [vmem:[%s11 + $0x70] sm:$0xff]
        %v4178 = vld [vmem:[%s11 + $0x78] sm:$0xff]
        %v4179 = vld [vmem:[#allocation4 + $0x5] sm:$0xff]
        %v4180 = vld [vmem:[#allocation4 + $0xd] sm:$0xff]
        %v4181 = vld [vmem:[#allocation4 + $0x15] sm:$0xff]
        %v4182 = vld [vmem:[#allocation4 + $0x1d] sm:$0xff]
        %s4183 = scalar_lea.vmem %s11, 128
        %v4184 = vld [vmem:[%s4183] sm:$0xff]
        %v4185 = vld [vmem:[%s4183 + $0x8] sm:$0xff]
        %v4186 = vld [vmem:[%s4183 + $0x10] sm:$0xff]
        %v4187 = vld [vmem:[%s4183 + $0x18] sm:$0xff]
        %v4188 = vld [vmem:[%s4183 + $0x20] sm:$0xff]
        %v4189 = vld [vmem:[%s4183 + $0x28] sm:$0xff]
        %v4190 = vld [vmem:[%s4183 + $0x30] sm:$0xff]
        %v4191 = vld [vmem:[%s4183 + $0x38] sm:$0xff]
        %v4192 = vld [vmem:[%s4183 + $0x40] sm:$0xff]
        %v4193 = vld [vmem:[%s4183 + $0x48] sm:$0xff]
        %v4194 = vld [vmem:[%s4183 + $0x50] sm:$0xff]
        %v4195 = vld [vmem:[%s4183 + $0x58] sm:$0xff]
        %v4196 = vld [vmem:[%s4183 + $0x60] sm:$0xff]
        %v4197 = vld [vmem:[%s4183 + $0x68] sm:$0xff]
        %v4198 = vld [vmem:[%s4183 + $0x70] sm:$0xff]
        %v4199 = vld [vmem:[%s4183 + $0x78] sm:$0xff]
        %4200 = vmatprep.subr.mxu0 0.0
        %4201 = vmatpush1.msra.mxu0 %v4184
        %4202 = vmatprep.subr.mxu0 0.0
        %4203 = vmatpush1.msra.mxu0 %v4185
        %4204 = vmatprep.subr.mxu0 0.0
        %4205 = vmatpush1.msra.mxu0 %v4186
        %4206 = vmatprep.subr.mxu0 0.0
        %4207 = vmatpush1.msra.mxu0 %v4187
        %4208 = vmatprep.subr.mxu0 0.0
        %4209 = vmatpush1.msra.mxu0 %v4188
        %4210 = vmatprep.subr.mxu0 0.0
        %4211 = vmatpush1.msra.mxu0 %v4189
        %4212 = vmatprep.subr.mxu0 0.0
        %4213 = vmatpush1.msra.mxu0 %v4190
        %4214 = vmatprep.subr.mxu0 0.0
        %4215 = vmatpush1.msra.mxu0 %v4191
        %4216 = vmatprep.subr.mxu0 0.0
        %4217 = vmatpush1.msra.mxu0 %v4192
        %4218 = vmatprep.subr.mxu0 0.0
        %4219 = vmatpush1.msra.mxu0 %v4193
        %4220 = vmatprep.subr.mxu0 0.0
        %4221 = vmatpush1.msra.mxu0 %v4194
        %4222 = vmatprep.subr.mxu0 0.0
        %4223 = vmatpush1.msra.mxu0 %v4195
        %4224 = vmatprep.subr.mxu0 0.0
        %4225 = vmatpush1.msra.mxu0 %v4196
        %4226 = vmatprep.subr.mxu0 0.0
        %4227 = vmatpush1.msra.mxu0 %v4197
        %4228 = vmatprep.subr.mxu0 0.0
        %4229 = vmatpush1.msra.mxu0 %v4198
        %4230 = vmatprep.subr.mxu0 0.0
        %4231 = vmatpush1.msra.mxu0 %v4199
        %4232 = vmatprep.subr.mxu0 0.0
        %4233 = vmatpush1.msra.mxu0 0.0
        %4234 = vmatprep.subr.mxu0 0.0
        %4235 = vmatpush1.msra.mxu0 0.0
        %4236 = vmatprep.subr.mxu0 0.0
        %4237 = vmatpush1.msra.mxu0 0.0
        %4238 = vmatprep.subr.mxu0 0.0
        %4239 = vmatpush1.msra.mxu0 0.0
        %4240 = vmatprep.subr.mxu0 0.0
        %4241 = vmatpush1.msra.mxu0 0.0
        %4242 = vmatprep.subr.mxu0 0.0
        %4243 = vmatpush1.msra.mxu0 0.0
        %4244 = vmatprep.subr.mxu0 0.0
        %4245 = vmatpush1.msra.mxu0 0.0
        %4246 = vmatprep.subr.mxu0 0.0
        %4247 = vmatpush1.msra.mxu0 0.0
        %4248 = vmatprep.subr.mxu0 0.0
        %4249 = vmatpush1.msra.mxu0 0.0
        %4250 = vmatprep.subr.mxu0 0.0
        %4251 = vmatpush1.msra.mxu0 0.0
        %4252 = vmatprep.subr.mxu0 0.0
        %4253 = vmatpush1.msra.mxu0 0.0
        %4254 = vmatprep.subr.mxu0 0.0
        %4255 = vmatpush1.msra.mxu0 0.0
        %4256 = vmatprep.subr.mxu0 0.0
        %4257 = vmatpush1.msra.mxu0 0.0
        %4258 = vmatprep.subr.mxu0 0.0
        %4259 = vmatpush1.msra.mxu0 0.0
        %4260 = vmatprep.subr.mxu0 0.0
        %4261 = vmatpush1.msra.mxu0 0.0
        %4262 = vmatprep.subr.mxu0 0.0
        %4263 = vmatpush1.msra.mxu0 0.0
        %4264 = vmatprep.mubr.f32.mxu0 0.0
        %4265 = vmatmul.mubr.f32.gmra.mrb[0].mxu0 %v4179
        %v4266 = vpop.f32.mrb[0].mxu0
        %v4267 = vadd.f32 0.0, %v4266
        %v4268 = vpop.f32.mrb[0].mxu0
        %4269 = vmatprep.mubr.f32.mxu0 0.0
        %4270 = vmatmul.mubr.f32.gmra.mrb[0].mxu0 %v4180
        %v4271 = vpop.f32.mrb[0].mxu0
        %v4272 = vadd.f32 0.0, %v4271
        %v4273 = vpop.f32.mrb[0].mxu0
        %4274 = vmatprep.mubr.f32.mxu0 0.0
        %4275 = vmatmul.mubr.f32.gmra.mrb[0].mxu0 %v4181
        %v4276 = vpop.f32.mrb[0].mxu0
        %v4277 = vadd.f32 0.0, %v4276
        %v4278 = vpop.f32.mrb[0].mxu0
        %4279 = vmatprep.mubr.f32.mxu0 0.0
        %4280 = vmatmul.mubr.f32.gmra.mrb[0].mxu0 %v4182
        %v4281 = vpop.f32.mrb[0].mxu0
        %v4282 = vadd.f32 0.0, %v4281
        %v4283 = vpop.f32.mrb[0].mxu0
        %4284 = vdwg.mxu0
        %4285 = vmatprep.subr.mxu0 0.0
        %4286 = vmatpush1.msra.mxu0 %v4163
        %4287 = vmatprep.subr.mxu0 0.0
        %4288 = vmatpush1.msra.mxu0 %v4164
        %4289 = vmatprep.subr.mxu0 0.0
        %4290 = vmatpush1.msra.mxu0 %v4165
        %4291 = vmatprep.subr.mxu0 0.0
        %4292 = vmatpush1.msra.mxu0 %v4166
        %4293 = vmatprep.subr.mxu0 0.0
        %4294 = vmatpush1.msra.mxu0 %v4167
        %4295 = vmatprep.subr.mxu0 0.0
        %4296 = vmatpush1.msra.mxu0 %v4168
        %4297 = vmatprep.subr.mxu0 0.0
        %4298 = vmatpush1.msra.mxu0 %v4169
        %4299 = vmatprep.subr.mxu0 0.0
        %4300 = vmatpush1.msra.mxu0 %v4170
        %4301 = vmatprep.subr.mxu0 0.0
        %4302 = vmatpush1.msra.mxu0 %v4171
        %4303 = vmatprep.subr.mxu0 0.0
        %4304 = vmatpush1.msra.mxu0 %v4172
        %4305 = vmatprep.subr.mxu0 0.0
        %4306 = vmatpush1.msra.mxu0 %v4173
        %4307 = vmatprep.subr.mxu0 0.0
        %4308 = vmatpush1.msra.mxu0 %v4174
        %4309 = vmatprep.subr.mxu0 0.0
        %4310 = vmatpush1.msra.mxu0 %v4175
        %4311 = vmatprep.subr.mxu0 0.0
        %4312 = vmatpush1.msra.mxu0 %v4176
        %4313 = vmatprep.subr.mxu0 0.0
        %4314 = vmatpush1.msra.mxu0 %v4177
        %4315 = vmatprep.subr.mxu0 0.0
        %4316 = vmatpush1.msra.mxu0 %v4178
        %4317 = vmatprep.subr.mxu0 0.0
        %4318 = vmatpush1.msra.mxu0 0.0
        %4319 = vmatprep.subr.mxu0 0.0
        %4320 = vmatpush1.msra.mxu0 0.0
        %4321 = vmatprep.subr.mxu0 0.0
        %4322 = vmatpush1.msra.mxu0 0.0
        %4323 = vmatprep.subr.mxu0 0.0
        %4324 = vmatpush1.msra.mxu0 0.0
        %4325 = vmatprep.subr.mxu0 0.0
        %4326 = vmatpush1.msra.mxu0 0.0
        %4327 = vmatprep.subr.mxu0 0.0
        %4328 = vmatpush1.msra.mxu0 0.0
        %4329 = vmatprep.subr.mxu0 0.0
        %4330 = vmatpush1.msra.mxu0 0.0
        %4331 = vmatprep.subr.mxu0 0.0
        %4332 = vmatpush1.msra.mxu0 0.0
        %4333 = vmatprep.subr.mxu0 0.0
        %4334 = vmatpush1.msra.mxu0 0.0
        %4335 = vmatprep.subr.mxu0 0.0
        %4336 = vmatpush1.msra.mxu0 0.0
        %4337 = vmatprep.subr.mxu0 0.0
        %4338 = vmatpush1.msra.mxu0 0.0
        %4339 = vmatprep.subr.mxu0 0.0
        %4340 = vmatpush1.msra.mxu0 0.0
        %4341 = vmatprep.subr.mxu0 0.0
        %4342 = vmatpush1.msra.mxu0 0.0
        %4343 = vmatprep.subr.mxu0 0.0
        %4344 = vmatpush1.msra.mxu0 0.0
        %4345 = vmatprep.subr.mxu0 0.0
        %4346 = vmatpush1.msra.mxu0 0.0
        %4347 = vmatprep.subr.mxu0 0.0
        %4348 = vmatpush1.msra.mxu0 0.0
        %4349 = vmatprep.mubr.f32.mxu0 0.0
        %4350 = vmatmul.mubr.f32.gmra.mrb[0].mxu0 %v4159
        %v4351 = vpop.f32.mrb[0].mxu0
        %v4352 = vadd.f32 %v4267, %v4351
        %v4353 = vpop.f32.mrb[0].mxu0
        %4354 = vmatprep.mubr.f32.mxu0 0.0
        %4355 = vmatmul.mubr.f32.gmra.mrb[0].mxu0 %v4160
        %v4356 = vpop.f32.mrb[0].mxu0
        %v4357 = vadd.f32 %v4272, %v4356
        %v4358 = vpop.f32.mrb[0].mxu0
        %4359 = vmatprep.mubr.f32.mxu0 0.0
        %4360 = vmatmul.mubr.f32.gmra.mrb[0].mxu0 %v4161
        %v4361 = vpop.f32.mrb[0].mxu0
        %v4362 = vadd.f32 %v4277, %v4361
        %v4363 = vpop.f32.mrb[0].mxu0
        %4364 = vmatprep.mubr.f32.mxu0 0.0
        %4365 = vmatmul.mubr.f32.gmra.mrb[0].mxu0 %v4162
        %v4366 = vpop.f32.mrb[0].mxu0
        %v4367 = vadd.f32 %v4282, %v4366
        %v4368 = vpop.f32.mrb[0].mxu0
        %4369 = vdwg.mxu0
        %v4370 = vld [vmem:[#allocation4 + $0x6] sm:$0xff]
        %v4371 = vld [vmem:[#allocation4 + $0xe] sm:$0xff]
        %v4372 = vld [vmem:[#allocation4 + $0x16] sm:$0xff]
        %v4373 = vld [vmem:[#allocation4 + $0x1e] sm:$0xff]
        %s4374 = scalar_lea.vmem %s11, 256
        %v4375 = vld [vmem:[%s4374] sm:$0xff]
        %v4376 = vld [vmem:[%s4374 + $0x8] sm:$0xff]
        %v4377 = vld [vmem:[%s4374 + $0x10] sm:$0xff]
        %v4378 = vld [vmem:[%s4374 + $0x18] sm:$0xff]
        %v4379 = vld [vmem:[%s4374 + $0x20] sm:$0xff]
        %v4380 = vld [vmem:[%s4374 + $0x28] sm:$0xff]
        %v4381 = vld [vmem:[%s4374 + $0x30] sm:$0xff]
        %v4382 = vld [vmem:[%s4374 + $0x38] sm:$0xff]
        %v4383 = vld [vmem:[%s4374 + $0x40] sm:$0xff]
        %v4384 = vld [vmem:[%s4374 + $0x48] sm:$0xff]
        %v4385 = vld [vmem:[%s4374 + $0x50] sm:$0xff]
        %v4386 = vld [vmem:[%s4374 + $0x58] sm:$0xff]
        %v4387 = vld [vmem:[%s4374 + $0x60] sm:$0xff]
        %v4388 = vld [vmem:[%s4374 + $0x68] sm:$0xff]
        %v4389 = vld [vmem:[%s4374 + $0x70] sm:$0xff]
        %v4390 = vld [vmem:[%s4374 + $0x78] sm:$0xff]
        %4391 = vmatprep.subr.mxu0 0.0
        %4392 = vmatpush1.msra.mxu0 %v4375
        %4393 = vmatprep.subr.mxu0 0.0
        %4394 = vmatpush1.msra.mxu0 %v4376
        %4395 = vmatprep.subr.mxu0 0.0
        %4396 = vmatpush1.msra.mxu0 %v4377
        %4397 = vmatprep.subr.mxu0 0.0
        %4398 = vmatpush1.msra.mxu0 %v4378
        %4399 = vmatprep.subr.mxu0 0.0
        %4400 = vmatpush1.msra.mxu0 %v4379
        %4401 = vmatprep.subr.mxu0 0.0
        %4402 = vmatpush1.msra.mxu0 %v4380
        %4403 = vmatprep.subr.mxu0 0.0
        %4404 = vmatpush1.msra.mxu0 %v4381
        %4405 = vmatprep.subr.mxu0 0.0
        %4406 = vmatpush1.msra.mxu0 %v4382
        %4407 = vmatprep.subr.mxu0 0.0
        %4408 = vmatpush1.msra.mxu0 %v4383
        %4409 = vmatprep.subr.mxu0 0.0
        %4410 = vmatpush1.msra.mxu0 %v4384
        %4411 = vmatprep.subr.mxu0 0.0
        %4412 = vmatpush1.msra.mxu0 %v4385
        %4413 = vmatprep.subr.mxu0 0.0
        %4414 = vmatpush1.msra.mxu0 %v4386
        %4415 = vmatprep.subr.mxu0 0.0
        %4416 = vmatpush1.msra.mxu0 %v4387
        %4417 = vmatprep.subr.mxu0 0.0
        %4418 = vmatpush1.msra.mxu0 %v4388
        %4419 = vmatprep.subr.mxu0 0.0
        %4420 = vmatpush1.msra.mxu0 %v4389
        %4421 = vmatprep.subr.mxu0 0.0
        %4422 = vmatpush1.msra.mxu0 %v4390
        %4423 = vmatprep.subr.mxu0 0.0
        %4424 = vmatpush1.msra.mxu0 0.0
        %4425 = vmatprep.subr.mxu0 0.0
        %4426 = vmatpush1.msra.mxu0 0.0
        %4427 = vmatprep.subr.mxu0 0.0
        %4428 = vmatpush1.msra.mxu0 0.0
        %4429 = vmatprep.subr.mxu0 0.0
        %4430 = vmatpush1.msra.mxu0 0.0
        %4431 = vmatprep.subr.mxu0 0.0
        %4432 = vmatpush1.msra.mxu0 0.0
        %4433 = vmatprep.subr.mxu0 0.0
        %4434 = vmatpush1.msra.mxu0 0.0
        %4435 = vmatprep.subr.mxu0 0.0
        %4436 = vmatpush1.msra.mxu0 0.0
        %4437 = vmatprep.subr.mxu0 0.0
        %4438 = vmatpush1.msra.mxu0 0.0
        %4439 = vmatprep.subr.mxu0 0.0
        %4440 = vmatpush1.msra.mxu0 0.0
        %4441 = vmatprep.subr.mxu0 0.0
        %4442 = vmatpush1.msra.mxu0 0.0
        %4443 = vmatprep.subr.mxu0 0.0
        %4444 = vmatpush1.msra.mxu0 0.0
        %4445 = vmatprep.subr.mxu0 0.0
        %4446 = vmatpush1.msra.mxu0 0.0
        %4447 = vmatprep.subr.mxu0 0.0
        %4448 = vmatpush1.msra.mxu0 0.0
        %4449 = vmatprep.subr.mxu0 0.0
        %4450 = vmatpush1.msra.mxu0 0.0
        %4451 = vmatprep.subr.mxu0 0.0
        %4452 = vmatpush1.msra.mxu0 0.0
        %4453 = vmatprep.subr.mxu0 0.0
        %4454 = vmatpush1.msra.mxu0 0.0
        %4455 = vmatprep.mubr.f32.mxu0 0.0
        %4456 = vmatmul.mubr.f32.gmra.mrb[0].mxu0 %v4370
        %v4457 = vpop.f32.mrb[0].mxu0
        %v4458 = vadd.f32 0.0, %v4457
        %v4459 = vpop.f32.mrb[0].mxu0
        %4460 = vmatprep.mubr.f32.mxu0 0.0
        %4461 = vmatmul.mubr.f32.gmra.mrb[0].mxu0 %v4371
        %v4462 = vpop.f32.mrb[0].mxu0
        %v4463 = vadd.f32 0.0, %v4462
        %v4464 = vpop.f32.mrb[0].mxu0
        %4465 = vmatprep.mubr.f32.mxu0 0.0
        %4466 = vmatmul.mubr.f32.gmra.mrb[0].mxu0 %v4372
        %v4467 = vpop.f32.mrb[0].mxu0
        %v4468 = vadd.f32 0.0, %v4467
        %v4469 = vpop.f32.mrb[0].mxu0
        %4470 = vmatprep.mubr.f32.mxu0 0.0
        %4471 = vmatmul.mubr.f32.gmra.mrb[0].mxu0 %v4373
        %v4472 = vpop.f32.mrb[0].mxu0
        %v4473 = vadd.f32 0.0, %v4472
        %v4474 = vpop.f32.mrb[0].mxu0
        %4475 = vdwg.mxu0
        %v4476 = vadd.f32 %v4352, %v4458
        %v4477 = vadd.f32 %v4357, %v4463
        %v4478 = vadd.f32 %v4362, %v4468
        %v4479 = vadd.f32 %v4367, %v4473
        %v4480 = vld [vmem:[#allocation4 + $0x7] sm:$0xff]
        %v4481 = vld [vmem:[#allocation4 + $0xf] sm:$0xff]
        %v4482 = vld [vmem:[#allocation4 + $0x17] sm:$0xff]
        %v4483 = vld [vmem:[#allocation4 + $0x1f] sm:$0xff]
        %s4484 = scalar_lea.vmem %s11, 384
        %v4485 = vld [vmem:[%s4484] sm:$0xff]
        %v4486 = vld [vmem:[%s4484 + $0x8] sm:$0xff]
        %v4487 = vld [vmem:[%s4484 + $0x10] sm:$0xff]
        %v4488 = vld [vmem:[%s4484 + $0x18] sm:$0xff]
        %v4489 = vld [vmem:[%s4484 + $0x20] sm:$0xff]
        %v4490 = vld [vmem:[%s4484 + $0x28] sm:$0xff]
        %v4491 = vld [vmem:[%s4484 + $0x30] sm:$0xff]
        %v4492 = vld [vmem:[%s4484 + $0x38] sm:$0xff]
        %v4493 = vld [vmem:[%s4484 + $0x40] sm:$0xff]
        %v4494 = vld [vmem:[%s4484 + $0x48] sm:$0xff]
        %v4495 = vld [vmem:[%s4484 + $0x50] sm:$0xff]
        %v4496 = vld [vmem:[%s4484 + $0x58] sm:$0xff]
        %v4497 = vld [vmem:[%s4484 + $0x60] sm:$0xff]
        %v4498 = vld [vmem:[%s4484 + $0x68] sm:$0xff]
        %v4499 = vld [vmem:[%s4484 + $0x70] sm:$0xff]
        %v4500 = vld [vmem:[%s4484 + $0x78] sm:$0xff]
        %4501 = vmatprep.subr.mxu0 0.0
        %4502 = vmatpush1.msra.mxu0 %v4485
        %4503 = vmatprep.subr.mxu0 0.0
        %4504 = vmatpush1.msra.mxu0 %v4486
        %4505 = vmatprep.subr.mxu0 0.0
        %4506 = vmatpush1.msra.mxu0 %v4487
        %4507 = vmatprep.subr.mxu0 0.0
        %4508 = vmatpush1.msra.mxu0 %v4488
        %4509 = vmatprep.subr.mxu0 0.0
        %4510 = vmatpush1.msra.mxu0 %v4489
        %4511 = vmatprep.subr.mxu0 0.0
        %4512 = vmatpush1.msra.mxu0 %v4490
        %4513 = vmatprep.subr.mxu0 0.0
        %4514 = vmatpush1.msra.mxu0 %v4491
        %4515 = vmatprep.subr.mxu0 0.0
        %4516 = vmatpush1.msra.mxu0 %v4492
        %4517 = vmatprep.subr.mxu0 0.0
        %4518 = vmatpush1.msra.mxu0 %v4493
        %4519 = vmatprep.subr.mxu0 0.0
        %4520 = vmatpush1.msra.mxu0 %v4494
        %4521 = vmatprep.subr.mxu0 0.0
        %4522 = vmatpush1.msra.mxu0 %v4495
        %4523 = vmatprep.subr.mxu0 0.0
        %4524 = vmatpush1.msra.mxu0 %v4496
        %4525 = vmatprep.subr.mxu0 0.0
        %4526 = vmatpush1.msra.mxu0 %v4497
        %4527 = vmatprep.subr.mxu0 0.0
        %4528 = vmatpush1.msra.mxu0 %v4498
        %4529 = vmatprep.subr.mxu0 0.0
        %4530 = vmatpush1.msra.mxu0 %v4499
        %4531 = vmatprep.subr.mxu0 0.0
        %4532 = vmatpush1.msra.mxu0 %v4500
        %4533 = vmatprep.subr.mxu0 0.0
        %4534 = vmatpush1.msra.mxu0 0.0
        %4535 = vmatprep.subr.mxu0 0.0
        %4536 = vmatpush1.msra.mxu0 0.0
        %4537 = vmatprep.subr.mxu0 0.0
        %4538 = vmatpush1.msra.mxu0 0.0
        %4539 = vmatprep.subr.mxu0 0.0
        %4540 = vmatpush1.msra.mxu0 0.0
        %4541 = vmatprep.subr.mxu0 0.0
        %4542 = vmatpush1.msra.mxu0 0.0
        %4543 = vmatprep.subr.mxu0 0.0
        %4544 = vmatpush1.msra.mxu0 0.0
        %4545 = vmatprep.subr.mxu0 0.0
        %4546 = vmatpush1.msra.mxu0 0.0
        %4547 = vmatprep.subr.mxu0 0.0
        %4548 = vmatpush1.msra.mxu0 0.0
        %4549 = vmatprep.subr.mxu0 0.0
        %4550 = vmatpush1.msra.mxu0 0.0
        %4551 = vmatprep.subr.mxu0 0.0
        %4552 = vmatpush1.msra.mxu0 0.0
        %4553 = vmatprep.subr.mxu0 0.0
        %4554 = vmatpush1.msra.mxu0 0.0
        %4555 = vmatprep.subr.mxu0 0.0
        %4556 = vmatpush1.msra.mxu0 0.0
        %4557 = vmatprep.subr.mxu0 0.0
        %4558 = vmatpush1.msra.mxu0 0.0
        %4559 = vmatprep.subr.mxu0 0.0
        %4560 = vmatpush1.msra.mxu0 0.0
        %4561 = vmatprep.subr.mxu0 0.0
        %4562 = vmatpush1.msra.mxu0 0.0
        %4563 = vmatprep.subr.mxu0 0.0
        %4564 = vmatpush1.msra.mxu0 0.0
        %4565 = vmatprep.mubr.f32.mxu0 0.0
        %4566 = vmatmul.mubr.f32.gmra.mrb[0].mxu0 %v4480
        %v4567 = vpop.f32.mrb[0].mxu0
        %v4568 = vadd.f32 0.0, %v4567
        %v4569 = vpop.f32.mrb[0].mxu0
        %4570 = vmatprep.mubr.f32.mxu0 0.0
        %4571 = vmatmul.mubr.f32.gmra.mrb[0].mxu0 %v4481
        %v4572 = vpop.f32.mrb[0].mxu0
        %v4573 = vadd.f32 0.0, %v4572
        %v4574 = vpop.f32.mrb[0].mxu0
        %4575 = vmatprep.mubr.f32.mxu0 0.0
        %4576 = vmatmul.mubr.f32.gmra.mrb[0].mxu0 %v4482
        %v4577 = vpop.f32.mrb[0].mxu0
        %v4578 = vadd.f32 0.0, %v4577
        %v4579 = vpop.f32.mrb[0].mxu0
        %4580 = vmatprep.mubr.f32.mxu0 0.0
        %4581 = vmatmul.mubr.f32.gmra.mrb[0].mxu0 %v4483
        %v4582 = vpop.f32.mrb[0].mxu0
        %v4583 = vadd.f32 0.0, %v4582
        %v4584 = vpop.f32.mrb[0].mxu0
        %4585 = vdwg.mxu0
        %v4586 = vadd.f32 %v4476, %v4568
        %v4587 = vadd.f32 %v4477, %v4573
        %v4588 = vadd.f32 %v4478, %v4578
        %v4589 = vadd.f32 %v4479, %v4583
        %v4590 = vld [vmem:[#allocation4 + $0x8] sm:$0xff]
        %v4591 = vld [vmem:[#allocation4 + $0x10] sm:$0xff]
        %v4592 = vld [vmem:[#allocation4 + $0x18] sm:$0xff]
        %v4593 = vld [vmem:[#allocation4 + $0x20] sm:$0xff]
        %s4594 = scalar_lea.vmem %s11, 512
        %v4595 = vld [vmem:[%s4594] sm:$0xff]
        %v4596 = vld [vmem:[%s4594 + $0x8] sm:$0xff]
        %v4597 = vld [vmem:[%s4594 + $0x10] sm:$0xff]
        %v4598 = vld [vmem:[%s4594 + $0x18] sm:$0xff]
        %v4599 = vld [vmem:[%s4594 + $0x20] sm:$0xff]
        %v4600 = vld [vmem:[%s4594 + $0x28] sm:$0xff]
        %v4601 = vld [vmem:[%s4594 + $0x30] sm:$0xff]
        %v4602 = vld [vmem:[%s4594 + $0x38] sm:$0xff]
        %v4603 = vld [vmem:[%s4594 + $0x40] sm:$0xff]
        %v4604 = vld [vmem:[%s4594 + $0x48] sm:$0xff]
        %v4605 = vld [vmem:[%s4594 + $0x50] sm:$0xff]
        %v4606 = vld [vmem:[%s4594 + $0x58] sm:$0xff]
        %v4607 = vld [vmem:[%s4594 + $0x60] sm:$0xff]
        %v4608 = vld [vmem:[%s4594 + $0x68] sm:$0xff]
        %v4609 = vld [vmem:[%s4594 + $0x70] sm:$0xff]
        %v4610 = vld [vmem:[%s4594 + $0x78] sm:$0xff]
        %4611 = vmatprep.subr.mxu0 0.0
        %4612 = vmatpush1.msra.mxu0 %v4595
        %4613 = vmatprep.subr.mxu0 0.0
        %4614 = vmatpush1.msra.mxu0 %v4596
        %4615 = vmatprep.subr.mxu0 0.0
        %4616 = vmatpush1.msra.mxu0 %v4597
        %4617 = vmatprep.subr.mxu0 0.0
        %4618 = vmatpush1.msra.mxu0 %v4598
        %4619 = vmatprep.subr.mxu0 0.0
        %4620 = vmatpush1.msra.mxu0 %v4599
        %4621 = vmatprep.subr.mxu0 0.0
        %4622 = vmatpush1.msra.mxu0 %v4600
        %4623 = vmatprep.subr.mxu0 0.0
        %4624 = vmatpush1.msra.mxu0 %v4601
        %4625 = vmatprep.subr.mxu0 0.0
        %4626 = vmatpush1.msra.mxu0 %v4602
        %4627 = vmatprep.subr.mxu0 0.0
        %4628 = vmatpush1.msra.mxu0 %v4603
        %4629 = vmatprep.subr.mxu0 0.0
        %4630 = vmatpush1.msra.mxu0 %v4604
        %4631 = vmatprep.subr.mxu0 0.0
        %4632 = vmatpush1.msra.mxu0 %v4605
        %4633 = vmatprep.subr.mxu0 0.0
        %4634 = vmatpush1.msra.mxu0 %v4606
        %4635 = vmatprep.subr.mxu0 0.0
        %4636 = vmatpush1.msra.mxu0 %v4607
        %4637 = vmatprep.subr.mxu0 0.0
        %4638 = vmatpush1.msra.mxu0 %v4608
        %4639 = vmatprep.subr.mxu0 0.0
        %4640 = vmatpush1.msra.mxu0 %v4609
        %4641 = vmatprep.subr.mxu0 0.0
        %4642 = vmatpush1.msra.mxu0 %v4610
        %4643 = vmatprep.subr.mxu0 0.0
        %4644 = vmatpush1.msra.mxu0 0.0
        %4645 = vmatprep.subr.mxu0 0.0
        %4646 = vmatpush1.msra.mxu0 0.0
        %4647 = vmatprep.subr.mxu0 0.0
        %4648 = vmatpush1.msra.mxu0 0.0
        %4649 = vmatprep.subr.mxu0 0.0
        %4650 = vmatpush1.msra.mxu0 0.0
        %4651 = vmatprep.subr.mxu0 0.0
        %4652 = vmatpush1.msra.mxu0 0.0
        %4653 = vmatprep.subr.mxu0 0.0
        %4654 = vmatpush1.msra.mxu0 0.0
        %4655 = vmatprep.subr.mxu0 0.0
        %4656 = vmatpush1.msra.mxu0 0.0
        %4657 = vmatprep.subr.mxu0 0.0
        %4658 = vmatpush1.msra.mxu0 0.0
        %4659 = vmatprep.subr.mxu0 0.0
        %4660 = vmatpush1.msra.mxu0 0.0
        %4661 = vmatprep.subr.mxu0 0.0
        %4662 = vmatpush1.msra.mxu0 0.0
        %4663 = vmatprep.subr.mxu0 0.0
        %4664 = vmatpush1.msra.mxu0 0.0
        %4665 = vmatprep.subr.mxu0 0.0
        %4666 = vmatpush1.msra.mxu0 0.0
        %4667 = vmatprep.subr.mxu0 0.0
        %4668 = vmatpush1.msra.mxu0 0.0
        %4669 = vmatprep.subr.mxu0 0.0
        %4670 = vmatpush1.msra.mxu0 0.0
        %4671 = vmatprep.subr.mxu0 0.0
        %4672 = vmatpush1.msra.mxu0 0.0
        %4673 = vmatprep.subr.mxu0 0.0
        %4674 = vmatpush1.msra.mxu0 0.0
        %4675 = vmatprep.mubr.f32.mxu0 0.0
        %4676 = vmatmul.mubr.f32.gmra.mrb[0].mxu0 %v4590
        %v4677 = vpop.f32.mrb[0].mxu0
        %v4678 = vadd.f32 0.0, %v4677
        %v4679 = vpop.f32.mrb[0].mxu0
        %4680 = vmatprep.mubr.f32.mxu0 0.0
        %4681 = vmatmul.mubr.f32.gmra.mrb[0].mxu0 %v4591
        %v4682 = vpop.f32.mrb[0].mxu0
        %v4683 = vadd.f32 0.0, %v4682
        %v4684 = vpop.f32.mrb[0].mxu0
        %4685 = vmatprep.mubr.f32.mxu0 0.0
        %4686 = vmatmul.mubr.f32.gmra.mrb[0].mxu0 %v4592
        %v4687 = vpop.f32.mrb[0].mxu0
        %v4688 = vadd.f32 0.0, %v4687
        %v4689 = vpop.f32.mrb[0].mxu0
        %4690 = vmatprep.mubr.f32.mxu0 0.0
        %4691 = vmatmul.mubr.f32.gmra.mrb[0].mxu0 %v4593
        %v4692 = vpop.f32.mrb[0].mxu0
        %v4693 = vadd.f32 0.0, %v4692
        %v4694 = vpop.f32.mrb[0].mxu0
        %4695 = vdwg.mxu0
        %v4696 = vadd.f32 %v4586, %v4678
        %v4697 = vadd.f32 %v4587, %v4683
        %v4698 = vadd.f32 %v4588, %v4688
        %v4699 = vadd.f32 %v4589, %v4693
        %v4700 = vld [vmem:[#allocation4 + $0x9] sm:$0xff]
        %v4701 = vld [vmem:[#allocation4 + $0x11] sm:$0xff]
        %v4702 = vld [vmem:[#allocation4 + $0x19] sm:$0xff]
        %v4703 = vld [vmem:[#allocation4 + $0x21] sm:$0xff]
        %s4704 = scalar_lea.vmem %s11, 640
        %v4705 = vld [vmem:[%s4704] sm:$0xff]
        %v4706 = vld [vmem:[%s4704 + $0x8] sm:$0xff]
        %v4707 = vld [vmem:[%s4704 + $0x10] sm:$0xff]
        %v4708 = vld [vmem:[%s4704 + $0x18] sm:$0xff]
        %v4709 = vld [vmem:[%s4704 + $0x20] sm:$0xff]
        %v4710 = vld [vmem:[%s4704 + $0x28] sm:$0xff]
        %v4711 = vld [vmem:[%s4704 + $0x30] sm:$0xff]
        %v4712 = vld [vmem:[%s4704 + $0x38] sm:$0xff]
        %v4713 = vld [vmem:[%s4704 + $0x40] sm:$0xff]
        %v4714 = vld [vmem:[%s4704 + $0x48] sm:$0xff]
        %v4715 = vld [vmem:[%s4704 + $0x50] sm:$0xff]
        %v4716 = vld [vmem:[%s4704 + $0x58] sm:$0xff]
        %v4717 = vld [vmem:[%s4704 + $0x60] sm:$0xff]
        %v4718 = vld [vmem:[%s4704 + $0x68] sm:$0xff]
        %v4719 = vld [vmem:[%s4704 + $0x70] sm:$0xff]
        %v4720 = vld [vmem:[%s4704 + $0x78] sm:$0xff]
        %4721 = vmatprep.subr.mxu0 0.0
        %4722 = vmatpush1.msra.mxu0 %v4705
        %4723 = vmatprep.subr.mxu0 0.0
        %4724 = vmatpush1.msra.mxu0 %v4706
        %4725 = vmatprep.subr.mxu0 0.0
        %4726 = vmatpush1.msra.mxu0 %v4707
        %4727 = vmatprep.subr.mxu0 0.0
        %4728 = vmatpush1.msra.mxu0 %v4708
        %4729 = vmatprep.subr.mxu0 0.0
        %4730 = vmatpush1.msra.mxu0 %v4709
        %4731 = vmatprep.subr.mxu0 0.0
        %4732 = vmatpush1.msra.mxu0 %v4710
        %4733 = vmatprep.subr.mxu0 0.0
        %4734 = vmatpush1.msra.mxu0 %v4711
        %4735 = vmatprep.subr.mxu0 0.0
        %4736 = vmatpush1.msra.mxu0 %v4712
        %4737 = vmatprep.subr.mxu0 0.0
        %4738 = vmatpush1.msra.mxu0 %v4713
        %4739 = vmatprep.subr.mxu0 0.0
        %4740 = vmatpush1.msra.mxu0 %v4714
        %4741 = vmatprep.subr.mxu0 0.0
        %4742 = vmatpush1.msra.mxu0 %v4715
        %4743 = vmatprep.subr.mxu0 0.0
        %4744 = vmatpush1.msra.mxu0 %v4716
        %4745 = vmatprep.subr.mxu0 0.0
        %4746 = vmatpush1.msra.mxu0 %v4717
        %4747 = vmatprep.subr.mxu0 0.0
        %4748 = vmatpush1.msra.mxu0 %v4718
        %4749 = vmatprep.subr.mxu0 0.0
        %4750 = vmatpush1.msra.mxu0 %v4719
        %4751 = vmatprep.subr.mxu0 0.0
        %4752 = vmatpush1.msra.mxu0 %v4720
        %4753 = vmatprep.subr.mxu0 0.0
        %4754 = vmatpush1.msra.mxu0 0.0
        %4755 = vmatprep.subr.mxu0 0.0
        %4756 = vmatpush1.msra.mxu0 0.0
        %4757 = vmatprep.subr.mxu0 0.0
        %4758 = vmatpush1.msra.mxu0 0.0
        %4759 = vmatprep.subr.mxu0 0.0
        %4760 = vmatpush1.msra.mxu0 0.0
        %4761 = vmatprep.subr.mxu0 0.0
        %4762 = vmatpush1.msra.mxu0 0.0
        %4763 = vmatprep.subr.mxu0 0.0
        %4764 = vmatpush1.msra.mxu0 0.0
        %4765 = vmatprep.subr.mxu0 0.0
        %4766 = vmatpush1.msra.mxu0 0.0
        %4767 = vmatprep.subr.mxu0 0.0
        %4768 = vmatpush1.msra.mxu0 0.0
        %4769 = vmatprep.subr.mxu0 0.0
        %4770 = vmatpush1.msra.mxu0 0.0
        %4771 = vmatprep.subr.mxu0 0.0
        %4772 = vmatpush1.msra.mxu0 0.0
        %4773 = vmatprep.subr.mxu0 0.0
        %4774 = vmatpush1.msra.mxu0 0.0
        %4775 = vmatprep.subr.mxu0 0.0
        %4776 = vmatpush1.msra.mxu0 0.0
        %4777 = vmatprep.subr.mxu0 0.0
        %4778 = vmatpush1.msra.mxu0 0.0
        %4779 = vmatprep.subr.mxu0 0.0
        %4780 = vmatpush1.msra.mxu0 0.0
        %4781 = vmatprep.subr.mxu0 0.0
        %4782 = vmatpush1.msra.mxu0 0.0
        %4783 = vmatprep.subr.mxu0 0.0
        %4784 = vmatpush1.msra.mxu0 0.0
        %4785 = vmatprep.mubr.f32.mxu0 0.0
        %4786 = vmatmul.mubr.f32.gmra.mrb[0].mxu0 %v4700
        %v4787 = vpop.f32.mrb[0].mxu0
        %v4788 = vadd.f32 0.0, %v4787
        %v4789 = vpop.f32.mrb[0].mxu0
        %4790 = vmatprep.mubr.f32.mxu0 0.0
        %4791 = vmatmul.mubr.f32.gmra.mrb[0].mxu0 %v4701
        %v4792 = vpop.f32.mrb[0].mxu0
        %v4793 = vadd.f32 0.0, %v4792
        %v4794 = vpop.f32.mrb[0].mxu0
        %4795 = vmatprep.mubr.f32.mxu0 0.0
        %4796 = vmatmul.mubr.f32.gmra.mrb[0].mxu0 %v4702
        %v4797 = vpop.f32.mrb[0].mxu0
        %v4798 = vadd.f32 0.0, %v4797
        %v4799 = vpop.f32.mrb[0].mxu0
        %4800 = vmatprep.mubr.f32.mxu0 0.0
        %4801 = vmatmul.mubr.f32.gmra.mrb[0].mxu0 %v4703
        %v4802 = vpop.f32.mrb[0].mxu0
        %v4803 = vadd.f32 0.0, %v4802
        %v4804 = vpop.f32.mrb[0].mxu0
        %4805 = vdwg.mxu0
        %v4806 = vadd.f32 %v4696, %v4788
        %v4807 = vadd.f32 %v4697, %v4793
        %v4808 = vadd.f32 %v4698, %v4798
        %v4809 = vadd.f32 %v4699, %v4803
        %v4810 = vld [vmem:[#allocation4 + $0xa] sm:$0xff]
        %v4811 = vld [vmem:[#allocation4 + $0x12] sm:$0xff]
        %v4812 = vld [vmem:[#allocation4 + $0x1a] sm:$0xff]
        %v4813 = vld [vmem:[#allocation4 + $0x22] sm:$0xff]
        %s4814 = scalar_lea.vmem %s11, 768
        %v4815 = vld [vmem:[%s4814] sm:$0xff]
        %v4816 = vld [vmem:[%s4814 + $0x8] sm:$0xff]
        %v4817 = vld [vmem:[%s4814 + $0x10] sm:$0xff]
        %v4818 = vld [vmem:[%s4814 + $0x18] sm:$0xff]
        %v4819 = vld [vmem:[%s4814 + $0x20] sm:$0xff]
        %v4820 = vld [vmem:[%s4814 + $0x28] sm:$0xff]
        %v4821 = vld [vmem:[%s4814 + $0x30] sm:$0xff]
        %v4822 = vld [vmem:[%s4814 + $0x38] sm:$0xff]
        %v4823 = vld [vmem:[%s4814 + $0x40] sm:$0xff]
        %v4824 = vld [vmem:[%s4814 + $0x48] sm:$0xff]
        %v4825 = vld [vmem:[%s4814 + $0x50] sm:$0xff]
        %v4826 = vld [vmem:[%s4814 + $0x58] sm:$0xff]
        %v4827 = vld [vmem:[%s4814 + $0x60] sm:$0xff]
        %v4828 = vld [vmem:[%s4814 + $0x68] sm:$0xff]
        %v4829 = vld [vmem:[%s4814 + $0x70] sm:$0xff]
        %v4830 = vld [vmem:[%s4814 + $0x78] sm:$0xff]
        %4831 = vmatprep.subr.mxu0 0.0
        %4832 = vmatpush1.msra.mxu0 %v4815
        %4833 = vmatprep.subr.mxu0 0.0
        %4834 = vmatpush1.msra.mxu0 %v4816
        %4835 = vmatprep.subr.mxu0 0.0
        %4836 = vmatpush1.msra.mxu0 %v4817
        %4837 = vmatprep.subr.mxu0 0.0
        %4838 = vmatpush1.msra.mxu0 %v4818
        %4839 = vmatprep.subr.mxu0 0.0
        %4840 = vmatpush1.msra.mxu0 %v4819
        %4841 = vmatprep.subr.mxu0 0.0
        %4842 = vmatpush1.msra.mxu0 %v4820
        %4843 = vmatprep.subr.mxu0 0.0
        %4844 = vmatpush1.msra.mxu0 %v4821
        %4845 = vmatprep.subr.mxu0 0.0
        %4846 = vmatpush1.msra.mxu0 %v4822
        %4847 = vmatprep.subr.mxu0 0.0
        %4848 = vmatpush1.msra.mxu0 %v4823
        %4849 = vmatprep.subr.mxu0 0.0
        %4850 = vmatpush1.msra.mxu0 %v4824
        %4851 = vmatprep.subr.mxu0 0.0
        %4852 = vmatpush1.msra.mxu0 %v4825
        %4853 = vmatprep.subr.mxu0 0.0
        %4854 = vmatpush1.msra.mxu0 %v4826
        %4855 = vmatprep.subr.mxu0 0.0
        %4856 = vmatpush1.msra.mxu0 %v4827
        %4857 = vmatprep.subr.mxu0 0.0
        %4858 = vmatpush1.msra.mxu0 %v4828
        %4859 = vmatprep.subr.mxu0 0.0
        %4860 = vmatpush1.msra.mxu0 %v4829
        %4861 = vmatprep.subr.mxu0 0.0
        %4862 = vmatpush1.msra.mxu0 %v4830
        %4863 = vmatprep.subr.mxu0 0.0
        %4864 = vmatpush1.msra.mxu0 0.0
        %4865 = vmatprep.subr.mxu0 0.0
        %4866 = vmatpush1.msra.mxu0 0.0
        %4867 = vmatprep.subr.mxu0 0.0
        %4868 = vmatpush1.msra.mxu0 0.0
        %4869 = vmatprep.subr.mxu0 0.0
        %4870 = vmatpush1.msra.mxu0 0.0
        %4871 = vmatprep.subr.mxu0 0.0
        %4872 = vmatpush1.msra.mxu0 0.0
        %4873 = vmatprep.subr.mxu0 0.0
        %4874 = vmatpush1.msra.mxu0 0.0
        %4875 = vmatprep.subr.mxu0 0.0
        %4876 = vmatpush1.msra.mxu0 0.0
        %4877 = vmatprep.subr.mxu0 0.0
        %4878 = vmatpush1.msra.mxu0 0.0
        %4879 = vmatprep.subr.mxu0 0.0
        %4880 = vmatpush1.msra.mxu0 0.0
        %4881 = vmatprep.subr.mxu0 0.0
        %4882 = vmatpush1.msra.mxu0 0.0
        %4883 = vmatprep.subr.mxu0 0.0
        %4884 = vmatpush1.msra.mxu0 0.0
        %4885 = vmatprep.subr.mxu0 0.0
        %4886 = vmatpush1.msra.mxu0 0.0
        %4887 = vmatprep.subr.mxu0 0.0
        %4888 = vmatpush1.msra.mxu0 0.0
        %4889 = vmatprep.subr.mxu0 0.0
        %4890 = vmatpush1.msra.mxu0 0.0
        %4891 = vmatprep.subr.mxu0 0.0
        %4892 = vmatpush1.msra.mxu0 0.0
        %4893 = vmatprep.subr.mxu0 0.0
        %4894 = vmatpush1.msra.mxu0 0.0
        %4895 = vmatprep.mubr.f32.mxu0 0.0
        %4896 = vmatmul.mubr.f32.gmra.mrb[0].mxu0 %v4810
        %v4897 = vpop.f32.mrb[0].mxu0
        %v4898 = vadd.f32 0.0, %v4897
        %v4899 = vpop.f32.mrb[0].mxu0
        %4900 = vmatprep.mubr.f32.mxu0 0.0
        %4901 = vmatmul.mubr.f32.gmra.mrb[0].mxu0 %v4811
        %v4902 = vpop.f32.mrb[0].mxu0
        %v4903 = vadd.f32 0.0, %v4902
        %v4904 = vpop.f32.mrb[0].mxu0
        %4905 = vmatprep.mubr.f32.mxu0 0.0
        %4906 = vmatmul.mubr.f32.gmra.mrb[0].mxu0 %v4812
        %v4907 = vpop.f32.mrb[0].mxu0
        %v4908 = vadd.f32 0.0, %v4907
        %v4909 = vpop.f32.mrb[0].mxu0
        %4910 = vmatprep.mubr.f32.mxu0 0.0
        %4911 = vmatmul.mubr.f32.gmra.mrb[0].mxu0 %v4813
        %v4912 = vpop.f32.mrb[0].mxu0
        %v4913 = vadd.f32 0.0, %v4912
        %v4914 = vpop.f32.mrb[0].mxu0
        %4915 = vdwg.mxu0
        %v4916 = vadd.f32 %v4806, %v4898
        %v4917 = vadd.f32 %v4807, %v4903
        %v4918 = vadd.f32 %v4808, %v4908
        %v4919 = vadd.f32 %v4809, %v4913
        %v4920 = vld [vmem:[#allocation4 + $0xb] sm:$0xff]
        %v4921 = vld [vmem:[#allocation4 + $0x13] sm:$0xff]
        %v4922 = vld [vmem:[#allocation4 + $0x1b] sm:$0xff]
        %v4923 = vld [vmem:[#allocation4 + $0x23] sm:$0xff]
        %s4924 = scalar_lea.vmem %s11, 896
        %v4925 = vld [vmem:[%s4924] sm:$0xff]
        %v4926 = vld [vmem:[%s4924 + $0x8] sm:$0xff]
        %v4927 = vld [vmem:[%s4924 + $0x10] sm:$0xff]
        %v4928 = vld [vmem:[%s4924 + $0x18] sm:$0xff]
        %v4929 = vld [vmem:[%s4924 + $0x20] sm:$0xff]
        %v4930 = vld [vmem:[%s4924 + $0x28] sm:$0xff]
        %v4931 = vld [vmem:[%s4924 + $0x30] sm:$0xff]
        %v4932 = vld [vmem:[%s4924 + $0x38] sm:$0xff]
        %v4933 = vld [vmem:[%s4924 + $0x40] sm:$0xff]
        %v4934 = vld [vmem:[%s4924 + $0x48] sm:$0xff]
        %v4935 = vld [vmem:[%s4924 + $0x50] sm:$0xff]
        %v4936 = vld [vmem:[%s4924 + $0x58] sm:$0xff]
        %v4937 = vld [vmem:[%s4924 + $0x60] sm:$0xff]
        %v4938 = vld [vmem:[%s4924 + $0x68] sm:$0xff]
        %v4939 = vld [vmem:[%s4924 + $0x70] sm:$0xff]
        %v4940 = vld [vmem:[%s4924 + $0x78] sm:$0xff]
        %4941 = vmatprep.subr.mxu0 0.0
        %4942 = vmatpush1.msra.mxu0 %v4925
        %4943 = vmatprep.subr.mxu0 0.0
        %4944 = vmatpush1.msra.mxu0 %v4926
        %4945 = vmatprep.subr.mxu0 0.0
        %4946 = vmatpush1.msra.mxu0 %v4927
        %4947 = vmatprep.subr.mxu0 0.0
        %4948 = vmatpush1.msra.mxu0 %v4928
        %4949 = vmatprep.subr.mxu0 0.0
        %4950 = vmatpush1.msra.mxu0 %v4929
        %4951 = vmatprep.subr.mxu0 0.0
        %4952 = vmatpush1.msra.mxu0 %v4930
        %4953 = vmatprep.subr.mxu0 0.0
        %4954 = vmatpush1.msra.mxu0 %v4931
        %4955 = vmatprep.subr.mxu0 0.0
        %4956 = vmatpush1.msra.mxu0 %v4932
        %4957 = vmatprep.subr.mxu0 0.0
        %4958 = vmatpush1.msra.mxu0 %v4933
        %4959 = vmatprep.subr.mxu0 0.0
        %4960 = vmatpush1.msra.mxu0 %v4934
        %4961 = vmatprep.subr.mxu0 0.0
        %4962 = vmatpush1.msra.mxu0 %v4935
        %4963 = vmatprep.subr.mxu0 0.0
        %4964 = vmatpush1.msra.mxu0 %v4936
        %4965 = vmatprep.subr.mxu0 0.0
        %4966 = vmatpush1.msra.mxu0 %v4937
        %4967 = vmatprep.subr.mxu0 0.0
        %4968 = vmatpush1.msra.mxu0 %v4938
        %4969 = vmatprep.subr.mxu0 0.0
        %4970 = vmatpush1.msra.mxu0 %v4939
        %4971 = vmatprep.subr.mxu0 0.0
        %4972 = vmatpush1.msra.mxu0 %v4940
        %4973 = vmatprep.subr.mxu0 0.0
        %4974 = vmatpush1.msra.mxu0 0.0
        %4975 = vmatprep.subr.mxu0 0.0
        %4976 = vmatpush1.msra.mxu0 0.0
        %4977 = vmatprep.subr.mxu0 0.0
        %4978 = vmatpush1.msra.mxu0 0.0
        %4979 = vmatprep.subr.mxu0 0.0
        %4980 = vmatpush1.msra.mxu0 0.0
        %4981 = vmatprep.subr.mxu0 0.0
        %4982 = vmatpush1.msra.mxu0 0.0
        %4983 = vmatprep.subr.mxu0 0.0
        %4984 = vmatpush1.msra.mxu0 0.0
        %4985 = vmatprep.subr.mxu0 0.0
        %4986 = vmatpush1.msra.mxu0 0.0
        %4987 = vmatprep.subr.mxu0 0.0
        %4988 = vmatpush1.msra.mxu0 0.0
        %4989 = vmatprep.subr.mxu0 0.0
        %4990 = vmatpush1.msra.mxu0 0.0
        %4991 = vmatprep.subr.mxu0 0.0
        %4992 = vmatpush1.msra.mxu0 0.0
        %4993 = vmatprep.subr.mxu0 0.0
        %4994 = vmatpush1.msra.mxu0 0.0
        %4995 = vmatprep.subr.mxu0 0.0
        %4996 = vmatpush1.msra.mxu0 0.0
        %4997 = vmatprep.subr.mxu0 0.0
        %4998 = vmatpush1.msra.mxu0 0.0
        %4999 = vmatprep.subr.mxu0 0.0
        %5000 = vmatpush1.msra.mxu0 0.0
        %5001 = vmatprep.subr.mxu0 0.0
        %5002 = vmatpush1.msra.mxu0 0.0
        %5003 = vmatprep.subr.mxu0 0.0
        %5004 = vmatpush1.msra.mxu0 0.0
        %5005 = vmatprep.mubr.f32.mxu0 0.0
        %5006 = vmatmul.mubr.f32.gmra.mrb[0].mxu0 %v4920
        %v5007 = vpop.f32.mrb[0].mxu0
        %v5008 = vadd.f32 0.0, %v5007
        %v5009 = vpop.f32.mrb[0].mxu0
        %5010 = vmatprep.mubr.f32.mxu0 0.0
        %5011 = vmatmul.mubr.f32.gmra.mrb[0].mxu0 %v4921
        %v5012 = vpop.f32.mrb[0].mxu0
        %v5013 = vadd.f32 0.0, %v5012
        %v5014 = vpop.f32.mrb[0].mxu0
        %5015 = vmatprep.mubr.f32.mxu0 0.0
        %5016 = vmatmul.mubr.f32.gmra.mrb[0].mxu0 %v4922
        %v5017 = vpop.f32.mrb[0].mxu0
        %v5018 = vadd.f32 0.0, %v5017
        %v5019 = vpop.f32.mrb[0].mxu0
        %5020 = vmatprep.mubr.f32.mxu0 0.0
        %5021 = vmatmul.mubr.f32.gmra.mrb[0].mxu0 %v4923
        %v5022 = vpop.f32.mrb[0].mxu0
        %v5023 = vadd.f32 0.0, %v5022
        %v5024 = vpop.f32.mrb[0].mxu0
        %5025 = vdwg.mxu0
        %v5026 = vadd.f32 %v4916, %v5008
        %v5027 = vadd.f32 %v4917, %v5013
        %v5028 = vadd.f32 %v4918, %v5018
        %v5029 = vadd.f32 %v4919, %v5023
        %v5030 = vld [vmem:[#allocation4 + $0xc] sm:$0xff]
        %v5031 = vld [vmem:[#allocation4 + $0x14] sm:$0xff]
        %v5032 = vld [vmem:[#allocation4 + $0x1c] sm:$0xff]
        %v5033 = vld [vmem:[#allocation4 + $0x24] sm:$0xff]
        %s5034 = scalar_lea.vmem %s11, 1024
        %v5035 = vld [vmem:[%s5034] sm:$0xff]
        %v5036 = vld [vmem:[%s5034 + $0x8] sm:$0xff]
        %v5037 = vld [vmem:[%s5034 + $0x10] sm:$0xff]
        %v5038 = vld [vmem:[%s5034 + $0x18] sm:$0xff]
        %v5039 = vld [vmem:[%s5034 + $0x20] sm:$0xff]
        %v5040 = vld [vmem:[%s5034 + $0x28] sm:$0xff]
        %v5041 = vld [vmem:[%s5034 + $0x30] sm:$0xff]
        %v5042 = vld [vmem:[%s5034 + $0x38] sm:$0xff]
        %v5043 = vld [vmem:[%s5034 + $0x40] sm:$0xff]
        %v5044 = vld [vmem:[%s5034 + $0x48] sm:$0xff]
        %v5045 = vld [vmem:[%s5034 + $0x50] sm:$0xff]
        %v5046 = vld [vmem:[%s5034 + $0x58] sm:$0xff]
        %v5047 = vld [vmem:[%s5034 + $0x60] sm:$0xff]
        %v5048 = vld [vmem:[%s5034 + $0x68] sm:$0xff]
        %v5049 = vld [vmem:[%s5034 + $0x70] sm:$0xff]
        %v5050 = vld [vmem:[%s5034 + $0x78] sm:$0xff]
        %5051 = vmatprep.subr.mxu0 0.0
        %5052 = vmatpush1.msra.mxu0 %v5035
        %5053 = vmatprep.subr.mxu0 0.0
        %5054 = vmatpush1.msra.mxu0 %v5036
        %5055 = vmatprep.subr.mxu0 0.0
        %5056 = vmatpush1.msra.mxu0 %v5037
        %5057 = vmatprep.subr.mxu0 0.0
        %5058 = vmatpush1.msra.mxu0 %v5038
        %5059 = vmatprep.subr.mxu0 0.0
        %5060 = vmatpush1.msra.mxu0 %v5039
        %5061 = vmatprep.subr.mxu0 0.0
        %5062 = vmatpush1.msra.mxu0 %v5040
        %5063 = vmatprep.subr.mxu0 0.0
        %5064 = vmatpush1.msra.mxu0 %v5041
        %5065 = vmatprep.subr.mxu0 0.0
        %5066 = vmatpush1.msra.mxu0 %v5042
        %5067 = vmatprep.subr.mxu0 0.0
        %5068 = vmatpush1.msra.mxu0 %v5043
        %5069 = vmatprep.subr.mxu0 0.0
        %5070 = vmatpush1.msra.mxu0 %v5044
        %5071 = vmatprep.subr.mxu0 0.0
        %5072 = vmatpush1.msra.mxu0 %v5045
        %5073 = vmatprep.subr.mxu0 0.0
        %5074 = vmatpush1.msra.mxu0 %v5046
        %5075 = vmatprep.subr.mxu0 0.0
        %5076 = vmatpush1.msra.mxu0 %v5047
        %5077 = vmatprep.subr.mxu0 0.0
        %5078 = vmatpush1.msra.mxu0 %v5048
        %5079 = vmatprep.subr.mxu0 0.0
        %5080 = vmatpush1.msra.mxu0 %v5049
        %5081 = vmatprep.subr.mxu0 0.0
        %5082 = vmatpush1.msra.mxu0 %v5050
        %5083 = vmatprep.subr.mxu0 0.0
        %5084 = vmatpush1.msra.mxu0 0.0
        %5085 = vmatprep.subr.mxu0 0.0
        %5086 = vmatpush1.msra.mxu0 0.0
        %5087 = vmatprep.subr.mxu0 0.0
        %5088 = vmatpush1.msra.mxu0 0.0
        %5089 = vmatprep.subr.mxu0 0.0
        %5090 = vmatpush1.msra.mxu0 0.0
        %5091 = vmatprep.subr.mxu0 0.0
        %5092 = vmatpush1.msra.mxu0 0.0
        %5093 = vmatprep.subr.mxu0 0.0
        %5094 = vmatpush1.msra.mxu0 0.0
        %5095 = vmatprep.subr.mxu0 0.0
        %5096 = vmatpush1.msra.mxu0 0.0
        %5097 = vmatprep.subr.mxu0 0.0
        %5098 = vmatpush1.msra.mxu0 0.0
        %5099 = vmatprep.subr.mxu0 0.0
        %5100 = vmatpush1.msra.mxu0 0.0
        %5101 = vmatprep.subr.mxu0 0.0
        %5102 = vmatpush1.msra.mxu0 0.0
        %5103 = vmatprep.subr.mxu0 0.0
        %5104 = vmatpush1.msra.mxu0 0.0
        %5105 = vmatprep.subr.mxu0 0.0
        %5106 = vmatpush1.msra.mxu0 0.0
        %5107 = vmatprep.subr.mxu0 0.0
        %5108 = vmatpush1.msra.mxu0 0.0
        %5109 = vmatprep.subr.mxu0 0.0
        %5110 = vmatpush1.msra.mxu0 0.0
        %5111 = vmatprep.subr.mxu0 0.0
        %5112 = vmatpush1.msra.mxu0 0.0
        %5113 = vmatprep.subr.mxu0 0.0
        %5114 = vmatpush1.msra.mxu0 0.0
        %5115 = vmatprep.mubr.f32.mxu0 0.0
        %5116 = vmatmul.mubr.f32.gmra.mrb[0].mxu0 %v5030
        %v5117 = vpop.f32.mrb[0].mxu0
        %v5118 = vadd.f32 0.0, %v5117
        %v5119 = vpop.f32.mrb[0].mxu0
        %5120 = vmatprep.mubr.f32.mxu0 0.0
        %5121 = vmatmul.mubr.f32.gmra.mrb[0].mxu0 %v5031
        %v5122 = vpop.f32.mrb[0].mxu0
        %v5123 = vadd.f32 0.0, %v5122
        %v5124 = vpop.f32.mrb[0].mxu0
        %5125 = vmatprep.mubr.f32.mxu0 0.0
        %5126 = vmatmul.mubr.f32.gmra.mrb[0].mxu0 %v5032
        %v5127 = vpop.f32.mrb[0].mxu0
        %v5128 = vadd.f32 0.0, %v5127
        %v5129 = vpop.f32.mrb[0].mxu0
        %5130 = vmatprep.mubr.f32.mxu0 0.0
        %5131 = vmatmul.mubr.f32.gmra.mrb[0].mxu0 %v5033
        %v5132 = vpop.f32.mrb[0].mxu0
        %v5133 = vadd.f32 0.0, %v5132
        %v5134 = vpop.f32.mrb[0].mxu0
        %5135 = vdwg.mxu0
        %v5136 = vadd.f32 %v5026, %v5118
        %v5137 = vadd.f32 %v5027, %v5123
        %v5138 = vadd.f32 %v5028, %v5128
        %v5139 = vadd.f32 %v5029, %v5133
        %v5140 = vld [vmem:[%s12] sm:$0x1]
        %v5142 = vlaneseq
        %v5143 = vshrl.u32 %v5142, 7
        %v5144 = vsub.s32 0, %v5143
        %v5145 = vrot.slane %v5140, %v5144
        %v5147 = vadd.f32 %v5136, %v5145
        %v5148 = vadd.f32 %v5137, %v5145
        %v5149 = vadd.f32 %v5138, %v5145
        %v5150 = vadd.f32 %v5139, %v5145
        %v5151 = vmax.f32 %v5147, 0.0
        %v5152 = vmax.f32 %v5148, 0.0
        %v5153 = vmax.f32 %v5149, 0.0
        %v5154 = vmax.f32 %v5150, 0.0
        %v5155 = vadd.f32 %v5151, %v4123
        %v5156 = vadd.f32 %v5152, %v4124
        %v5157 = vadd.f32 %v5153, %v4125
        %v5158 = vadd.f32 %v5154, %v4126
        %5159 = vst [vmem:[#allocation6] sm:$0xff] %v5155
        %5160 = vst [vmem:[#allocation6 + $0x8] sm:$0xff] %v5156
        %5161 = vst [vmem:[#allocation6 + $0x10] sm:$0xff] %v5157
        %5162 = vst [vmem:[#allocation6 + $0x18] sm:$0xff] %v5158
        %v5163 = vld [vmem:[#allocation6] ss:$2 sm:$0xff]
        %s5164 = scalar_lea.vmem [#allocation6], 16
        %v5165 = vld [vmem:[%s5164] ss:$2 sm:$0xff]
        %s5166 = scalar_lea.vmem [#allocation6], 1
        %v5167 = vld [vmem:[%s5166] ss:$2 sm:$0xff]
        %s5168 = scalar_lea.vmem [#allocation6], 17
        %v5169 = vld [vmem:[%s5168] ss:$2 sm:$0xff]
        %v5170 = vmax.f32 %v5163, %v5167
        %v5171 = vmax.f32 %v5165, %v5169
        %v5172 = vadd.f32 %v5170, %v5171
        %v5173 = vrot.slane %v5172, 4
        %v5174 = vadd.f32 %v5172, %v5173
        %v5175 = vrot.slane %v5174, 2
        %v5176 = vadd.f32 %v5174, %v5175
        %v5177 = vrot.slane %v5176, 1
        %v5178 = vadd.f32 %v5176, %v5177
        %v5179 = vrcp.pop 16.0
        %v5180 = vmul.f32 %v5178, %v5179
        %v5181 = vld [vmem:[%s13] sm:$0xff]
        %v5182 = vld [vmem:[%s13 + $0x8] sm:$0xff]
        %v5183 = vld [vmem:[%s13 + $0x10] sm:$0xff]
        %v5184 = vld [vmem:[%s13 + $0x18] sm:$0xff]
        %v5185 = vld [vmem:[%s13 + $0x20] sm:$0xff]
        %v5186 = vld [vmem:[%s13 + $0x28] sm:$0xff]
        %v5187 = vld [vmem:[%s13 + $0x30] sm:$0xff]
        %v5188 = vld [vmem:[%s13 + $0x38] sm:$0xff]
        %v5189 = vld [vmem:[%s13 + $0x40] sm:$0xff]
        %v5190 = vld [vmem:[%s13 + $0x48] sm:$0xff]
        %v5191 = vld [vmem:[%s13 + $0x50] sm:$0xff]
        %v5192 = vld [vmem:[%s13 + $0x58] sm:$0xff]
        %v5193 = vld [vmem:[%s13 + $0x60] sm:$0xff]
        %v5194 = vld [vmem:[%s13 + $0x68] sm:$0xff]
        %v5195 = vld [vmem:[%s13 + $0x70] sm:$0xff]
        %v5196 = vld [vmem:[%s13 + $0x78] sm:$0xff]
        %v5197 = vld [vmem:[%s14] sm:$0x1]
        %5198 = vmatprep.subr.mxu0 0.0
        %5199 = vmatpush1.msra.mxu0 %v5181
        %5200 = vmatprep.subr.mxu0 0.0
        %5201 = vmatpush1.msra.mxu0 %v5182
        %5202 = vmatprep.subr.mxu0 0.0
        %5203 = vmatpush1.msra.mxu0 %v5183
        %5204 = vmatprep.subr.mxu0 0.0
        %5205 = vmatpush1.msra.mxu0 %v5184
        %5206 = vmatprep.subr.mxu0 0.0
        %5207 = vmatpush1.msra.mxu0 %v5185
        %5208 = vmatprep.subr.mxu0 0.0
        %5209 = vmatpush1.msra.mxu0 %v5186
        %5210 = vmatprep.subr.mxu0 0.0
        %5211 = vmatpush1.msra.mxu0 %v5187
        %5212 = vmatprep.subr.mxu0 0.0
        %5213 = vmatpush1.msra.mxu0 %v5188
        %5214 = vmatprep.subr.mxu0 0.0
        %5215 = vmatpush1.msra.mxu0 %v5189
        %5216 = vmatprep.subr.mxu0 0.0
        %5217 = vmatpush1.msra.mxu0 %v5190
        %5218 = vmatprep.subr.mxu0 0.0
        %5219 = vmatpush1.msra.mxu0 %v5191
        %5220 = vmatprep.subr.mxu0 0.0
        %5221 = vmatpush1.msra.mxu0 %v5192
        %5222 = vmatprep.subr.mxu0 0.0
        %5223 = vmatpush1.msra.mxu0 %v5193
        %5224 = vmatprep.subr.mxu0 0.0
        %5225 = vmatpush1.msra.mxu0 %v5194
        %5226 = vmatprep.subr.mxu0 0.0
        %5227 = vmatpush1.msra.mxu0 %v5195
        %5228 = vmatprep.subr.mxu0 0.0
        %5229 = vmatpush1.msra.mxu0 %v5196
        %5230 = vmatprep.subr.mxu0 0.0
        %5231 = vmatpush1.msra.mxu0 0.0
        %5232 = vmatprep.subr.mxu0 0.0
        %5233 = vmatpush1.msra.mxu0 0.0
        %5234 = vmatprep.subr.mxu0 0.0
        %5235 = vmatpush1.msra.mxu0 0.0
        %5236 = vmatprep.subr.mxu0 0.0
        %5237 = vmatpush1.msra.mxu0 0.0
        %5238 = vmatprep.subr.mxu0 0.0
        %5239 = vmatpush1.msra.mxu0 0.0
        %5240 = vmatprep.subr.mxu0 0.0
        %5241 = vmatpush1.msra.mxu0 0.0
        %5242 = vmatprep.subr.mxu0 0.0
        %5243 = vmatpush1.msra.mxu0 0.0
        %5244 = vmatprep.subr.mxu0 0.0
        %5245 = vmatpush1.msra.mxu0 0.0
        %5246 = vmatprep.subr.mxu0 0.0
        %5247 = vmatpush1.msra.mxu0 0.0
        %5248 = vmatprep.subr.mxu0 0.0
        %5249 = vmatpush1.msra.mxu0 0.0
        %5250 = vmatprep.subr.mxu0 0.0
        %5251 = vmatpush1.msra.mxu0 0.0
        %5252 = vmatprep.subr.mxu0 0.0
        %5253 = vmatpush1.msra.mxu0 0.0
        %5254 = vmatprep.subr.mxu0 0.0
        %5255 = vmatpush1.msra.mxu0 0.0
        %5256 = vmatprep.subr.mxu0 0.0
        %5257 = vmatpush1.msra.mxu0 0.0
        %5258 = vmatprep.subr.mxu0 0.0
        %5259 = vmatpush1.msra.mxu0 0.0
        %5260 = vmatprep.subr.mxu0 0.0
        %5261 = vmatpush1.msra.mxu0 0.0
        %5262 = vmatprep.mubr.f32.mxu0 0.0
        %5263 = vmatmul.mubr.f32.gmra.mrb[0].mxu0 %v5180
        %v5264 = vpop.f32.mrb[0].mxu0
        %v5265 = vadd.f32 %v5197, %v5264
        %v5266 = vpop.f32.mrb[0].mxu0
        %5267 = vdwg.mxu0
        %v5268 = vmax.f32 %v5265, 0.0
        %v5269 = vld [vmem:[%s15] sm:$0xff]
        %v5270 = vld [vmem:[%s15 + $0x8] sm:$0xff]
        %v5271 = vld [vmem:[%s15 + $0x10] sm:$0xff]
        %v5272 = vld [vmem:[%s15 + $0x18] sm:$0xff]
        %v5273 = vld [vmem:[%s15 + $0x20] sm:$0xff]
        %v5274 = vld [vmem:[%s15 + $0x28] sm:$0xff]
        %v5275 = vld [vmem:[%s15 + $0x30] sm:$0xff]
        %v5276 = vld [vmem:[%s15 + $0x38] sm:$0xff]
        %v5277 = vld [vmem:[%s16] sm:$0x1]
        %v5279 = vsel %vm731, %v5268, 0
        %5281 = vmatprep.subr.mxu0 0.0
        %5282 = vmatpush1.msra.mxu0 %v5269
        %5283 = vmatprep.subr.mxu0 0.0
        %5284 = vmatpush1.msra.mxu0 %v5270
        %5285 = vmatprep.subr.mxu0 0.0
        %5286 = vmatpush1.msra.mxu0 %v5271
        %5287 = vmatprep.subr.mxu0 0.0
        %5288 = vmatpush1.msra.mxu0 %v5272
        %5289 = vmatprep.subr.mxu0 0.0
        %5290 = vmatpush1.msra.mxu0 %v5273
        %5291 = vmatprep.subr.mxu0 0.0
        %5292 = vmatpush1.msra.mxu0 %v5274
        %5293 = vmatprep.subr.mxu0 0.0
        %5294 = vmatpush1.msra.mxu0 %v5275
        %5295 = vmatprep.subr.mxu0 0.0
        %5296 = vmatpush1.msra.mxu0 %v5276
        %5297 = vmatprep.subr.mxu0 0.0
        %5298 = vmatpush1.msra.mxu0 0.0
        %5299 = vmatprep.subr.mxu0 0.0
        %5300 = vmatpush1.msra.mxu0 0.0
        %5301 = vmatprep.subr.mxu0 0.0
        %5302 = vmatpush1.msra.mxu0 0.0
        %5303 = vmatprep.subr.mxu0 0.0
        %5304 = vmatpush1.msra.mxu0 0.0
        %5305 = vmatprep.subr.mxu0 0.0
        %5306 = vmatpush1.msra.mxu0 0.0
        %5307 = vmatprep.subr.mxu0 0.0
        %5308 = vmatpush1.msra.mxu0 0.0
        %5309 = vmatprep.subr.mxu0 0.0
        %5310 = vmatpush1.msra.mxu0 0.0
        %5311 = vmatprep.subr.mxu0 0.0
        %5312 = vmatpush1.msra.mxu0 0.0
        %5313 = vmatprep.subr.mxu0 0.0
        %5314 = vmatpush1.msra.mxu0 0.0
        %5315 = vmatprep.subr.mxu0 0.0
        %5316 = vmatpush1.msra.mxu0 0.0
        %5317 = vmatprep.subr.mxu0 0.0
        %5318 = vmatpush1.msra.mxu0 0.0
        %5319 = vmatprep.subr.mxu0 0.0
        %5320 = vmatpush1.msra.mxu0 0.0
        %5321 = vmatprep.subr.mxu0 0.0
        %5322 = vmatpush1.msra.mxu0 0.0
        %5323 = vmatprep.subr.mxu0 0.0
        %5324 = vmatpush1.msra.mxu0 0.0
        %5325 = vmatprep.subr.mxu0 0.0
        %5326 = vmatpush1.msra.mxu0 0.0
        %5327 = vmatprep.subr.mxu0 0.0
        %5328 = vmatpush1.msra.mxu0 0.0
        %5329 = vmatprep.subr.mxu0 0.0
        %5330 = vmatpush1.msra.mxu0 0.0
        %5331 = vmatprep.subr.mxu0 0.0
        %5332 = vmatpush1.msra.mxu0 0.0
        %5333 = vmatprep.subr.mxu0 0.0
        %5334 = vmatpush1.msra.mxu0 0.0
        %5335 = vmatprep.subr.mxu0 0.0
        %5336 = vmatpush1.msra.mxu0 0.0
        %5337 = vmatprep.subr.mxu0 0.0
        %5338 = vmatpush1.msra.mxu0 0.0
        %5339 = vmatprep.subr.mxu0 0.0
        %5340 = vmatpush1.msra.mxu0 0.0
        %5341 = vmatprep.subr.mxu0 0.0
        %5342 = vmatpush1.msra.mxu0 0.0
        %5343 = vmatprep.subr.mxu0 0.0
        %5344 = vmatpush1.msra.mxu0 0.0
        %5345 = vmatprep.mubr.f32.mxu0 0.0
        %5346 = vmatmul.mubr.f32.gmra.mrb[0].mxu0 %v5279
        %v5347 = vpop.f32.mrb[0].mxu0
        %v5348 = vadd.f32 %v5277, %v5347
        %v5349 = vpop.f32.mrb[0].mxu0
        %5350 = vdwg.mxu0
        %vm5351 = vcmask 8192
        %5352 = vst.msk [vmem:[%s540] sm:$0x1] %vm5351, %v5348
        %s5353 = sand.u32 %s401, 1
        %s5354 = scalar_lea.sflag [#allocation8], %s5353
        %s5355 = sand.u32 %s401, 1
        %s5356 = scalar_lea.vmem [#allocation7], %s5355
        // Predicated region
        $region89: #{noise_classifier_forward.1} parent=87 // pred_check
          %p5357 = pneg %p411
        $region90: #{noise_classifier_forward.1} parent=87 // pred_check_branch
          %5359 = sbr.rel (%p5357) target = $region92
        $region91: #{noise_classifier_forward.1} parent=87 // pred_region
          %s5361 = ssub.s32 16, 16
          %5362 = vsyncadd %s5354, %s5361
          %s5363 = smul.addr %s31, 16
          %s5364 = scalar_lea.hbm %s17, %s5363
          %s5366 = sshll.u32 %s5356, 4
          %s5367 = int_to_ptr.vmem [resolvable:$true] %s5366
          %5369 = dma.vmem_to_hbm [thread:$0]  %s5367, 16, %s5364, %s5354
        $region92: #{noise_classifier_forward.1} parent=87 // pred_fallthru
          _
      $region88: #{noise_classifier_forward.1} parent=5 // pred_fallthru
        _
      %p5370 = scmp.le.s32.totalorder 2, %s26
      // Predicated region
      $region93: #{noise_classifier_forward.1} parent=5 // pred_check
        %p5371 = pneg %p5370
      $region94: #{noise_classifier_forward.1} parent=5 // pred_check_branch
        %5373 = sbr.rel (%p5371) target = $region96
      $region95: #{noise_classifier_forward.1} parent=5 // pred_region
        %s5374 = ssub.s32 %s26, 2
        // Predicated region
        $region97: #{noise_classifier_forward.1} parent=95 // pred_check
          %p5375 = pneg %p417
        $region98: #{noise_classifier_forward.1} parent=95 // pred_check_branch
          %5377 = sbr.rel (%p5375) target = $region100
        $region99: #{noise_classifier_forward.1} parent=95 // pred_region
          %s5378 = sand.u32 %s402, 1
          %s5379 = scalar_lea.sflag [#allocation8], %s5378
          %s5380 = sand.u32 %s402, 1
          %s5381 = scalar_lea.vmem [#allocation7], %s5380
          %5382 = dma.done %s5379, 16
        $region100: #{noise_classifier_forward.1} parent=95 // pred_fallthru
          _
      $region96: #{noise_classifier_forward.1} parent=5 // pred_fallthru
        _
    $region6: #{noise_classifier_forward.1} parent=1 // loop_footer
      %s30 = sadd.s32 1, %s26
    $region7: #{noise_classifier_forward.1} parent=1 // loop_footer_branch
      %25 = sbr.rel target = $region3
    $region8: #{noise_classifier_forward.1} parent=1 // loop_exit
      _
    %5383 = vsyncpa [#allocation8], 1
    %s5384 = scalar_lea.sflag [#allocation8], 1
    %5385 = vsyncpa %s5384, 1

</llo_original>
